<compile_context>
chip_gen: v6e
topology: v6e:2x2x1
jax: 0.10.0
libtpu: 0.0.40
codegen_flags: <defaults>
</compile_context>

<pallas_src>
import jax
import jax.numpy as jnp
from jax.experimental import pallas as pl
from jax.experimental.pallas import tpu as pltpu


# ----------------------------- Pallas kernels ------------------------------


def _conv_matmul_kernel(x_ref, w_ref, b_ref, o_ref):
    """o = relu(x @ w + b); x:(M,K), w:(K,N), b:(1,N)."""
    acc = jnp.dot(x_ref[...], w_ref[...], preferred_element_type=jnp.float32)
    o_ref[...] = jnp.maximum(acc + b_ref[...], 0.0).astype(o_ref.dtype)


def conv_matmul_relu(patches, w, b):
    M = patches.shape[0]
    N = w.shape[1]
    return pl.pallas_call(
        _conv_matmul_kernel,
        out_shape=jax.ShapeDtypeStruct((M, N), jnp.float32),
        in_specs=[pl.BlockSpec(memory_space=pltpu.MemorySpace.VMEM)] * 3,
        out_specs=pl.BlockSpec(memory_space=pltpu.MemorySpace.VMEM),
    )(patches, w, b)


def _dueling_head_kernel(feat_ref, w1_ref, b1_ref, w2v_ref, b2v_ref,
                         w2a_ref, b2a_ref, o_ref):
    """Fused dueling head.

    feat:(B,1024)  w1:(1024, 2*512)=[value_w1 | adv_w1]  b1:(1, 2*512)
    w2v:(512,1) b2v:(1,1)  w2a:(512,A) b2a:(1,A)  ->  o:(B,A)
    All intermediates stay in VMEM/vregs; only Q is stored to HBM.
    """
    hidden = w2v_ref.shape[0]
    h = jnp.dot(feat_ref[...], w1_ref[...], preferred_element_type=jnp.float32)
    h = jnp.maximum(h + b1_ref[...], 0.0)            # (B, 2*hidden)
    vh = h[:, :hidden]                               # lane-aligned slices (512 | 512)
    ah = h[:, hidden:]
    value = jnp.dot(vh, w2v_ref[...], preferred_element_type=jnp.float32) + b2v_ref[...]
    adv = jnp.dot(ah, w2a_ref[...], preferred_element_type=jnp.float32) + b2a_ref[...]
    q = value + (adv - jnp.mean(adv, axis=-1, keepdims=True))
    o_ref[...] = q.astype(o_ref.dtype)


def dueling_head(feat, w1, b1, w2v, b2v, w2a, b2a):
    B = feat.shape[0]
    A = w2a.shape[1]
    return pl.pallas_call(
        _dueling_head_kernel,
        out_shape=jax.ShapeDtypeStruct((B, A), jnp.float32),
        in_specs=[pl.BlockSpec(memory_space=pltpu.MemorySpace.VMEM)] * 7,
        out_specs=pl.BlockSpec(memory_space=pltpu.MemorySpace.VMEM),
    )(feat, w1, b1, w2v, b2v, w2a, b2a)


# ------------------------------- glue (JAX) --------------------------------


def im2col_nhwc(x, kh, kw, stride):
    """x:(B,H,W,C) -> (B*OH*OW, KH*KW*C), patch flatten order (kh, kw, c)."""
    B, H, W, C = x.shape
    oh = (H - kh) // stride + 1
    ow = (W - kw) // stride + 1
    cols = []
    for i in range(kh):
        for j in range(kw):
            cols.append(x[:, i:i + (oh - 1) * stride + 1:stride,
                          j:j + (ow - 1) * stride + 1:stride, :])
    p = jnp.concatenate(cols, axis=-1)               # (B, oh, ow, kh*kw*C)
    return p.reshape(B * oh * ow, kh * kw * C), oh, ow


def _reorder_head_w1(w, C, H, W):
    """torch Linear weight (512, C*H*W), columns in (c,h,w) order
    -> (H*W*C, 512), rows in (h,w,c) order (matches channels-last flatten)."""
    out_f = w.shape[0]
    w = w.reshape(out_f, C, H, W).transpose(0, 2, 3, 1).reshape(out_f, H * W * C)
    return w.T


def prepare_params(raw):
    """One-time (outside jit) layout prep of PyTorch-layout parameters."""
    def conv_w(w):   # (Cout, Cin, KH, KW) -> (KH*KW*Cin, Cout), (kh,kw,c) row order
        co, ci, kh, kw = w.shape
        return jnp.transpose(w, (2, 3, 1, 0)).reshape(kh * kw * ci, co)

    C, H, W = 64, 4, 4                               # conv3 output, 64x64 RGB input
    v1 = _reorder_head_w1(raw["v_w1"], C, H, W)      # (1024, 512)
    a1 = _reorder_head_w1(raw["a_w1"], C, H, W)      # (1024, 512)
    return {
        "c1_w": conv_w(raw["conv1_w"]), "c1_b": raw["conv1_b"].reshape(1, -1),
        "c2_w": conv_w(raw["conv2_w"]), "c2_b": raw["conv2_b"].reshape(1, -1),
        "c3_w": conv_w(raw["conv3_w"]), "c3_b": raw["conv3_b"].reshape(1, -1),
        "head_w1": jnp.concatenate([v1, a1], axis=1),                  # (1024, 1024)
        "head_b1": jnp.concatenate([raw["v_b1"], raw["a_b1"]]).reshape(1, -1),
        "head_w2v": raw["v_w2"].T,                                     # (512, 1)
        "head_b2v": raw["v_b2"].reshape(1, 1),
        "head_w2a": raw["a_w2"].T,                                     # (512, A)
        "head_b2a": raw["a_b2"].reshape(1, -1),
    }


def init_params(action_dim, key):
    """Raw parameters in PyTorch layout (as nn.Module would store them)."""
    ks = jax.random.split(key, 14)
    s = 0.05

    def rnd(k, shape):
        return jax.random.normal(k, shape, dtype=jnp.float32) * s

    feat = 64 * 4 * 4   # feature_map_size for 64x64 input
    return {
        "conv1_w": rnd(ks[0], (32, 3, 8, 8)), "conv1_b": rnd(ks[1], (32,)),
        "conv2_w": rnd(ks[2], (64, 32, 4, 4)), "conv2_b": rnd(ks[3], (64,)),
        "conv3_w": rnd(ks[4], (64, 64, 3, 3)), "conv3_b": rnd(ks[5], (64,)),
        "v_w1": rnd(ks[6], (512, feat)), "v_b1": rnd(ks[7], (512,)),
        "v_w2": rnd(ks[8], (1, 512)), "v_b2": rnd(ks[9], (1,)),
        "a_w1": rnd(ks[10], (512, feat)), "a_b1": rnd(ks[11], (512,)),
        "a_w2": rnd(ks[12], (action_dim, 512)), "a_b2": rnd(ks[13], (action_dim,)),
    }


@jax.jit
def dqn_rgb_forward(x_nchw, params):
    B = x_nchw.shape[0]
    x = jnp.transpose(x_nchw, (0, 2, 3, 1))          # single NCHW->NHWC permute

    p, oh, ow = im2col_nhwc(x, 8, 8, 4)              # (B*15*15, 192)
    x = conv_matmul_relu(p, params["c1_w"], params["c1_b"]).reshape(B, oh, ow, -1)

    p, oh, ow = im2col_nhwc(x, 4, 4, 2)              # (B*6*6, 512)
    x = conv_matmul_relu(p, params["c2_w"], params["c2_b"]).reshape(B, oh, ow, -1)

    p, oh, ow = im2col_nhwc(x, 3, 3, 1)              # (B*4*4, 576)
    x = conv_matmul_relu(p, params["c3_w"], params["c3_b"])          # (B*16, 64)

    # PyTorch .view(B,-1) flattens NCHW in (C,H,W) order; we flatten (H,W,C) and
    # the matching column permutation was folded into head_w1 in prepare_params.
    feat = x.reshape(B, -1)                                           # (B, 1024)

    return dueling_head(feat, params["head_w1"], params["head_b1"],
                        params["head_w2v"], params["head_b2v"],
                        params["head_w2a"], params["head_b2a"])


if __name__ == "__main__":
    key = jax.random.PRNGKey(0)
    pkey, xkey = jax.random.split(key)

    action_dim = 2
    batch = 2
    raw_params = init_params(action_dim, pkey)
    params = prepare_params(raw_params)              # layout prep: once, outside jit

    # Input must be 64x64 RGB to match the module's feature_map_size (1024).
    x = jax.random.normal(xkey, (batch, 3, 64, 64), dtype=jnp.float32)

    q_values = dqn_rgb_forward(x, params)
    jax.block_until_ready(q_values)
    assert q_values.shape == (batch, action_dim)
    assert bool(jnp.all(jnp.isfinite(q_values)))
    print("KERNEL_OK")
</pallas_src>

<mosaic_0001>
module attributes {stable_mosaic.version = 11 : i64} {
  func.func @_conv_matmul_kernel(%arg0: memref<450x192xf32, #tpu.memory_space<vmem>>, %arg1: memref<192x32xf32, #tpu.memory_space<vmem>>, %arg2: memref<1x32xf32, #tpu.memory_space<vmem>>, %arg3: memref<450x32xf32, #tpu.memory_space<vmem>>) attributes {dimension_semantics = [], scalar_prefetch = 0 : i64, scratch_operands = 0 : i64, tpu.core_type = #tpu.core_type<tc>} {
    %c0 = arith.constant 0 : index
    %c0_0 = arith.constant 0 : index
    %0 = vector.load %arg0[%c0, %c0_0] : memref<450x192xf32, #tpu.memory_space<vmem>>, vector<450x192xf32>
    %c0_1 = arith.constant 0 : index
    %c0_2 = arith.constant 0 : index
    %1 = vector.load %arg1[%c0_1, %c0_2] : memref<192x32xf32, #tpu.memory_space<vmem>>, vector<192x32xf32>
    %cst = arith.constant dense<0.000000e+00> : vector<450x32xf32>
    %2 = tpu.matmul %0, %1, %cst {dimension_numbers = #tpu.dot_dimension_numbers<[1], [0], [0], [1], [0, 0, 1, 1], [], []>} : vector<450x192xf32>, vector<192x32xf32>, vector<450x32xf32> -> vector<450x32xf32>
    %c0_3 = arith.constant 0 : index
    %c0_4 = arith.constant 0 : index
    %3 = vector.load %arg2[%c0_3, %c0_4] : memref<1x32xf32, #tpu.memory_space<vmem>>, vector<1x32xf32>
    %4 = vector.broadcast %3 : vector<1x32xf32> to vector<450x32xf32>
    %5 = arith.addf %2, %4 : vector<450x32xf32>
    %cst_5 = arith.constant 0.000000e+00 : f32
    %6 = vector.broadcast %cst_5 : f32 to vector<450x32xf32>
    %7 = arith.maximumf %5, %6 : vector<450x32xf32>
    %c0_6 = arith.constant 0 : index
    %c0_7 = arith.constant 0 : index
    %8 = vector.load %arg3[%c0_6, %c0_7] : memref<450x32xf32, #tpu.memory_space<vmem>>, vector<450x32xf32>
    tpu.vector_store %arg3[%c0_6, %c0_7], %7 {strides = array<i32>} : memref<450x32xf32, #tpu.memory_space<vmem>>, vector<450x32xf32>,
    return
  }
}

module attributes {stable_mosaic.version = 11 : i64} {
  func.func @_conv_matmul_kernel(%arg0: memref<72x512xf32, #tpu.memory_space<vmem>>, %arg1: memref<512x64xf32, #tpu.memory_space<vmem>>, %arg2: memref<1x64xf32, #tpu.memory_space<vmem>>, %arg3: memref<72x64xf32, #tpu.memory_space<vmem>>) attributes {dimension_semantics = [], scalar_prefetch = 0 : i64, scratch_operands = 0 : i64, tpu.core_type = #tpu.core_type<tc>} {
    %c0 = arith.constant 0 : index
    %c0_0 = arith.constant 0 : index
    %0 = vector.load %arg0[%c0, %c0_0] : memref<72x512xf32, #tpu.memory_space<vmem>>, vector<72x512xf32>
    %c0_1 = arith.constant 0 : index
    %c0_2 = arith.constant 0 : index
    %1 = vector.load %arg1[%c0_1, %c0_2] : memref<512x64xf32, #tpu.memory_space<vmem>>, vector<512x64xf32>
    %cst = arith.constant dense<0.000000e+00> : vector<72x64xf32>
    %2 = tpu.matmul %0, %1, %cst {dimension_numbers = #tpu.dot_dimension_numbers<[1], [0], [0], [1], [0, 0, 1, 1], [], []>} : vector<72x512xf32>, vector<512x64xf32>, vector<72x64xf32> -> vector<72x64xf32>
    %c0_3 = arith.constant 0 : index
    %c0_4 = arith.constant 0 : index
    %3 = vector.load %arg2[%c0_3, %c0_4] : memref<1x64xf32, #tpu.memory_space<vmem>>, vector<1x64xf32>
    %4 = vector.broadcast %3 : vector<1x64xf32> to vector<72x64xf32>
    %5 = arith.addf %2, %4 : vector<72x64xf32>
    %cst_5 = arith.constant 0.000000e+00 : f32
    %6 = vector.broadcast %cst_5 : f32 to vector<72x64xf32>
    %7 = arith.maximumf %5, %6 : vector<72x64xf32>
    %c0_6 = arith.constant 0 : index
    %c0_7 = arith.constant 0 : index
    %8 = vector.load %arg3[%c0_6, %c0_7] : memref<72x64xf32, #tpu.memory_space<vmem>>, vector<72x64xf32>
    tpu.vector_store %arg3[%c0_6, %c0_7], %7 {strides = array<i32>} : memref<72x64xf32, #tpu.memory_space<vmem>>, vector<72x64xf32>,
    return
  }
}

module attributes {stable_mosaic.version = 11 : i64} {
  func.func @_conv_matmul_kernel(%arg0: memref<32x576xf32, #tpu.memory_space<vmem>>, %arg1: memref<576x64xf32, #tpu.memory_space<vmem>>, %arg2: memref<1x64xf32, #tpu.memory_space<vmem>>, %arg3: memref<32x64xf32, #tpu.memory_space<vmem>>) attributes {dimension_semantics = [], scalar_prefetch = 0 : i64, scratch_operands = 0 : i64, tpu.core_type = #tpu.core_type<tc>} {
    %c0 = arith.constant 0 : index
    %c0_0 = arith.constant 0 : index
    %0 = vector.load %arg0[%c0, %c0_0] : memref<32x576xf32, #tpu.memory_space<vmem>>, vector<32x576xf32>
    %c0_1 = arith.constant 0 : index
    %c0_2 = arith.constant 0 : index
    %1 = vector.load %arg1[%c0_1, %c0_2] : memref<576x64xf32, #tpu.memory_space<vmem>>, vector<576x64xf32>
    %cst = arith.constant dense<0.000000e+00> : vector<32x64xf32>
    %2 = tpu.matmul %0, %1, %cst {dimension_numbers = #tpu.dot_dimension_numbers<[1], [0], [0], [1], [0, 0, 1, 1], [], []>} : vector<32x576xf32>, vector<576x64xf32>, vector<32x64xf32> -> vector<32x64xf32>
    %c0_3 = arith.constant 0 : index
    %c0_4 = arith.constant 0 : index
    %3 = vector.load %arg2[%c0_3, %c0_4] : memref<1x64xf32, #tpu.memory_space<vmem>>, vector<1x64xf32>
    %4 = vector.broadcast %3 : vector<1x64xf32> to vector<32x64xf32>
    %5 = arith.addf %2, %4 : vector<32x64xf32>
    %cst_5 = arith.constant 0.000000e+00 : f32
    %6 = vector.broadcast %cst_5 : f32 to vector<32x64xf32>
    %7 = arith.maximumf %5, %6 : vector<32x64xf32>
    %c0_6 = arith.constant 0 : index
    %c0_7 = arith.constant 0 : index
    %8 = vector.load %arg3[%c0_6, %c0_7] : memref<32x64xf32, #tpu.memory_space<vmem>>, vector<32x64xf32>
    tpu.vector_store %arg3[%c0_6, %c0_7], %7 {strides = array<i32>} : memref<32x64xf32, #tpu.memory_space<vmem>>, vector<32x64xf32>,
    return
  }
}

module attributes {stable_mosaic.version = 11 : i64} {
  func.func @_dueling_head_kernel(%arg0: memref<2x1024xf32, #tpu.memory_space<vmem>>, %arg1: memref<1024x1024xf32, #tpu.memory_space<vmem>>, %arg2: memref<1x1024xf32, #tpu.memory_space<vmem>>, %arg3: memref<512x1xf32, #tpu.memory_space<vmem>>, %arg4: memref<1x1xf32, #tpu.memory_space<vmem>>, %arg5: memref<512x2xf32, #tpu.memory_space<vmem>>, %arg6: memref<1x2xf32, #tpu.memory_space<vmem>>, %arg7: memref<2x2xf32, #tpu.memory_space<vmem>>) attributes {dimension_semantics = [], scalar_prefetch = 0 : i64, scratch_operands = 0 : i64, tpu.core_type = #tpu.core_type<tc>} {
    %c0 = arith.constant 0 : index
    %c0_0 = arith.constant 0 : index
    %0 = vector.load %arg0[%c0, %c0_0] : memref<2x1024xf32, #tpu.memory_space<vmem>>, vector<2x1024xf32>
    %c0_1 = arith.constant 0 : index
    %c0_2 = arith.constant 0 : index
    %1 = vector.load %arg1[%c0_1, %c0_2] : memref<1024x1024xf32, #tpu.memory_space<vmem>>, vector<1024x1024xf32>
    %cst = arith.constant dense<0.000000e+00> : vector<2x1024xf32>
    %2 = tpu.matmul %0, %1, %cst {dimension_numbers = #tpu.dot_dimension_numbers<[1], [0], [0], [1], [0, 0, 1, 1], [], []>} : vector<2x1024xf32>, vector<1024x1024xf32>, vector<2x1024xf32> -> vector<2x1024xf32>
    %c0_3 = arith.constant 0 : index
    %c0_4 = arith.constant 0 : index
    %3 = vector.load %arg2[%c0_3, %c0_4] : memref<1x1024xf32, #tpu.memory_space<vmem>>, vector<1x1024xf32>
    %4 = vector.broadcast %3 : vector<1x1024xf32> to vector<2x1024xf32>
    %5 = arith.addf %2, %4 : vector<2x1024xf32>
    %cst_5 = arith.constant 0.000000e+00 : f32
    %6 = vector.broadcast %cst_5 : f32 to vector<2x1024xf32>
    %7 = arith.maximumf %5, %6 : vector<2x1024xf32>
    %8 = vector.extract_strided_slice %7 {offsets = [0, 0], sizes = [2, 512], strides = [1, 1]} : vector<2x1024xf32> to vector<2x512xf32>
    %9 = vector.extract_strided_slice %7 {offsets = [0, 512], sizes = [2, 512], strides = [1, 1]} : vector<2x1024xf32> to vector<2x512xf32>
    %c0_6 = arith.constant 0 : index
    %c0_7 = arith.constant 0 : index
    %10 = vector.load %arg3[%c0_6, %c0_7] : memref<512x1xf32, #tpu.memory_space<vmem>>, vector<512x1xf32>
    %cst_8 = arith.constant dense<0.000000e+00> : vector<2x1xf32>
    %11 = tpu.matmul %8, %10, %cst_8 {dimension_numbers = #tpu.dot_dimension_numbers<[1], [0], [0], [1], [0, 0, 1, 1], [], []>} : vector<2x512xf32>, vector<512x1xf32>, vector<2x1xf32> -> vector<2x1xf32>
    %c0_9 = arith.constant 0 : index
    %c0_10 = arith.constant 0 : index
    %12 = vector.load %arg4[%c0_9, %c0_10] : memref<1x1xf32, #tpu.memory_space<vmem>>, vector<1x1xf32>
    %13 = vector.broadcast %12 : vector<1x1xf32> to vector<2x1xf32>
    %14 = arith.addf %11, %13 : vector<2x1xf32>
    %c0_11 = arith.constant 0 : index
    %c0_12 = arith.constant 0 : index
    %15 = vector.load %arg5[%c0_11, %c0_12] : memref<512x2xf32, #tpu.memory_space<vmem>>, vector<512x2xf32>
    %cst_13 = arith.constant dense<0.000000e+00> : vector<2x2xf32>
    %16 = tpu.matmul %9, %15, %cst_13 {dimension_numbers = #tpu.dot_dimension_numbers<[1], [0], [0], [1], [0, 0, 1, 1], [], []>} : vector<2x512xf32>, vector<512x2xf32>, vector<2x2xf32> -> vector<2x2xf32>
    %c0_14 = arith.constant 0 : index
    %c0_15 = arith.constant 0 : index
    %17 = vector.load %arg6[%c0_14, %c0_15] : memref<1x2xf32, #tpu.memory_space<vmem>>, vector<1x2xf32>
    %18 = vector.broadcast %17 : vector<1x2xf32> to vector<2x2xf32>
    %19 = arith.addf %16, %18 : vector<2x2xf32>
    %cst_16 = arith.constant dense<0.000000e+00> : vector<2xf32>
    %20 = vector.multi_reduction <add>, %19, %cst_16 [1] : vector<2x2xf32> to vector<2xf32>
    %21 = vector.shape_cast %20 : vector<2xf32> to vector<2x1xf32>
    %cst_17 = arith.constant 2.000000e+00 : f32
    %22 = vector.broadcast %cst_17 : f32 to vector<2x1xf32>
    %23 = arith.divf %21, %22 : vector<2x1xf32>
    %24 = vector.broadcast %23 : vector<2x1xf32> to vector<2x2xf32>
    %25 = arith.subf %19, %24 : vector<2x2xf32>
    %26 = vector.broadcast %14 : vector<2x1xf32> to vector<2x2xf32>
    %27 = arith.addf %26, %25 : vector<2x2xf32>
    %c0_18 = arith.constant 0 : index
    %c0_19 = arith.constant 0 : index
    %28 = vector.load %arg7[%c0_18, %c0_19] : memref<2x2xf32, #tpu.memory_space<vmem>>, vector<2x2xf32>
    tpu.vector_store %arg7[%c0_18, %c0_19], %27 {strides = array<i32>} : memref<2x2xf32, #tpu.memory_space<vmem>>, vector<2x2xf32>,
    return
  }
}

</mosaic_0001>

<llo_original>
// kernel: dqn_rgb_forward.4
$region0: #{dqn_rgb_forward.4}
  #allocation0 [shape = 'u32[]', space=smem, size = 0x4, offset = 0x4, fixed_abs, tag = 'smem constant byte address 0x4 - core index']
  #allocation1 [shape = 'u32[144,128]{1,0:T(1,128)}', space=vmem, size = 0x12000, scoped, tag = 'internal scratch']
  %s0 = inlined_call_operand.vmem [shape: f32[450,192], index: 0, kind: input, shape index: {}]
  %s1 = inlined_call_operand.vmem [shape: f32[192,32], index: 1, kind: input, shape index: {}]
  %s2 = inlined_call_operand.vmem [shape: f32[1,32], index: 2, kind: input, shape index: {}]
  %s3 = inlined_call_operand.vmem [shape: f32[450,32], index: 3, kind: output, shape index: {}]
  %s4 = sld [smem:[#allocation0]]
  $region22: #{dqn_rgb_forward.4} parent=0
    _
  %s6 = ssub.s32 1, %s4
  %s7 = scalar_select 0, %s6, %s4
  // Predicated region
  $region2: #{dqn_rgb_forward.4} parent=0 // pred_check
    _
  $region3: #{dqn_rgb_forward.4} parent=0 // pred_check_branch
    %9 = sbr.rel (0) target = $region5
  $region4: #{dqn_rgb_forward.4} parent=0 // pred_region
    _
  $region5: #{dqn_rgb_forward.4} parent=0 // pred_fallthru
    _
  // Predicated region
  $region6: #{dqn_rgb_forward.4} parent=0 // pred_check
    _
  $region7: #{dqn_rgb_forward.4} parent=0 // pred_check_branch
    %11 = sbr.rel (0) target = $region9
  $region8: #{dqn_rgb_forward.4} parent=0 // pred_region
    _
  $region9: #{dqn_rgb_forward.4} parent=0 // pred_fallthru
    _
  // Predicated region
  $region10: #{dqn_rgb_forward.4} parent=0 // pred_check
    _
  $region11: #{dqn_rgb_forward.4} parent=0 // pred_check_branch
    %13 = sbr.rel (0) target = $region13
  $region12: #{dqn_rgb_forward.4} parent=0 // pred_region
    _
  $region13: #{dqn_rgb_forward.4} parent=0 // pred_fallthru
    _
  %v14 = vld [vmem:[%s0] sm:$0xff]
  %v15 = vld [vmem:[%s0 + $0x8] sm:$0xff]
  %v16 = vld [vmem:[%s0 + $0x10] sm:$0xff]
  %v17 = vld [vmem:[%s0 + $0x18] sm:$0xff]
  %v18 = vld [vmem:[%s0 + $0x20] sm:$0xff]
  %v19 = vld [vmem:[%s0 + $0x28] sm:$0xff]
  %v20 = vld [vmem:[%s0 + $0x30] sm:$0xff]
  %v21 = vld [vmem:[%s0 + $0x38] sm:$0xff]
  %v22 = vld [vmem:[%s0 + $0x40] sm:$0xff]
  %v23 = vld [vmem:[%s0 + $0x48] sm:$0xff]
  %v24 = vld [vmem:[%s0 + $0x50] sm:$0xff]
  %v25 = vld [vmem:[%s0 + $0x58] sm:$0xff]
  %v26 = vld [vmem:[%s0 + $0x60] sm:$0xff]
  %v27 = vld [vmem:[%s0 + $0x68] sm:$0xff]
  %v28 = vld [vmem:[%s0 + $0x70] sm:$0xff]
  %v29 = vld [vmem:[%s0 + $0x78] sm:$0xff]
  %v30 = vld [vmem:[%s0 + $0x80] sm:$0xff]
  %v31 = vld [vmem:[%s0 + $0x88] sm:$0xff]
  %v32 = vld [vmem:[%s0 + $0x90] sm:$0xff]
  %v33 = vld [vmem:[%s0 + $0x98] sm:$0xff]
  %v34 = vld [vmem:[%s0 + $0xa0] sm:$0xff]
  %v35 = vld [vmem:[%s0 + $0xa8] sm:$0xff]
  %v36 = vld [vmem:[%s0 + $0xb0] sm:$0xff]
  %v37 = vld [vmem:[%s0 + $0xb8] sm:$0xff]
  %v38 = vld [vmem:[%s0 + $0xc0] sm:$0xff]
  %v39 = vld [vmem:[%s0 + $0xc8] sm:$0xff]
  %v40 = vld [vmem:[%s0 + $0xd0] sm:$0xff]
  %v41 = vld [vmem:[%s0 + $0xd8] sm:$0xff]
  %v42 = vld [vmem:[%s0 + $0xe0] sm:$0xff]
  %v43 = vld [vmem:[%s0 + $0xe8] sm:$0xff]
  %v44 = vld [vmem:[%s0 + $0xf0] sm:$0xff]
  %v45 = vld [vmem:[%s0 + $0xf8] sm:$0xff]
  %v46 = vld [vmem:[%s0 + $0x100] sm:$0xff]
  %v47 = vld [vmem:[%s0 + $0x108] sm:$0xff]
  %v48 = vld [vmem:[%s0 + $0x110] sm:$0xff]
  %v49 = vld [vmem:[%s0 + $0x118] sm:$0xff]
  %v50 = vld [vmem:[%s0 + $0x120] sm:$0xff]
  %v51 = vld [vmem:[%s0 + $0x128] sm:$0xff]
  %v52 = vld [vmem:[%s0 + $0x130] sm:$0xff]
  %v53 = vld [vmem:[%s0 + $0x138] sm:$0xff]
  %v54 = vld [vmem:[%s0 + $0x140] sm:$0xff]
  %v55 = vld [vmem:[%s0 + $0x148] sm:$0xff]
  %v56 = vld [vmem:[%s0 + $0x150] sm:$0xff]
  %v57 = vld [vmem:[%s0 + $0x158] sm:$0xff]
  %v58 = vld [vmem:[%s0 + $0x160] sm:$0xff]
  %v59 = vld [vmem:[%s0 + $0x168] sm:$0xff]
  %v60 = vld [vmem:[%s0 + $0x170] sm:$0xff]
  %v61 = vld [vmem:[%s0 + $0x178] sm:$0xff]
  %v62 = vld [vmem:[%s0 + $0x180] sm:$0xff]
  %v63 = vld [vmem:[%s0 + $0x188] sm:$0xff]
  %v64 = vld [vmem:[%s0 + $0x190] sm:$0xff]
  %v65 = vld [vmem:[%s0 + $0x198] sm:$0xff]
  %v66 = vld [vmem:[%s0 + $0x1a0] sm:$0xff]
  %v67 = vld [vmem:[%s0 + $0x1a8] sm:$0xff]
  %v68 = vld [vmem:[%s0 + $0x1b0] sm:$0xff]
  %v69 = vld [vmem:[%s0 + $0x1b8] sm:$0xff]
  %v70 = vld [vmem:[%s0 + $0x1c0] sm:$0xff]
  %v71 = vld [vmem:[%s0 + $0x1c8] sm:$0xff]
  %v72 = vld [vmem:[%s0 + $0x1d0] sm:$0xff]
  %v73 = vld [vmem:[%s0 + $0x1d8] sm:$0xff]
  %v74 = vld [vmem:[%s0 + $0x1e0] sm:$0xff]
  %v75 = vld [vmem:[%s0 + $0x1e8] sm:$0xff]
  %v76 = vld [vmem:[%s0 + $0x1f0] sm:$0xff]
  %v77 = vld [vmem:[%s0 + $0x1f8] sm:$0xff]
  %v78 = vld [vmem:[%s0 + $0x200] sm:$0xff]
  %v79 = vld [vmem:[%s0 + $0x208] sm:$0xff]
  %v80 = vld [vmem:[%s0 + $0x210] sm:$0xff]
  %v81 = vld [vmem:[%s0 + $0x218] sm:$0xff]
  %v82 = vld [vmem:[%s0 + $0x220] sm:$0xff]
  %v83 = vld [vmem:[%s0 + $0x228] sm:$0xff]
  %v84 = vld [vmem:[%s0 + $0x230] sm:$0xff]
  %v85 = vld [vmem:[%s0 + $0x238] sm:$0xff]
  %v86 = vld [vmem:[%s0 + $0x240] sm:$0xff]
  %v87 = vld [vmem:[%s0 + $0x248] sm:$0xff]
  %v88 = vld [vmem:[%s0 + $0x250] sm:$0xff]
  %v89 = vld [vmem:[%s0 + $0x258] sm:$0xff]
  %v90 = vld [vmem:[%s0 + $0x260] sm:$0xff]
  %v91 = vld [vmem:[%s0 + $0x268] sm:$0xff]
  %v92 = vld [vmem:[%s0 + $0x270] sm:$0xff]
  %v93 = vld [vmem:[%s0 + $0x278] sm:$0xff]
  %v94 = vld [vmem:[%s0 + $0x280] sm:$0xff]
  %v95 = vld [vmem:[%s0 + $0x288] sm:$0xff]
  %v96 = vld [vmem:[%s0 + $0x290] sm:$0xff]
  %v97 = vld [vmem:[%s0 + $0x298] sm:$0xff]
  %v98 = vld [vmem:[%s0 + $0x2a0] sm:$0xff]
  %v99 = vld [vmem:[%s0 + $0x2a8] sm:$0xff]
  %v100 = vld [vmem:[%s0 + $0x2b0] sm:$0xff]
  %v101 = vld [vmem:[%s0 + $0x2b8] sm:$0xff]
  %v102 = vld [vmem:[%s0 + $0x2c0] sm:$0xff]
  %v103 = vld [vmem:[%s0 + $0x2c8] sm:$0xff]
  %v104 = vld [vmem:[%s0 + $0x2d0] sm:$0xff]
  %v105 = vld [vmem:[%s0 + $0x2d8] sm:$0xff]
  %v106 = vld [vmem:[%s0 + $0x2e0] sm:$0xff]
  %v107 = vld [vmem:[%s0 + $0x2e8] sm:$0xff]
  %v108 = vld [vmem:[%s0 + $0x2f0] sm:$0xff]
  %v109 = vld [vmem:[%s0 + $0x2f8] sm:$0xff]
  %v110 = vld [vmem:[%s0 + $0x300] sm:$0xff]
  %v111 = vld [vmem:[%s0 + $0x308] sm:$0xff]
  %v112 = vld [vmem:[%s0 + $0x310] sm:$0xff]
  %v113 = vld [vmem:[%s0 + $0x318] sm:$0xff]
  %v114 = vld [vmem:[%s0 + $0x320] sm:$0xff]
  %v115 = vld [vmem:[%s0 + $0x328] sm:$0xff]
  %v116 = vld [vmem:[%s0 + $0x330] sm:$0xff]
  %v117 = vld [vmem:[%s0 + $0x338] sm:$0xff]
  %v118 = vld [vmem:[%s0 + $0x340] sm:$0xff]
  %v119 = vld [vmem:[%s0 + $0x348] sm:$0xff]
  %v120 = vld [vmem:[%s0 + $0x350] sm:$0xff]
  %v121 = vld [vmem:[%s0 + $0x358] sm:$0xff]
  %v122 = vld [vmem:[%s0 + $0x360] sm:$0xff]
  %v123 = vld [vmem:[%s0 + $0x368] sm:$0xff]
  %v124 = vld [vmem:[%s0 + $0x370] sm:$0xff]
  %v125 = vld [vmem:[%s0 + $0x378] sm:$0xff]
  %v126 = vld [vmem:[%s0 + $0x380] sm:$0x3]
  %v127 = vld [vmem:[%s0 + $0x388] sm:$0x3]
  %v128 = vld [vmem:[%s1] sm:$0xff]
  %v129 = vld [vmem:[%s1 + $0x8] sm:$0xff]
  %v130 = vld [vmem:[%s1 + $0x10] sm:$0xff]
  %v131 = vld [vmem:[%s1 + $0x18] sm:$0xff]
  %v132 = vld [vmem:[%s1 + $0x20] sm:$0xff]
  %v133 = vld [vmem:[%s1 + $0x28] sm:$0xff]
  %v134 = vld [vmem:[%s1 + $0x30] sm:$0xff]
  %v135 = vld [vmem:[%s1 + $0x38] sm:$0xff]
  %v136 = vld [vmem:[%s1 + $0x40] sm:$0xff]
  %v137 = vld [vmem:[%s1 + $0x48] sm:$0xff]
  %v138 = vld [vmem:[%s1 + $0x50] sm:$0xff]
  %v139 = vld [vmem:[%s1 + $0x58] sm:$0xff]
  %v140 = vld [vmem:[%s1 + $0x60] sm:$0xff]
  %v141 = vld [vmem:[%s1 + $0x68] sm:$0xff]
  %v142 = vld [vmem:[%s1 + $0x70] sm:$0xff]
  %v143 = vld [vmem:[%s1 + $0x78] sm:$0xff]
  %v144 = vld [vmem:[%s1 + $0x80] sm:$0xff]
  %v145 = vld [vmem:[%s1 + $0x88] sm:$0xff]
  %v146 = vld [vmem:[%s1 + $0x90] sm:$0xff]
  %v147 = vld [vmem:[%s1 + $0x98] sm:$0xff]
  %v148 = vld [vmem:[%s1 + $0xa0] sm:$0xff]
  %v149 = vld [vmem:[%s1 + $0xa8] sm:$0xff]
  %v150 = vld [vmem:[%s1 + $0xb0] sm:$0xff]
  %v151 = vld [vmem:[%s1 + $0xb8] sm:$0xff]
  %v152 = vld [vmem:[%s2] sm:$0x1]
  %v154 = vlaneseq
  %v155 = vshrl.u32 %v154, 7
  %v156 = vsub.s32 0, %v155
  %v157 = vrot.slane %v152, %v156
  %vm159 = vcmask 523264
  %v161 = vsel %vm159, %v15, 0
  %v164 = vsel %vm159, %v17, 0
  %v167 = vsel %vm159, %v19, 0
  %v170 = vsel %vm159, %v21, 0
  %v173 = vsel %vm159, %v23, 0
  %v176 = vsel %vm159, %v25, 0
  %v179 = vsel %vm159, %v27, 0
  %v182 = vsel %vm159, %v29, 0
  %v185 = vsel %vm159, %v31, 0
  %v188 = vsel %vm159, %v33, 0
  %v191 = vsel %vm159, %v35, 0
  %v194 = vsel %vm159, %v37, 0
  %v197 = vsel %vm159, %v39, 0
  %v200 = vsel %vm159, %v41, 0
  %v203 = vsel %vm159, %v43, 0
  %v206 = vsel %vm159, %v45, 0
  %v209 = vsel %vm159, %v47, 0
  %v212 = vsel %vm159, %v49, 0
  %v215 = vsel %vm159, %v51, 0
  %v218 = vsel %vm159, %v53, 0
  %v221 = vsel %vm159, %v55, 0
  %v224 = vsel %vm159, %v57, 0
  %v227 = vsel %vm159, %v59, 0
  %v230 = vsel %vm159, %v61, 0
  %v233 = vsel %vm159, %v63, 0
  %v236 = vsel %vm159, %v65, 0
  %v239 = vsel %vm159, %v67, 0
  %v242 = vsel %vm159, %v69, 0
  %v245 = vsel %vm159, %v71, 0
  %v248 = vsel %vm159, %v73, 0
  %v251 = vsel %vm159, %v75, 0
  %v254 = vsel %vm159, %v77, 0
  %v257 = vsel %vm159, %v79, 0
  %v260 = vsel %vm159, %v81, 0
  %v263 = vsel %vm159, %v83, 0
  %v266 = vsel %vm159, %v85, 0
  %v269 = vsel %vm159, %v87, 0
  %v272 = vsel %vm159, %v89, 0
  %v275 = vsel %vm159, %v91, 0
  %v278 = vsel %vm159, %v93, 0
  %v281 = vsel %vm159, %v95, 0
  %v284 = vsel %vm159, %v97, 0
  %v287 = vsel %vm159, %v99, 0
  %v290 = vsel %vm159, %v101, 0
  %v293 = vsel %vm159, %v103, 0
  %v296 = vsel %vm159, %v105, 0
  %v299 = vsel %vm159, %v107, 0
  %v302 = vsel %vm159, %v109, 0
  %v305 = vsel %vm159, %v111, 0
  %v308 = vsel %vm159, %v113, 0
  %v311 = vsel %vm159, %v115, 0
  %v314 = vsel %vm159, %v117, 0
  %v317 = vsel %vm159, %v119, 0
  %v320 = vsel %vm159, %v121, 0
  %v323 = vsel %vm159, %v123, 0
  %v326 = vsel %vm159, %v125, 0
  %v329 = vsel %vm159, %v127, 0
  %331 = vmatprep.subr.mxu0 0.0
  %332 = vmatpush1.msra.mxu0 %v143
  %333 = vmatprep.subr.mxu0 0.0
  %334 = vmatpush1.msra.mxu0 %v142
  %335 = vmatprep.subr.mxu0 0.0
  %336 = vmatpush1.msra.mxu0 %v141
  %337 = vmatprep.subr.mxu0 0.0
  %338 = vmatpush1.msra.mxu0 %v140
  %339 = vmatprep.subr.mxu0 0.0
  %340 = vmatpush1.msra.mxu0 %v139
  %341 = vmatprep.subr.mxu0 0.0
  %342 = vmatpush1.msra.mxu0 %v138
  %343 = vmatprep.subr.mxu0 0.0
  %344 = vmatpush1.msra.mxu0 %v137
  %345 = vmatprep.subr.mxu0 0.0
  %346 = vmatpush1.msra.mxu0 %v136
  %347 = vmatprep.subr.mxu0 0.0
  %348 = vmatpush1.msra.mxu0 %v135
  %349 = vmatprep.subr.mxu0 0.0
  %350 = vmatpush1.msra.mxu0 %v134
  %351 = vmatprep.subr.mxu0 0.0
  %352 = vmatpush1.msra.mxu0 %v133
  %353 = vmatprep.subr.mxu0 0.0
  %354 = vmatpush1.msra.mxu0 %v132
  %355 = vmatprep.subr.mxu0 0.0
  %356 = vmatpush1.msra.mxu0 %v131
  %357 = vmatprep.subr.mxu0 0.0
  %358 = vmatpush1.msra.mxu0 %v130
  %359 = vmatprep.subr.mxu0 0.0
  %360 = vmatpush1.msra.mxu0 %v129
  %361 = vmatprep.subr.mxu0 0.0
  %362 = vmatpush1.msra.mxu0 %v128
  %363 = vmatprep.subr.mxu0 0.0
  %364 = vmatpush2.msra.mxu0 0.0
  %365 = vmatprep.subr.mxu0 0.0
  %366 = vmatpush2.msra.mxu0 0.0
  %367 = vmatprep.subr.mxu0 0.0
  %368 = vmatpush2.msra.mxu0 0.0
  %369 = vmatprep.subr.mxu0 0.0
  %370 = vmatpush2.msra.mxu0 0.0
  %371 = vmatprep.subr.mxu0 0.0
  %372 = vmatpush2.msra.mxu0 0.0
  %373 = vmatprep.subr.mxu0 0.0
  %374 = vmatpush2.msra.mxu0 0.0
  %375 = vmatprep.subr.mxu0 0.0
  %376 = vmatpush2.msra.mxu0 0.0
  %377 = vmatprep.subr.mxu0 0.0
  %378 = vmatpush2.msra.mxu0 0.0
  %379 = vmatprep.subr.mxu0 0.0
  %380 = vmatpush2.msra.mxu0 %v151
  %381 = vmatprep.subr.mxu0 0.0
  %382 = vmatpush2.msra.mxu0 %v150
  %383 = vmatprep.subr.mxu0 0.0
  %384 = vmatpush2.msra.mxu0 %v149
  %385 = vmatprep.subr.mxu0 0.0
  %386 = vmatpush2.msra.mxu0 %v148
  %387 = vmatprep.subr.mxu0 0.0
  %388 = vmatpush2.msra.mxu0 %v147
  %389 = vmatprep.subr.mxu0 0.0
  %390 = vmatpush2.msra.mxu0 %v146
  %391 = vmatprep.subr.mxu0 0.0
  %392 = vmatpush2.msra.mxu0 %v145
  %393 = vmatprep.subr.mxu0 0.0
  %394 = vmatpush2.msra.mxu0 %v144
  %395 = vmatprep.mubr.f32.mxu0 %v161
  %396 = vmatmul.mubr.f32.gmra.mxu0 %v14
  %v397 = vpop.f32.mrf.mxu0
  %v398 = vadd.f32 %v157, %v397
  %v399 = vpop.f32.mrf.mxu0
  %400 = vmatprep.mubr.f32.mxu0 %v164
  %401 = vmatmul.mubr.f32.gmra.mxu0 %v16
  %v402 = vpop.f32.mrf.mxu0
  %v403 = vadd.f32 %v157, %v402
  %v404 = vpop.f32.mrf.mxu0
  %405 = vmatprep.mubr.f32.mxu0 %v167
  %406 = vmatmul.mubr.f32.gmra.mxu0 %v18
  %v407 = vpop.f32.mrf.mxu0
  %v408 = vadd.f32 %v157, %v407
  %v409 = vpop.f32.mrf.mxu0
  %410 = vmatprep.mubr.f32.mxu0 %v170
  %411 = vmatmul.mubr.f32.gmra.mxu0 %v20
  %v412 = vpop.f32.mrf.mxu0
  %v413 = vadd.f32 %v157, %v412
  %v414 = vpop.f32.mrf.mxu0
  %415 = vmatprep.mubr.f32.mxu0 %v173
  %416 = vmatmul.mubr.f32.gmra.mxu0 %v22
  %v417 = vpop.f32.mrf.mxu0
  %v418 = vadd.f32 %v157, %v417
  %v419 = vpop.f32.mrf.mxu0
  %420 = vmatprep.mubr.f32.mxu0 %v176
  %421 = vmatmul.mubr.f32.gmra.mxu0 %v24
  %v422 = vpop.f32.mrf.mxu0
  %v423 = vadd.f32 %v157, %v422
  %v424 = vpop.f32.mrf.mxu0
  %425 = vmatprep.mubr.f32.mxu0 %v179
  %426 = vmatmul.mubr.f32.gmra.mxu0 %v26
  %v427 = vpop.f32.mrf.mxu0
  %v428 = vadd.f32 %v157, %v427
  %v429 = vpop.f32.mrf.mxu0
  %430 = vmatprep.mubr.f32.mxu0 %v182
  %431 = vmatmul.mubr.f32.gmra.mxu0 %v28
  %v432 = vpop.f32.mrf.mxu0
  %v433 = vadd.f32 %v157, %v432
  %v434 = vpop.f32.mrf.mxu0
  %435 = vmatprep.mubr.f32.mxu0 %v185
  %436 = vmatmul.mubr.f32.gmra.mxu0 %v30
  %v437 = vpop.f32.mrf.mxu0
  %v438 = vadd.f32 %v157, %v437
  %v439 = vpop.f32.mrf.mxu0
  %440 = vmatprep.mubr.f32.mxu0 %v188
  %441 = vmatmul.mubr.f32.gmra.mxu0 %v32
  %v442 = vpop.f32.mrf.mxu0
  %v443 = vadd.f32 %v157, %v442
  %v444 = vpop.f32.mrf.mxu0
  %445 = vmatprep.mubr.f32.mxu0 %v191
  %446 = vmatmul.mubr.f32.gmra.mxu0 %v34
  %v447 = vpop.f32.mrf.mxu0
  %v448 = vadd.f32 %v157, %v447
  %v449 = vpop.f32.mrf.mxu0
  %450 = vmatprep.mubr.f32.mxu0 %v194
  %451 = vmatmul.mubr.f32.gmra.mxu0 %v36
  %v452 = vpop.f32.mrf.mxu0
  %v453 = vadd.f32 %v157, %v452
  %v454 = vpop.f32.mrf.mxu0
  %455 = vmatprep.mubr.f32.mxu0 %v197
  %456 = vmatmul.mubr.f32.gmra.mxu0 %v38
  %v457 = vpop.f32.mrf.mxu0
  %v458 = vadd.f32 %v157, %v457
  %v459 = vpop.f32.mrf.mxu0
  %460 = vmatprep.mubr.f32.mxu0 %v200
  %461 = vmatmul.mubr.f32.gmra.mxu0 %v40
  %v462 = vpop.f32.mrf.mxu0
  %v463 = vadd.f32 %v157, %v462
  %v464 = vpop.f32.mrf.mxu0
  %465 = vmatprep.mubr.f32.mxu0 %v203
  %466 = vmatmul.mubr.f32.gmra.mxu0 %v42
  %v467 = vpop.f32.mrf.mxu0
  %v468 = vadd.f32 %v157, %v467
  %v469 = vpop.f32.mrf.mxu0
  %470 = vmatprep.mubr.f32.mxu0 %v206
  %471 = vmatmul.mubr.f32.gmra.mxu0 %v44
  %v472 = vpop.f32.mrf.mxu0
  %v473 = vadd.f32 %v157, %v472
  %v474 = vpop.f32.mrf.mxu0
  %475 = vmatprep.mubr.f32.mxu0 %v209
  %476 = vmatmul.mubr.f32.gmra.mxu0 %v46
  %v477 = vpop.f32.mrf.mxu0
  %v478 = vadd.f32 %v157, %v477
  %v479 = vpop.f32.mrf.mxu0
  %480 = vmatprep.mubr.f32.mxu0 %v212
  %481 = vmatmul.mubr.f32.gmra.mxu0 %v48
  %v482 = vpop.f32.mrf.mxu0
  %v483 = vadd.f32 %v157, %v482
  %v484 = vpop.f32.mrf.mxu0
  %485 = vmatprep.mubr.f32.mxu0 %v215
  %486 = vmatmul.mubr.f32.gmra.mxu0 %v50
  %v487 = vpop.f32.mrf.mxu0
  %v488 = vadd.f32 %v157, %v487
  %v489 = vpop.f32.mrf.mxu0
  %490 = vmatprep.mubr.f32.mxu0 %v218
  %491 = vmatmul.mubr.f32.gmra.mxu0 %v52
  %v492 = vpop.f32.mrf.mxu0
  %v493 = vadd.f32 %v157, %v492
  %v494 = vpop.f32.mrf.mxu0
  %495 = vmatprep.mubr.f32.mxu0 %v221
  %496 = vmatmul.mubr.f32.gmra.mxu0 %v54
  %v497 = vpop.f32.mrf.mxu0
  %v498 = vadd.f32 %v157, %v497
  %v499 = vpop.f32.mrf.mxu0
  %500 = vmatprep.mubr.f32.mxu0 %v224
  %501 = vmatmul.mubr.f32.gmra.mxu0 %v56
  %v502 = vpop.f32.mrf.mxu0
  %v503 = vadd.f32 %v157, %v502
  %v504 = vpop.f32.mrf.mxu0
  %505 = vmatprep.mubr.f32.mxu0 %v227
  %506 = vmatmul.mubr.f32.gmra.mxu0 %v58
  %v507 = vpop.f32.mrf.mxu0
  %v508 = vadd.f32 %v157, %v507
  %v509 = vpop.f32.mrf.mxu0
  %510 = vmatprep.mubr.f32.mxu0 %v230
  %511 = vmatmul.mubr.f32.gmra.mxu0 %v60
  %v512 = vpop.f32.mrf.mxu0
  %v513 = vadd.f32 %v157, %v512
  %v514 = vpop.f32.mrf.mxu0
  %515 = vmatprep.mubr.f32.mxu0 %v233
  %516 = vmatmul.mubr.f32.gmra.mxu0 %v62
  %v517 = vpop.f32.mrf.mxu0
  %v518 = vadd.f32 %v157, %v517
  %v519 = vpop.f32.mrf.mxu0
  %520 = vmatprep.mubr.f32.mxu0 %v236
  %521 = vmatmul.mubr.f32.gmra.mxu0 %v64
  %v522 = vpop.f32.mrf.mxu0
  %v523 = vadd.f32 %v157, %v522
  %v524 = vpop.f32.mrf.mxu0
  %525 = vmatprep.mubr.f32.mxu0 %v239
  %526 = vmatmul.mubr.f32.gmra.mxu0 %v66
  %v527 = vpop.f32.mrf.mxu0
  %v528 = vadd.f32 %v157, %v527
  %v529 = vpop.f32.mrf.mxu0
  %530 = vmatprep.mubr.f32.mxu0 %v242
  %531 = vmatmul.mubr.f32.gmra.mxu0 %v68
  %v532 = vpop.f32.mrf.mxu0
  %v533 = vadd.f32 %v157, %v532
  %v534 = vpop.f32.mrf.mxu0
  %535 = vmatprep.mubr.f32.mxu0 %v245
  %536 = vmatmul.mubr.f32.gmra.mxu0 %v70
  %v537 = vpop.f32.mrf.mxu0
  %v538 = vadd.f32 %v157, %v537
  %v539 = vpop.f32.mrf.mxu0
  %540 = vmatprep.mubr.f32.mxu0 %v248
  %541 = vmatmul.mubr.f32.gmra.mxu0 %v72
  %v542 = vpop.f32.mrf.mxu0
  %v543 = vadd.f32 %v157, %v542
  %v544 = vpop.f32.mrf.mxu0
  %545 = vmatprep.mubr.f32.mxu0 %v251
  %546 = vmatmul.mubr.f32.gmra.mxu0 %v74
  %v547 = vpop.f32.mrf.mxu0
  %v548 = vadd.f32 %v157, %v547
  %v549 = vpop.f32.mrf.mxu0
  %550 = vmatprep.mubr.f32.mxu0 %v254
  %551 = vmatmul.mubr.f32.gmra.mxu0 %v76
  %v552 = vpop.f32.mrf.mxu0
  %v553 = vadd.f32 %v157, %v552
  %v554 = vpop.f32.mrf.mxu0
  %555 = vmatprep.mubr.f32.mxu0 %v257
  %556 = vmatmul.mubr.f32.gmra.mxu0 %v78
  %v557 = vpop.f32.mrf.mxu0
  %v558 = vadd.f32 %v157, %v557
  %v559 = vpop.f32.mrf.mxu0
  %560 = vmatprep.mubr.f32.mxu0 %v260
  %561 = vmatmul.mubr.f32.gmra.mxu0 %v80
  %v562 = vpop.f32.mrf.mxu0
  %v563 = vadd.f32 %v157, %v562
  %v564 = vpop.f32.mrf.mxu0
  %565 = vmatprep.mubr.f32.mxu0 %v263
  %566 = vmatmul.mubr.f32.gmra.mxu0 %v82
  %v567 = vpop.f32.mrf.mxu0
  %v568 = vadd.f32 %v157, %v567
  %v569 = vpop.f32.mrf.mxu0
  %570 = vmatprep.mubr.f32.mxu0 %v266
  %571 = vmatmul.mubr.f32.gmra.mxu0 %v84
  %v572 = vpop.f32.mrf.mxu0
  %v573 = vadd.f32 %v157, %v572
  %v574 = vpop.f32.mrf.mxu0
  %575 = vmatprep.mubr.f32.mxu0 %v269
  %576 = vmatmul.mubr.f32.gmra.mxu0 %v86
  %v577 = vpop.f32.mrf.mxu0
  %v578 = vadd.f32 %v157, %v577
  %v579 = vpop.f32.mrf.mxu0
  %580 = vmatprep.mubr.f32.mxu0 %v272
  %581 = vmatmul.mubr.f32.gmra.mxu0 %v88
  %v582 = vpop.f32.mrf.mxu0
  %v583 = vadd.f32 %v157, %v582
  %v584 = vpop.f32.mrf.mxu0
  %585 = vmatprep.mubr.f32.mxu0 %v275
  %586 = vmatmul.mubr.f32.gmra.mxu0 %v90
  %v587 = vpop.f32.mrf.mxu0
  %v588 = vadd.f32 %v157, %v587
  %v589 = vpop.f32.mrf.mxu0
  %590 = vmatprep.mubr.f32.mxu0 %v278
  %591 = vmatmul.mubr.f32.gmra.mxu0 %v92
  %v592 = vpop.f32.mrf.mxu0
  %v593 = vadd.f32 %v157, %v592
  %v594 = vpop.f32.mrf.mxu0
  %595 = vmatprep.mubr.f32.mxu0 %v281
  %596 = vmatmul.mubr.f32.gmra.mxu0 %v94
  %v597 = vpop.f32.mrf.mxu0
  %v598 = vadd.f32 %v157, %v597
  %v599 = vpop.f32.mrf.mxu0
  %600 = vmatprep.mubr.f32.mxu0 %v284
  %601 = vmatmul.mubr.f32.gmra.mxu0 %v96
  %v602 = vpop.f32.mrf.mxu0
  %v603 = vadd.f32 %v157, %v602
  %v604 = vpop.f32.mrf.mxu0
  %605 = vmatprep.mubr.f32.mxu0 %v287
  %606 = vmatmul.mubr.f32.gmra.mxu0 %v98
  %v607 = vpop.f32.mrf.mxu0
  %v608 = vadd.f32 %v157, %v607
  %v609 = vpop.f32.mrf.mxu0
  %610 = vmatprep.mubr.f32.mxu0 %v290
  %611 = vmatmul.mubr.f32.gmra.mxu0 %v100
  %v612 = vpop.f32.mrf.mxu0
  %v613 = vadd.f32 %v157, %v612
  %v614 = vpop.f32.mrf.mxu0
  %615 = vmatprep.mubr.f32.mxu0 %v293
  %616 = vmatmul.mubr.f32.gmra.mxu0 %v102
  %v617 = vpop.f32.mrf.mxu0
  %v618 = vadd.f32 %v157, %v617
  %v619 = vpop.f32.mrf.mxu0
  %620 = vmatprep.mubr.f32.mxu0 %v296
  %621 = vmatmul.mubr.f32.gmra.mxu0 %v104
  %v622 = vpop.f32.mrf.mxu0
  %v623 = vadd.f32 %v157, %v622
  %v624 = vpop.f32.mrf.mxu0
  %625 = vmatprep.mubr.f32.mxu0 %v299
  %626 = vmatmul.mubr.f32.gmra.mxu0 %v106
  %v627 = vpop.f32.mrf.mxu0
  %v628 = vadd.f32 %v157, %v627
  %v629 = vpop.f32.mrf.mxu0
  %630 = vmatprep.mubr.f32.mxu0 %v302
  %631 = vmatmul.mubr.f32.gmra.mxu0 %v108
  %v632 = vpop.f32.mrf.mxu0
  %v633 = vadd.f32 %v157, %v632
  %v634 = vpop.f32.mrf.mxu0
  %635 = vmatprep.mubr.f32.mxu0 %v305
  %636 = vmatmul.mubr.f32.gmra.mxu0 %v110
  %v637 = vpop.f32.mrf.mxu0
  %v638 = vadd.f32 %v157, %v637
  %v639 = vpop.f32.mrf.mxu0
  %640 = vmatprep.mubr.f32.mxu0 %v308
  %641 = vmatmul.mubr.f32.gmra.mxu0 %v112
  %v642 = vpop.f32.mrf.mxu0
  %v643 = vadd.f32 %v157, %v642
  %v644 = vpop.f32.mrf.mxu0
  %645 = vmatprep.mubr.f32.mxu0 %v311
  %646 = vmatmul.mubr.f32.gmra.mxu0 %v114
  %v647 = vpop.f32.mrf.mxu0
  %v648 = vadd.f32 %v157, %v647
  %v649 = vpop.f32.mrf.mxu0
  %650 = vmatprep.mubr.f32.mxu0 %v314
  %651 = vmatmul.mubr.f32.gmra.mxu0 %v116
  %v652 = vpop.f32.mrf.mxu0
  %v653 = vadd.f32 %v157, %v652
  %v654 = vpop.f32.mrf.mxu0
  %655 = vmatprep.mubr.f32.mxu0 %v317
  %656 = vmatmul.mubr.f32.gmra.mxu0 %v118
  %v657 = vpop.f32.mrf.mxu0
  %v658 = vadd.f32 %v157, %v657
  %v659 = vpop.f32.mrf.mxu0
  %660 = vmatprep.mubr.f32.mxu0 %v320
  %661 = vmatmul.mubr.f32.gmra.mxu0 %v120
  %v662 = vpop.f32.mrf.mxu0
  %v663 = vadd.f32 %v157, %v662
  %v664 = vpop.f32.mrf.mxu0
  %665 = vmatprep.mubr.f32.mxu0 %v323
  %666 = vmatmul.mubr.f32.gmra.mxu0 %v122
  %v667 = vpop.f32.mrf.mxu0
  %v668 = vadd.f32 %v157, %v667
  %v669 = vpop.f32.mrf.mxu0
  %670 = vmatprep.mubr.f32.mxu0 %v326
  %671 = vmatmul.mubr.f32.gmra.mxu0 %v124
  %v672 = vpop.f32.mrf.mxu0
  %v673 = vadd.f32 %v157, %v672
  %v674 = vpop.f32.mrf.mxu0
  %675 = vmatprep.mubr.f32.mxu0 %v329
  %676 = vmatmul.mubr.f32.gmra.mxu0 %v126
  %v677 = vpop.f32.mrf.mxu0
  %v678 = vadd.f32 %v157, %v677
  %v679 = vpop.f32.mrf.mxu0
  %680 = vdwg.mxu0
  %v681 = vmax.f32 %v398, 0.0
  %v682 = vmax.f32 %v403, 0.0
  %v683 = vmax.f32 %v408, 0.0
  %v684 = vmax.f32 %v413, 0.0
  %v685 = vmax.f32 %v418, 0.0
  %v686 = vmax.f32 %v423, 0.0
  %v687 = vmax.f32 %v428, 0.0
  %v688 = vmax.f32 %v433, 0.0
  %v689 = vmax.f32 %v438, 0.0
  %v690 = vmax.f32 %v443, 0.0
  %v691 = vmax.f32 %v448, 0.0
  %v692 = vmax.f32 %v453, 0.0
  %v693 = vmax.f32 %v458, 0.0
  %v694 = vmax.f32 %v463, 0.0
  %v695 = vmax.f32 %v468, 0.0
  %v696 = vmax.f32 %v473, 0.0
  %v697 = vmax.f32 %v478, 0.0
  %v698 = vmax.f32 %v483, 0.0
  %v699 = vmax.f32 %v488, 0.0
  %v700 = vmax.f32 %v493, 0.0
  %v701 = vmax.f32 %v498, 0.0
  %v702 = vmax.f32 %v503, 0.0
  %v703 = vmax.f32 %v508, 0.0
  %v704 = vmax.f32 %v513, 0.0
  %v705 = vmax.f32 %v518, 0.0
  %v706 = vmax.f32 %v523, 0.0
  %v707 = vmax.f32 %v528, 0.0
  %v708 = vmax.f32 %v533, 0.0
  %v709 = vmax.f32 %v538, 0.0
  %v710 = vmax.f32 %v543, 0.0
  %v711 = vmax.f32 %v548, 0.0
  %v712 = vmax.f32 %v553, 0.0
  %v713 = vmax.f32 %v558, 0.0
  %v714 = vmax.f32 %v563, 0.0
  %v715 = vmax.f32 %v568, 0.0
  %v716 = vmax.f32 %v573, 0.0
  %v717 = vmax.f32 %v578, 0.0
  %v718 = vmax.f32 %v583, 0.0
  %v719 = vmax.f32 %v588, 0.0
  %v720 = vmax.f32 %v593, 0.0
  %v721 = vmax.f32 %v598, 0.0
  %v722 = vmax.f32 %v603, 0.0
  %v723 = vmax.f32 %v608, 0.0
  %v724 = vmax.f32 %v613, 0.0
  %v725 = vmax.f32 %v618, 0.0
  %v726 = vmax.f32 %v623, 0.0
  %v727 = vmax.f32 %v628, 0.0
  %v728 = vmax.f32 %v633, 0.0
  %v729 = vmax.f32 %v638, 0.0
  %v730 = vmax.f32 %v643, 0.0
  %v731 = vmax.f32 %v648, 0.0
  %v732 = vmax.f32 %v653, 0.0
  %v733 = vmax.f32 %v658, 0.0
  %v734 = vmax.f32 %v663, 0.0
  %v735 = vmax.f32 %v668, 0.0
  %v736 = vmax.f32 %v673, 0.0
  %v737 = vmax.f32 %v678, 0.0
  %vm738 = vcmask 261120
  %739 = vst.msk [vmem:[%s3] sm:$0xff] %vm738, %v681
  %740 = vst.msk [vmem:[%s3 + $0x8] sm:$0xff] %vm738, %v682
  %741 = vst.msk [vmem:[%s3 + $0x10] sm:$0xff] %vm738, %v683
  %742 = vst.msk [vmem:[%s3 + $0x18] sm:$0xff] %vm738, %v684
  %743 = vst.msk [vmem:[%s3 + $0x20] sm:$0xff] %vm738, %v685
  %744 = vst.msk [vmem:[%s3 + $0x28] sm:$0xff] %vm738, %v686
  %745 = vst.msk [vmem:[%s3 + $0x30] sm:$0xff] %vm738, %v687
  %746 = vst.msk [vmem:[%s3 + $0x38] sm:$0xff] %vm738, %v688
  %747 = vst.msk [vmem:[%s3 + $0x40] sm:$0xff] %vm738, %v689
  %748 = vst.msk [vmem:[%s3 + $0x48] sm:$0xff] %vm738, %v690
  %749 = vst.msk [vmem:[%s3 + $0x50] sm:$0xff] %vm738, %v691
  %750 = vst.msk [vmem:[%s3 + $0x58] sm:$0xff] %vm738, %v692
  %751 = vst.msk [vmem:[%s3 + $0x60] sm:$0xff] %vm738, %v693
  %752 = vst.msk [vmem:[%s3 + $0x68] sm:$0xff] %vm738, %v694
  %753 = vst.msk [vmem:[%s3 + $0x70] sm:$0xff] %vm738, %v695
  %754 = vst.msk [vmem:[%s3 + $0x78] sm:$0xff] %vm738, %v696
  %755 = vst.msk [vmem:[%s3 + $0x80] sm:$0xff] %vm738, %v697
  %756 = vst.msk [vmem:[%s3 + $0x88] sm:$0xff] %vm738, %v698
  %757 = vst.msk [vmem:[%s3 + $0x90] sm:$0xff] %vm738, %v699
  %758 = vst.msk [vmem:[%s3 + $0x98] sm:$0xff] %vm738, %v700
  %759 = vst.msk [vmem:[%s3 + $0xa0] sm:$0xff] %vm738, %v701
  %760 = vst.msk [vmem:[%s3 + $0xa8] sm:$0xff] %vm738, %v702
  %761 = vst.msk [vmem:[%s3 + $0xb0] sm:$0xff] %vm738, %v703
  %762 = vst.msk [vmem:[%s3 + $0xb8] sm:$0xff] %vm738, %v704
  %763 = vst.msk [vmem:[%s3 + $0xc0] sm:$0xff] %vm738, %v705
  %764 = vst.msk [vmem:[%s3 + $0xc8] sm:$0xff] %vm738, %v706
  %765 = vst.msk [vmem:[%s3 + $0xd0] sm:$0xff] %vm738, %v707
  %766 = vst.msk [vmem:[%s3 + $0xd8] sm:$0xff] %vm738, %v708
  %767 = vst.msk [vmem:[%s3 + $0xe0] sm:$0xff] %vm738, %v709
  %768 = vst.msk [vmem:[%s3 + $0xe8] sm:$0xff] %vm738, %v710
  %769 = vst.msk [vmem:[%s3 + $0xf0] sm:$0xff] %vm738, %v711
  %770 = vst.msk [vmem:[%s3 + $0xf8] sm:$0xff] %vm738, %v712
  %771 = vst.msk [vmem:[%s3 + $0x100] sm:$0xff] %vm738, %v713
  %772 = vst.msk [vmem:[%s3 + $0x108] sm:$0xff] %vm738, %v714
  %773 = vst.msk [vmem:[%s3 + $0x110] sm:$0xff] %vm738, %v715
  %774 = vst.msk [vmem:[%s3 + $0x118] sm:$0xff] %vm738, %v716
  %775 = vst.msk [vmem:[%s3 + $0x120] sm:$0xff] %vm738, %v717
  %776 = vst.msk [vmem:[%s3 + $0x128] sm:$0xff] %vm738, %v718
  %777 = vst.msk [vmem:[%s3 + $0x130] sm:$0xff] %vm738, %v719
  %778 = vst.msk [vmem:[%s3 + $0x138] sm:$0xff] %vm738, %v720
  %779 = vst.msk [vmem:[%s3 + $0x140] sm:$0xff] %vm738, %v721
  %780 = vst.msk [vmem:[%s3 + $0x148] sm:$0xff] %vm738, %v722
  %781 = vst.msk [vmem:[%s3 + $0x150] sm:$0xff] %vm738, %v723
  %782 = vst.msk [vmem:[%s3 + $0x158] sm:$0xff] %vm738, %v724
  %783 = vst.msk [vmem:[%s3 + $0x160] sm:$0xff] %vm738, %v725
  %784 = vst.msk [vmem:[%s3 + $0x168] sm:$0xff] %vm738, %v726
  %785 = vst.msk [vmem:[%s3 + $0x170] sm:$0xff] %vm738, %v727
  %786 = vst.msk [vmem:[%s3 + $0x178] sm:$0xff] %vm738, %v728
  %787 = vst.msk [vmem:[%s3 + $0x180] sm:$0xff] %vm738, %v729
  %788 = vst.msk [vmem:[%s3 + $0x188] sm:$0xff] %vm738, %v730
  %789 = vst.msk [vmem:[%s3 + $0x190] sm:$0xff] %vm738, %v731
  %790 = vst.msk [vmem:[%s3 + $0x198] sm:$0xff] %vm738, %v732
  %791 = vst.msk [vmem:[%s3 + $0x1a0] sm:$0xff] %vm738, %v733
  %792 = vst.msk [vmem:[%s3 + $0x1a8] sm:$0xff] %vm738, %v734
  %793 = vst.msk [vmem:[%s3 + $0x1b0] sm:$0xff] %vm738, %v735
  %794 = vst.msk [vmem:[%s3 + $0x1b8] sm:$0xff] %vm738, %v736
  %vm795 = vcmask 254976
  %796 = vst.msk [vmem:[%s3 + $0x1c0] sm:$0x3] %vm795, %v737
  // Predicated region
  $region14: #{dqn_rgb_forward.4} parent=0 // pred_check
    _
  $region15: #{dqn_rgb_forward.4} parent=0 // pred_check_branch
    %798 = sbr.rel (0) target = $region17
  $region16: #{dqn_rgb_forward.4} parent=0 // pred_region
    _
  $region17: #{dqn_rgb_forward.4} parent=0 // pred_fallthru
    _
  // Predicated region
  $region18: #{dqn_rgb_forward.4} parent=0 // pred_check
    _
  $region19: #{dqn_rgb_forward.4} parent=0 // pred_check_branch
    %800 = sbr.rel (0) target = $region21
  $region20: #{dqn_rgb_forward.4} parent=0 // pred_region
    _
  $region21: #{dqn_rgb_forward.4} parent=0 // pred_fallthru
    _

// kernel: dqn_rgb_forward.5
$region0: #{dqn_rgb_forward.5}
  #allocation0 [shape = 'u32[]', space=smem, size = 0x4, offset = 0x4, fixed_abs, tag = 'smem constant byte address 0x4 - core index']
  #allocation1 [shape = 'u32[144,128]{1,0:T(1,128)}', space=vmem, size = 0x12000, scoped, tag = 'internal scratch']
  %s0 = inlined_call_operand.vmem [shape: f32[72,512], index: 0, kind: input, shape index: {}]
  %s1 = inlined_call_operand.vmem [shape: f32[512,64], index: 1, kind: input, shape index: {}]
  %s2 = inlined_call_operand.vmem [shape: f32[1,64], index: 2, kind: input, shape index: {}]
  %s3 = inlined_call_operand.vmem [shape: f32[72,64], index: 3, kind: output, shape index: {}]
  %s4 = sld [smem:[#allocation0]]
  $region22: #{dqn_rgb_forward.5} parent=0
    _
  %s6 = ssub.s32 1, %s4
  %s7 = scalar_select 0, %s6, %s4
  // Predicated region
  $region2: #{dqn_rgb_forward.5} parent=0 // pred_check
    _
  $region3: #{dqn_rgb_forward.5} parent=0 // pred_check_branch
    %9 = sbr.rel (0) target = $region5
  $region4: #{dqn_rgb_forward.5} parent=0 // pred_region
    _
  $region5: #{dqn_rgb_forward.5} parent=0 // pred_fallthru
    _
  // Predicated region
  $region6: #{dqn_rgb_forward.5} parent=0 // pred_check
    _
  $region7: #{dqn_rgb_forward.5} parent=0 // pred_check_branch
    %11 = sbr.rel (0) target = $region9
  $region8: #{dqn_rgb_forward.5} parent=0 // pred_region
    _
  $region9: #{dqn_rgb_forward.5} parent=0 // pred_fallthru
    _
  // Predicated region
  $region10: #{dqn_rgb_forward.5} parent=0 // pred_check
    _
  $region11: #{dqn_rgb_forward.5} parent=0 // pred_check_branch
    %13 = sbr.rel (0) target = $region13
  $region12: #{dqn_rgb_forward.5} parent=0 // pred_region
    _
  $region13: #{dqn_rgb_forward.5} parent=0 // pred_fallthru
    _
  %v14 = vld [vmem:[%s0] sm:$0xff]
  %v15 = vld [vmem:[%s0 + $0x8] sm:$0xff]
  %v16 = vld [vmem:[%s0 + $0x10] sm:$0xff]
  %v17 = vld [vmem:[%s0 + $0x18] sm:$0xff]
  %v18 = vld [vmem:[%s0 + $0x20] sm:$0xff]
  %v19 = vld [vmem:[%s0 + $0x28] sm:$0xff]
  %v20 = vld [vmem:[%s0 + $0x30] sm:$0xff]
  %v21 = vld [vmem:[%s0 + $0x38] sm:$0xff]
  %v22 = vld [vmem:[%s0 + $0x40] sm:$0xff]
  %v23 = vld [vmem:[%s0 + $0x48] sm:$0xff]
  %v24 = vld [vmem:[%s0 + $0x50] sm:$0xff]
  %v25 = vld [vmem:[%s0 + $0x58] sm:$0xff]
  %v26 = vld [vmem:[%s0 + $0x60] sm:$0xff]
  %v27 = vld [vmem:[%s0 + $0x68] sm:$0xff]
  %v28 = vld [vmem:[%s0 + $0x70] sm:$0xff]
  %v29 = vld [vmem:[%s0 + $0x78] sm:$0xff]
  %v30 = vld [vmem:[%s0 + $0x80] sm:$0xff]
  %v31 = vld [vmem:[%s0 + $0x88] sm:$0xff]
  %v32 = vld [vmem:[%s0 + $0x90] sm:$0xff]
  %v33 = vld [vmem:[%s0 + $0x98] sm:$0xff]
  %v34 = vld [vmem:[%s0 + $0xa0] sm:$0xff]
  %v35 = vld [vmem:[%s0 + $0xa8] sm:$0xff]
  %v36 = vld [vmem:[%s0 + $0xb0] sm:$0xff]
  %v37 = vld [vmem:[%s0 + $0xb8] sm:$0xff]
  %v38 = vld [vmem:[%s0 + $0xc0] sm:$0xff]
  %v39 = vld [vmem:[%s0 + $0xc8] sm:$0xff]
  %v40 = vld [vmem:[%s0 + $0xd0] sm:$0xff]
  %v41 = vld [vmem:[%s0 + $0xd8] sm:$0xff]
  %v42 = vld [vmem:[%s0 + $0xe0] sm:$0xff]
  %v43 = vld [vmem:[%s0 + $0xe8] sm:$0xff]
  %v44 = vld [vmem:[%s0 + $0xf0] sm:$0xff]
  %v45 = vld [vmem:[%s0 + $0xf8] sm:$0xff]
  %v46 = vld [vmem:[%s0 + $0x100] sm:$0xff]
  %v47 = vld [vmem:[%s0 + $0x108] sm:$0xff]
  %v48 = vld [vmem:[%s0 + $0x110] sm:$0xff]
  %v49 = vld [vmem:[%s0 + $0x118] sm:$0xff]
  %v50 = vld [vmem:[%s1] sm:$0xff]
  %v51 = vld [vmem:[%s1 + $0x8] sm:$0xff]
  %v52 = vld [vmem:[%s1 + $0x10] sm:$0xff]
  %v53 = vld [vmem:[%s1 + $0x18] sm:$0xff]
  %v54 = vld [vmem:[%s1 + $0x20] sm:$0xff]
  %v55 = vld [vmem:[%s1 + $0x28] sm:$0xff]
  %v56 = vld [vmem:[%s1 + $0x30] sm:$0xff]
  %v57 = vld [vmem:[%s1 + $0x38] sm:$0xff]
  %v58 = vld [vmem:[%s1 + $0x40] sm:$0xff]
  %v59 = vld [vmem:[%s1 + $0x48] sm:$0xff]
  %v60 = vld [vmem:[%s1 + $0x50] sm:$0xff]
  %v61 = vld [vmem:[%s1 + $0x58] sm:$0xff]
  %v62 = vld [vmem:[%s1 + $0x60] sm:$0xff]
  %v63 = vld [vmem:[%s1 + $0x68] sm:$0xff]
  %v64 = vld [vmem:[%s1 + $0x70] sm:$0xff]
  %v65 = vld [vmem:[%s1 + $0x78] sm:$0xff]
  %v66 = vld [vmem:[%s1 + $0x80] sm:$0xff]
  %v67 = vld [vmem:[%s1 + $0x88] sm:$0xff]
  %v68 = vld [vmem:[%s1 + $0x90] sm:$0xff]
  %v69 = vld [vmem:[%s1 + $0x98] sm:$0xff]
  %v70 = vld [vmem:[%s1 + $0xa0] sm:$0xff]
  %v71 = vld [vmem:[%s1 + $0xa8] sm:$0xff]
  %v72 = vld [vmem:[%s1 + $0xb0] sm:$0xff]
  %v73 = vld [vmem:[%s1 + $0xb8] sm:$0xff]
  %v74 = vld [vmem:[%s1 + $0xc0] sm:$0xff]
  %v75 = vld [vmem:[%s1 + $0xc8] sm:$0xff]
  %v76 = vld [vmem:[%s1 + $0xd0] sm:$0xff]
  %v77 = vld [vmem:[%s1 + $0xd8] sm:$0xff]
  %v78 = vld [vmem:[%s1 + $0xe0] sm:$0xff]
  %v79 = vld [vmem:[%s1 + $0xe8] sm:$0xff]
  %v80 = vld [vmem:[%s1 + $0xf0] sm:$0xff]
  %v81 = vld [vmem:[%s1 + $0xf8] sm:$0xff]
  %v82 = vld [vmem:[%s1 + $0x100] sm:$0xff]
  %v83 = vld [vmem:[%s1 + $0x108] sm:$0xff]
  %v84 = vld [vmem:[%s1 + $0x110] sm:$0xff]
  %v85 = vld [vmem:[%s1 + $0x118] sm:$0xff]
  %v86 = vld [vmem:[%s1 + $0x120] sm:$0xff]
  %v87 = vld [vmem:[%s1 + $0x128] sm:$0xff]
  %v88 = vld [vmem:[%s1 + $0x130] sm:$0xff]
  %v89 = vld [vmem:[%s1 + $0x138] sm:$0xff]
  %v90 = vld [vmem:[%s1 + $0x140] sm:$0xff]
  %v91 = vld [vmem:[%s1 + $0x148] sm:$0xff]
  %v92 = vld [vmem:[%s1 + $0x150] sm:$0xff]
  %v93 = vld [vmem:[%s1 + $0x158] sm:$0xff]
  %v94 = vld [vmem:[%s1 + $0x160] sm:$0xff]
  %v95 = vld [vmem:[%s1 + $0x168] sm:$0xff]
  %v96 = vld [vmem:[%s1 + $0x170] sm:$0xff]
  %v97 = vld [vmem:[%s1 + $0x178] sm:$0xff]
  %v98 = vld [vmem:[%s1 + $0x180] sm:$0xff]
  %v99 = vld [vmem:[%s1 + $0x188] sm:$0xff]
  %v100 = vld [vmem:[%s1 + $0x190] sm:$0xff]
  %v101 = vld [vmem:[%s1 + $0x198] sm:$0xff]
  %v102 = vld [vmem:[%s1 + $0x1a0] sm:$0xff]
  %v103 = vld [vmem:[%s1 + $0x1a8] sm:$0xff]
  %v104 = vld [vmem:[%s1 + $0x1b0] sm:$0xff]
  %v105 = vld [vmem:[%s1 + $0x1b8] sm:$0xff]
  %v106 = vld [vmem:[%s1 + $0x1c0] sm:$0xff]
  %v107 = vld [vmem:[%s1 + $0x1c8] sm:$0xff]
  %v108 = vld [vmem:[%s1 + $0x1d0] sm:$0xff]
  %v109 = vld [vmem:[%s1 + $0x1d8] sm:$0xff]
  %v110 = vld [vmem:[%s1 + $0x1e0] sm:$0xff]
  %v111 = vld [vmem:[%s1 + $0x1e8] sm:$0xff]
  %v112 = vld [vmem:[%s1 + $0x1f0] sm:$0xff]
  %v113 = vld [vmem:[%s1 + $0x1f8] sm:$0xff]
  %v114 = vld [vmem:[%s2] sm:$0x1]
  %v116 = vlaneseq
  %v117 = vshrl.u32 %v116, 7
  %v118 = vsub.s32 0, %v117
  %v119 = vrot.slane %v114, %v118
  %121 = vmatprep.subr.mxu0 0.0
  %122 = vmatpush1.msra.mxu0 %v65
  %123 = vmatprep.subr.mxu0 0.0
  %124 = vmatpush1.msra.mxu0 %v64
  %125 = vmatprep.subr.mxu0 0.0
  %126 = vmatpush1.msra.mxu0 %v63
  %127 = vmatprep.subr.mxu0 0.0
  %128 = vmatpush1.msra.mxu0 %v62
  %129 = vmatprep.subr.mxu0 0.0
  %130 = vmatpush1.msra.mxu0 %v61
  %131 = vmatprep.subr.mxu0 0.0
  %132 = vmatpush1.msra.mxu0 %v60
  %133 = vmatprep.subr.mxu0 0.0
  %134 = vmatpush1.msra.mxu0 %v59
  %135 = vmatprep.subr.mxu0 0.0
  %136 = vmatpush1.msra.mxu0 %v58
  %137 = vmatprep.subr.mxu0 0.0
  %138 = vmatpush1.msra.mxu0 %v57
  %139 = vmatprep.subr.mxu0 0.0
  %140 = vmatpush1.msra.mxu0 %v56
  %141 = vmatprep.subr.mxu0 0.0
  %142 = vmatpush1.msra.mxu0 %v55
  %143 = vmatprep.subr.mxu0 0.0
  %144 = vmatpush1.msra.mxu0 %v54
  %145 = vmatprep.subr.mxu0 0.0
  %146 = vmatpush1.msra.mxu0 %v53
  %147 = vmatprep.subr.mxu0 0.0
  %148 = vmatpush1.msra.mxu0 %v52
  %149 = vmatprep.subr.mxu0 0.0
  %150 = vmatpush1.msra.mxu0 %v51
  %151 = vmatprep.subr.mxu0 0.0
  %152 = vmatpush1.msra.mxu0 %v50
  %153 = vmatprep.subr.mxu0 0.0
  %154 = vmatpush2.msra.mxu0 %v81
  %155 = vmatprep.subr.mxu0 0.0
  %156 = vmatpush2.msra.mxu0 %v80
  %157 = vmatprep.subr.mxu0 0.0
  %158 = vmatpush2.msra.mxu0 %v79
  %159 = vmatprep.subr.mxu0 0.0
  %160 = vmatpush2.msra.mxu0 %v78
  %161 = vmatprep.subr.mxu0 0.0
  %162 = vmatpush2.msra.mxu0 %v77
  %163 = vmatprep.subr.mxu0 0.0
  %164 = vmatpush2.msra.mxu0 %v76
  %165 = vmatprep.subr.mxu0 0.0
  %166 = vmatpush2.msra.mxu0 %v75
  %167 = vmatprep.subr.mxu0 0.0
  %168 = vmatpush2.msra.mxu0 %v74
  %169 = vmatprep.subr.mxu0 0.0
  %170 = vmatpush2.msra.mxu0 %v73
  %171 = vmatprep.subr.mxu0 0.0
  %172 = vmatpush2.msra.mxu0 %v72
  %173 = vmatprep.subr.mxu0 0.0
  %174 = vmatpush2.msra.mxu0 %v71
  %175 = vmatprep.subr.mxu0 0.0
  %176 = vmatpush2.msra.mxu0 %v70
  %177 = vmatprep.subr.mxu0 0.0
  %178 = vmatpush2.msra.mxu0 %v69
  %179 = vmatprep.subr.mxu0 0.0
  %180 = vmatpush2.msra.mxu0 %v68
  %181 = vmatprep.subr.mxu0 0.0
  %182 = vmatpush2.msra.mxu0 %v67
  %183 = vmatprep.subr.mxu0 0.0
  %184 = vmatpush2.msra.mxu0 %v66
  %185 = vmatprep.mubr.f32.mxu0 %v15
  %186 = vmatmul.mubr.f32.gmra.mxu0 %v14
  %v187 = vpop.f32.mrf.mxu0
  %v188 = vadd.f32 %v119, %v187
  %v189 = vpop.f32.mrf.mxu0
  %190 = vmatprep.mubr.f32.mxu0 %v19
  %191 = vmatmul.mubr.f32.gmra.mxu0 %v18
  %v192 = vpop.f32.mrf.mxu0
  %v193 = vadd.f32 %v119, %v192
  %v194 = vpop.f32.mrf.mxu0
  %195 = vmatprep.mubr.f32.mxu0 %v23
  %196 = vmatmul.mubr.f32.gmra.mxu0 %v22
  %v197 = vpop.f32.mrf.mxu0
  %v198 = vadd.f32 %v119, %v197
  %v199 = vpop.f32.mrf.mxu0
  %200 = vmatprep.mubr.f32.mxu0 %v27
  %201 = vmatmul.mubr.f32.gmra.mxu0 %v26
  %v202 = vpop.f32.mrf.mxu0
  %v203 = vadd.f32 %v119, %v202
  %v204 = vpop.f32.mrf.mxu0
  %205 = vmatprep.mubr.f32.mxu0 %v31
  %206 = vmatmul.mubr.f32.gmra.mxu0 %v30
  %v207 = vpop.f32.mrf.mxu0
  %v208 = vadd.f32 %v119, %v207
  %v209 = vpop.f32.mrf.mxu0
  %210 = vmatprep.mubr.f32.mxu0 %v35
  %211 = vmatmul.mubr.f32.gmra.mxu0 %v34
  %v212 = vpop.f32.mrf.mxu0
  %v213 = vadd.f32 %v119, %v212
  %v214 = vpop.f32.mrf.mxu0
  %215 = vmatprep.mubr.f32.mxu0 %v39
  %216 = vmatmul.mubr.f32.gmra.mxu0 %v38
  %v217 = vpop.f32.mrf.mxu0
  %v218 = vadd.f32 %v119, %v217
  %v219 = vpop.f32.mrf.mxu0
  %220 = vmatprep.mubr.f32.mxu0 %v43
  %221 = vmatmul.mubr.f32.gmra.mxu0 %v42
  %v222 = vpop.f32.mrf.mxu0
  %v223 = vadd.f32 %v119, %v222
  %v224 = vpop.f32.mrf.mxu0
  %225 = vmatprep.mubr.f32.mxu0 %v47
  %226 = vmatmul.mubr.f32.gmra.mxu0 %v46
  %v227 = vpop.f32.mrf.mxu0
  %v228 = vadd.f32 %v119, %v227
  %v229 = vpop.f32.mrf.mxu0
  %230 = vdwg.mxu0
  %231 = vmatprep.subr.mxu0 0.0
  %232 = vmatpush1.msra.mxu0 %v97
  %233 = vmatprep.subr.mxu0 0.0
  %234 = vmatpush1.msra.mxu0 %v96
  %235 = vmatprep.subr.mxu0 0.0
  %236 = vmatpush1.msra.mxu0 %v95
  %237 = vmatprep.subr.mxu0 0.0
  %238 = vmatpush1.msra.mxu0 %v94
  %239 = vmatprep.subr.mxu0 0.0
  %240 = vmatpush1.msra.mxu0 %v93
  %241 = vmatprep.subr.mxu0 0.0
  %242 = vmatpush1.msra.mxu0 %v92
  %243 = vmatprep.subr.mxu0 0.0
  %244 = vmatpush1.msra.mxu0 %v91
  %245 = vmatprep.subr.mxu0 0.0
  %246 = vmatpush1.msra.mxu0 %v90
  %247 = vmatprep.subr.mxu0 0.0
  %248 = vmatpush1.msra.mxu0 %v89
  %249 = vmatprep.subr.mxu0 0.0
  %250 = vmatpush1.msra.mxu0 %v88
  %251 = vmatprep.subr.mxu0 0.0
  %252 = vmatpush1.msra.mxu0 %v87
  %253 = vmatprep.subr.mxu0 0.0
  %254 = vmatpush1.msra.mxu0 %v86
  %255 = vmatprep.subr.mxu0 0.0
  %256 = vmatpush1.msra.mxu0 %v85
  %257 = vmatprep.subr.mxu0 0.0
  %258 = vmatpush1.msra.mxu0 %v84
  %259 = vmatprep.subr.mxu0 0.0
  %260 = vmatpush1.msra.mxu0 %v83
  %261 = vmatprep.subr.mxu0 0.0
  %262 = vmatpush1.msra.mxu0 %v82
  %263 = vmatprep.subr.mxu0 0.0
  %264 = vmatpush2.msra.mxu0 %v113
  %265 = vmatprep.subr.mxu0 0.0
  %266 = vmatpush2.msra.mxu0 %v112
  %267 = vmatprep.subr.mxu0 0.0
  %268 = vmatpush2.msra.mxu0 %v111
  %269 = vmatprep.subr.mxu0 0.0
  %270 = vmatpush2.msra.mxu0 %v110
  %271 = vmatprep.subr.mxu0 0.0
  %272 = vmatpush2.msra.mxu0 %v109
  %273 = vmatprep.subr.mxu0 0.0
  %274 = vmatpush2.msra.mxu0 %v108
  %275 = vmatprep.subr.mxu0 0.0
  %276 = vmatpush2.msra.mxu0 %v107
  %277 = vmatprep.subr.mxu0 0.0
  %278 = vmatpush2.msra.mxu0 %v106
  %279 = vmatprep.subr.mxu0 0.0
  %280 = vmatpush2.msra.mxu0 %v105
  %281 = vmatprep.subr.mxu0 0.0
  %282 = vmatpush2.msra.mxu0 %v104
  %283 = vmatprep.subr.mxu0 0.0
  %284 = vmatpush2.msra.mxu0 %v103
  %285 = vmatprep.subr.mxu0 0.0
  %286 = vmatpush2.msra.mxu0 %v102
  %287 = vmatprep.subr.mxu0 0.0
  %288 = vmatpush2.msra.mxu0 %v101
  %289 = vmatprep.subr.mxu0 0.0
  %290 = vmatpush2.msra.mxu0 %v100
  %291 = vmatprep.subr.mxu0 0.0
  %292 = vmatpush2.msra.mxu0 %v99
  %293 = vmatprep.subr.mxu0 0.0
  %294 = vmatpush2.msra.mxu0 %v98
  %295 = vmatprep.mubr.f32.mxu0 %v17
  %296 = vmatmul.mubr.f32.gmra.mxu0 %v16
  %v297 = vpop.f32.mrf.mxu0
  %v298 = vadd.f32 %v188, %v297
  %v299 = vpop.f32.mrf.mxu0
  %300 = vmatprep.mubr.f32.mxu0 %v21
  %301 = vmatmul.mubr.f32.gmra.mxu0 %v20
  %v302 = vpop.f32.mrf.mxu0
  %v303 = vadd.f32 %v193, %v302
  %v304 = vpop.f32.mrf.mxu0
  %305 = vmatprep.mubr.f32.mxu0 %v25
  %306 = vmatmul.mubr.f32.gmra.mxu0 %v24
  %v307 = vpop.f32.mrf.mxu0
  %v308 = vadd.f32 %v198, %v307
  %v309 = vpop.f32.mrf.mxu0
  %310 = vmatprep.mubr.f32.mxu0 %v29
  %311 = vmatmul.mubr.f32.gmra.mxu0 %v28
  %v312 = vpop.f32.mrf.mxu0
  %v313 = vadd.f32 %v203, %v312
  %v314 = vpop.f32.mrf.mxu0
  %315 = vmatprep.mubr.f32.mxu0 %v33
  %316 = vmatmul.mubr.f32.gmra.mxu0 %v32
  %v317 = vpop.f32.mrf.mxu0
  %v318 = vadd.f32 %v208, %v317
  %v319 = vpop.f32.mrf.mxu0
  %320 = vmatprep.mubr.f32.mxu0 %v37
  %321 = vmatmul.mubr.f32.gmra.mxu0 %v36
  %v322 = vpop.f32.mrf.mxu0
  %v323 = vadd.f32 %v213, %v322
  %v324 = vpop.f32.mrf.mxu0
  %325 = vmatprep.mubr.f32.mxu0 %v41
  %326 = vmatmul.mubr.f32.gmra.mxu0 %v40
  %v327 = vpop.f32.mrf.mxu0
  %v328 = vadd.f32 %v218, %v327
  %v329 = vpop.f32.mrf.mxu0
  %330 = vmatprep.mubr.f32.mxu0 %v45
  %331 = vmatmul.mubr.f32.gmra.mxu0 %v44
  %v332 = vpop.f32.mrf.mxu0
  %v333 = vadd.f32 %v223, %v332
  %v334 = vpop.f32.mrf.mxu0
  %335 = vmatprep.mubr.f32.mxu0 %v49
  %336 = vmatmul.mubr.f32.gmra.mxu0 %v48
  %v337 = vpop.f32.mrf.mxu0
  %v338 = vadd.f32 %v228, %v337
  %v339 = vpop.f32.mrf.mxu0
  %340 = vdwg.mxu0
  %v341 = vmax.f32 %v298, 0.0
  %v342 = vmax.f32 %v303, 0.0
  %v343 = vmax.f32 %v308, 0.0
  %v344 = vmax.f32 %v313, 0.0
  %v345 = vmax.f32 %v318, 0.0
  %v346 = vmax.f32 %v323, 0.0
  %v347 = vmax.f32 %v328, 0.0
  %v348 = vmax.f32 %v333, 0.0
  %v349 = vmax.f32 %v338, 0.0
  %vm350 = vcmask 523264
  %351 = vst.msk [vmem:[%s3] sm:$0xff] %vm350, %v341
  %352 = vst.msk [vmem:[%s3 + $0x8] sm:$0xff] %vm350, %v342
  %353 = vst.msk [vmem:[%s3 + $0x10] sm:$0xff] %vm350, %v343
  %354 = vst.msk [vmem:[%s3 + $0x18] sm:$0xff] %vm350, %v344
  %355 = vst.msk [vmem:[%s3 + $0x20] sm:$0xff] %vm350, %v345
  %356 = vst.msk [vmem:[%s3 + $0x28] sm:$0xff] %vm350, %v346
  %357 = vst.msk [vmem:[%s3 + $0x30] sm:$0xff] %vm350, %v347
  %358 = vst.msk [vmem:[%s3 + $0x38] sm:$0xff] %vm350, %v348
  %359 = vst.msk [vmem:[%s3 + $0x40] sm:$0xff] %vm350, %v349
  // Predicated region
  $region14: #{dqn_rgb_forward.5} parent=0 // pred_check
    _
  $region15: #{dqn_rgb_forward.5} parent=0 // pred_check_branch
    %361 = sbr.rel (0) target = $region17
  $region16: #{dqn_rgb_forward.5} parent=0 // pred_region
    _
  $region17: #{dqn_rgb_forward.5} parent=0 // pred_fallthru
    _
  // Predicated region
  $region18: #{dqn_rgb_forward.5} parent=0 // pred_check
    _
  $region19: #{dqn_rgb_forward.5} parent=0 // pred_check_branch
    %363 = sbr.rel (0) target = $region21
  $region20: #{dqn_rgb_forward.5} parent=0 // pred_region
    _
  $region21: #{dqn_rgb_forward.5} parent=0 // pred_fallthru
    _

// kernel: dqn_rgb_forward.6
$region0: #{dqn_rgb_forward.6}
  #allocation0 [shape = 'u32[]', space=smem, size = 0x4, offset = 0x4, fixed_abs, tag = 'smem constant byte address 0x4 - core index']
  #allocation1 [shape = 'u32[144,128]{1,0:T(1,128)}', space=vmem, size = 0x12000, scoped, tag = 'internal scratch']
  %s0 = inlined_call_operand.vmem [shape: f32[32,576], index: 0, kind: input, shape index: {}]
  %s1 = inlined_call_operand.vmem [shape: f32[576,64], index: 1, kind: input, shape index: {}]
  %s2 = inlined_call_operand.vmem [shape: f32[1,64], index: 2, kind: input, shape index: {}]
  %s3 = inlined_call_operand.vmem [shape: f32[32,64], index: 3, kind: output, shape index: {}]
  %s4 = sld [smem:[#allocation0]]
  $region22: #{dqn_rgb_forward.6} parent=0
    _
  %s6 = ssub.s32 1, %s4
  %s7 = scalar_select 0, %s6, %s4
  // Predicated region
  $region2: #{dqn_rgb_forward.6} parent=0 // pred_check
    _
  $region3: #{dqn_rgb_forward.6} parent=0 // pred_check_branch
    %9 = sbr.rel (0) target = $region5
  $region4: #{dqn_rgb_forward.6} parent=0 // pred_region
    _
  $region5: #{dqn_rgb_forward.6} parent=0 // pred_fallthru
    _
  // Predicated region
  $region6: #{dqn_rgb_forward.6} parent=0 // pred_check
    _
  $region7: #{dqn_rgb_forward.6} parent=0 // pred_check_branch
    %11 = sbr.rel (0) target = $region9
  $region8: #{dqn_rgb_forward.6} parent=0 // pred_region
    _
  $region9: #{dqn_rgb_forward.6} parent=0 // pred_fallthru
    _
  // Predicated region
  $region10: #{dqn_rgb_forward.6} parent=0 // pred_check
    _
  $region11: #{dqn_rgb_forward.6} parent=0 // pred_check_branch
    %13 = sbr.rel (0) target = $region13
  $region12: #{dqn_rgb_forward.6} parent=0 // pred_region
    _
  $region13: #{dqn_rgb_forward.6} parent=0 // pred_fallthru
    _
  %v14 = vld [vmem:[%s0] sm:$0xff]
  %v15 = vld [vmem:[%s0 + $0x8] sm:$0xff]
  %v16 = vld [vmem:[%s0 + $0x10] sm:$0xff]
  %v17 = vld [vmem:[%s0 + $0x18] sm:$0xff]
  %v18 = vld [vmem:[%s0 + $0x20] sm:$0xff]
  %v19 = vld [vmem:[%s0 + $0x28] sm:$0xff]
  %v20 = vld [vmem:[%s0 + $0x30] sm:$0xff]
  %v21 = vld [vmem:[%s0 + $0x38] sm:$0xff]
  %v22 = vld [vmem:[%s0 + $0x40] sm:$0xff]
  %v23 = vld [vmem:[%s0 + $0x48] sm:$0xff]
  %v24 = vld [vmem:[%s0 + $0x50] sm:$0xff]
  %v25 = vld [vmem:[%s0 + $0x58] sm:$0xff]
  %v26 = vld [vmem:[%s0 + $0x60] sm:$0xff]
  %v27 = vld [vmem:[%s0 + $0x68] sm:$0xff]
  %v28 = vld [vmem:[%s0 + $0x70] sm:$0xff]
  %v29 = vld [vmem:[%s0 + $0x78] sm:$0xff]
  %v30 = vld [vmem:[%s0 + $0x80] sm:$0xff]
  %v31 = vld [vmem:[%s0 + $0x88] sm:$0xff]
  %v32 = vld [vmem:[%s0 + $0x90] sm:$0xff]
  %v33 = vld [vmem:[%s0 + $0x98] sm:$0xff]
  %v34 = vld [vmem:[%s1] sm:$0xff]
  %v35 = vld [vmem:[%s1 + $0x8] sm:$0xff]
  %v36 = vld [vmem:[%s1 + $0x10] sm:$0xff]
  %v37 = vld [vmem:[%s1 + $0x18] sm:$0xff]
  %v38 = vld [vmem:[%s1 + $0x20] sm:$0xff]
  %v39 = vld [vmem:[%s1 + $0x28] sm:$0xff]
  %v40 = vld [vmem:[%s1 + $0x30] sm:$0xff]
  %v41 = vld [vmem:[%s1 + $0x38] sm:$0xff]
  %v42 = vld [vmem:[%s1 + $0x40] sm:$0xff]
  %v43 = vld [vmem:[%s1 + $0x48] sm:$0xff]
  %v44 = vld [vmem:[%s1 + $0x50] sm:$0xff]
  %v45 = vld [vmem:[%s1 + $0x58] sm:$0xff]
  %v46 = vld [vmem:[%s1 + $0x60] sm:$0xff]
  %v47 = vld [vmem:[%s1 + $0x68] sm:$0xff]
  %v48 = vld [vmem:[%s1 + $0x70] sm:$0xff]
  %v49 = vld [vmem:[%s1 + $0x78] sm:$0xff]
  %v50 = vld [vmem:[%s1 + $0x80] sm:$0xff]
  %v51 = vld [vmem:[%s1 + $0x88] sm:$0xff]
  %v52 = vld [vmem:[%s1 + $0x90] sm:$0xff]
  %v53 = vld [vmem:[%s1 + $0x98] sm:$0xff]
  %v54 = vld [vmem:[%s1 + $0xa0] sm:$0xff]
  %v55 = vld [vmem:[%s1 + $0xa8] sm:$0xff]
  %v56 = vld [vmem:[%s1 + $0xb0] sm:$0xff]
  %v57 = vld [vmem:[%s1 + $0xb8] sm:$0xff]
  %v58 = vld [vmem:[%s1 + $0xc0] sm:$0xff]
  %v59 = vld [vmem:[%s1 + $0xc8] sm:$0xff]
  %v60 = vld [vmem:[%s1 + $0xd0] sm:$0xff]
  %v61 = vld [vmem:[%s1 + $0xd8] sm:$0xff]
  %v62 = vld [vmem:[%s1 + $0xe0] sm:$0xff]
  %v63 = vld [vmem:[%s1 + $0xe8] sm:$0xff]
  %v64 = vld [vmem:[%s1 + $0xf0] sm:$0xff]
  %v65 = vld [vmem:[%s1 + $0xf8] sm:$0xff]
  %v66 = vld [vmem:[%s1 + $0x100] sm:$0xff]
  %v67 = vld [vmem:[%s1 + $0x108] sm:$0xff]
  %v68 = vld [vmem:[%s1 + $0x110] sm:$0xff]
  %v69 = vld [vmem:[%s1 + $0x118] sm:$0xff]
  %v70 = vld [vmem:[%s1 + $0x120] sm:$0xff]
  %v71 = vld [vmem:[%s1 + $0x128] sm:$0xff]
  %v72 = vld [vmem:[%s1 + $0x130] sm:$0xff]
  %v73 = vld [vmem:[%s1 + $0x138] sm:$0xff]
  %v74 = vld [vmem:[%s1 + $0x140] sm:$0xff]
  %v75 = vld [vmem:[%s1 + $0x148] sm:$0xff]
  %v76 = vld [vmem:[%s1 + $0x150] sm:$0xff]
  %v77 = vld [vmem:[%s1 + $0x158] sm:$0xff]
  %v78 = vld [vmem:[%s1 + $0x160] sm:$0xff]
  %v79 = vld [vmem:[%s1 + $0x168] sm:$0xff]
  %v80 = vld [vmem:[%s1 + $0x170] sm:$0xff]
  %v81 = vld [vmem:[%s1 + $0x178] sm:$0xff]
  %v82 = vld [vmem:[%s1 + $0x180] sm:$0xff]
  %v83 = vld [vmem:[%s1 + $0x188] sm:$0xff]
  %v84 = vld [vmem:[%s1 + $0x190] sm:$0xff]
  %v85 = vld [vmem:[%s1 + $0x198] sm:$0xff]
  %v86 = vld [vmem:[%s1 + $0x1a0] sm:$0xff]
  %v87 = vld [vmem:[%s1 + $0x1a8] sm:$0xff]
  %v88 = vld [vmem:[%s1 + $0x1b0] sm:$0xff]
  %v89 = vld [vmem:[%s1 + $0x1b8] sm:$0xff]
  %v90 = vld [vmem:[%s1 + $0x1c0] sm:$0xff]
  %v91 = vld [vmem:[%s1 + $0x1c8] sm:$0xff]
  %v92 = vld [vmem:[%s1 + $0x1d0] sm:$0xff]
  %v93 = vld [vmem:[%s1 + $0x1d8] sm:$0xff]
  %v94 = vld [vmem:[%s1 + $0x1e0] sm:$0xff]
  %v95 = vld [vmem:[%s1 + $0x1e8] sm:$0xff]
  %v96 = vld [vmem:[%s1 + $0x1f0] sm:$0xff]
  %v97 = vld [vmem:[%s1 + $0x1f8] sm:$0xff]
  %v98 = vld [vmem:[%s1 + $0x200] sm:$0xff]
  %v99 = vld [vmem:[%s1 + $0x208] sm:$0xff]
  %v100 = vld [vmem:[%s1 + $0x210] sm:$0xff]
  %v101 = vld [vmem:[%s1 + $0x218] sm:$0xff]
  %v102 = vld [vmem:[%s1 + $0x220] sm:$0xff]
  %v103 = vld [vmem:[%s1 + $0x228] sm:$0xff]
  %v104 = vld [vmem:[%s1 + $0x230] sm:$0xff]
  %v105 = vld [vmem:[%s1 + $0x238] sm:$0xff]
  %v106 = vld [vmem:[%s2] sm:$0x1]
  %v108 = vlaneseq
  %v109 = vshrl.u32 %v108, 7
  %v110 = vsub.s32 0, %v109
  %v111 = vrot.slane %v106, %v110
  %vm113 = vcmask 523264
  %v115 = vsel %vm113, %v18, 0
  %v118 = vsel %vm113, %v23, 0
  %v121 = vsel %vm113, %v28, 0
  %v124 = vsel %vm113, %v33, 0
  %126 = vmatprep.subr.mxu0 0.0
  %127 = vmatpush1.msra.mxu0 %v49
  %128 = vmatprep.subr.mxu0 0.0
  %129 = vmatpush1.msra.mxu0 %v48
  %130 = vmatprep.subr.mxu0 0.0
  %131 = vmatpush1.msra.mxu0 %v47
  %132 = vmatprep.subr.mxu0 0.0
  %133 = vmatpush1.msra.mxu0 %v46
  %134 = vmatprep.subr.mxu0 0.0
  %135 = vmatpush1.msra.mxu0 %v45
  %136 = vmatprep.subr.mxu0 0.0
  %137 = vmatpush1.msra.mxu0 %v44
  %138 = vmatprep.subr.mxu0 0.0
  %139 = vmatpush1.msra.mxu0 %v43
  %140 = vmatprep.subr.mxu0 0.0
  %141 = vmatpush1.msra.mxu0 %v42
  %142 = vmatprep.subr.mxu0 0.0
  %143 = vmatpush1.msra.mxu0 %v41
  %144 = vmatprep.subr.mxu0 0.0
  %145 = vmatpush1.msra.mxu0 %v40
  %146 = vmatprep.subr.mxu0 0.0
  %147 = vmatpush1.msra.mxu0 %v39
  %148 = vmatprep.subr.mxu0 0.0
  %149 = vmatpush1.msra.mxu0 %v38
  %150 = vmatprep.subr.mxu0 0.0
  %151 = vmatpush1.msra.mxu0 %v37
  %152 = vmatprep.subr.mxu0 0.0
  %153 = vmatpush1.msra.mxu0 %v36
  %154 = vmatprep.subr.mxu0 0.0
  %155 = vmatpush1.msra.mxu0 %v35
  %156 = vmatprep.subr.mxu0 0.0
  %157 = vmatpush1.msra.mxu0 %v34
  %158 = vmatprep.subr.mxu0 0.0
  %159 = vmatpush2.msra.mxu0 %v65
  %160 = vmatprep.subr.mxu0 0.0
  %161 = vmatpush2.msra.mxu0 %v64
  %162 = vmatprep.subr.mxu0 0.0
  %163 = vmatpush2.msra.mxu0 %v63
  %164 = vmatprep.subr.mxu0 0.0
  %165 = vmatpush2.msra.mxu0 %v62
  %166 = vmatprep.subr.mxu0 0.0
  %167 = vmatpush2.msra.mxu0 %v61
  %168 = vmatprep.subr.mxu0 0.0
  %169 = vmatpush2.msra.mxu0 %v60
  %170 = vmatprep.subr.mxu0 0.0
  %171 = vmatpush2.msra.mxu0 %v59
  %172 = vmatprep.subr.mxu0 0.0
  %173 = vmatpush2.msra.mxu0 %v58
  %174 = vmatprep.subr.mxu0 0.0
  %175 = vmatpush2.msra.mxu0 %v57
  %176 = vmatprep.subr.mxu0 0.0
  %177 = vmatpush2.msra.mxu0 %v56
  %178 = vmatprep.subr.mxu0 0.0
  %179 = vmatpush2.msra.mxu0 %v55
  %180 = vmatprep.subr.mxu0 0.0
  %181 = vmatpush2.msra.mxu0 %v54
  %182 = vmatprep.subr.mxu0 0.0
  %183 = vmatpush2.msra.mxu0 %v53
  %184 = vmatprep.subr.mxu0 0.0
  %185 = vmatpush2.msra.mxu0 %v52
  %186 = vmatprep.subr.mxu0 0.0
  %187 = vmatpush2.msra.mxu0 %v51
  %188 = vmatprep.subr.mxu0 0.0
  %189 = vmatpush2.msra.mxu0 %v50
  %190 = vmatprep.mubr.f32.mxu0 %v15
  %191 = vmatmul.mubr.f32.gmra.mxu0 %v14
  %v192 = vpop.f32.mrf.mxu0
  %v193 = vadd.f32 %v111, %v192
  %v194 = vpop.f32.mrf.mxu0
  %195 = vmatprep.mubr.f32.mxu0 %v20
  %196 = vmatmul.mubr.f32.gmra.mxu0 %v19
  %v197 = vpop.f32.mrf.mxu0
  %v198 = vadd.f32 %v111, %v197
  %v199 = vpop.f32.mrf.mxu0
  %200 = vmatprep.mubr.f32.mxu0 %v25
  %201 = vmatmul.mubr.f32.gmra.mxu0 %v24
  %v202 = vpop.f32.mrf.mxu0
  %v203 = vadd.f32 %v111, %v202
  %v204 = vpop.f32.mrf.mxu0
  %205 = vmatprep.mubr.f32.mxu0 %v30
  %206 = vmatmul.mubr.f32.gmra.mxu0 %v29
  %v207 = vpop.f32.mrf.mxu0
  %v208 = vadd.f32 %v111, %v207
  %v209 = vpop.f32.mrf.mxu0
  %210 = vdwg.mxu0
  %211 = vmatprep.subr.mxu0 0.0
  %212 = vmatpush1.msra.mxu0 %v81
  %213 = vmatprep.subr.mxu0 0.0
  %214 = vmatpush1.msra.mxu0 %v80
  %215 = vmatprep.subr.mxu0 0.0
  %216 = vmatpush1.msra.mxu0 %v79
  %217 = vmatprep.subr.mxu0 0.0
  %218 = vmatpush1.msra.mxu0 %v78
  %219 = vmatprep.subr.mxu0 0.0
  %220 = vmatpush1.msra.mxu0 %v77
  %221 = vmatprep.subr.mxu0 0.0
  %222 = vmatpush1.msra.mxu0 %v76
  %223 = vmatprep.subr.mxu0 0.0
  %224 = vmatpush1.msra.mxu0 %v75
  %225 = vmatprep.subr.mxu0 0.0
  %226 = vmatpush1.msra.mxu0 %v74
  %227 = vmatprep.subr.mxu0 0.0
  %228 = vmatpush1.msra.mxu0 %v73
  %229 = vmatprep.subr.mxu0 0.0
  %230 = vmatpush1.msra.mxu0 %v72
  %231 = vmatprep.subr.mxu0 0.0
  %232 = vmatpush1.msra.mxu0 %v71
  %233 = vmatprep.subr.mxu0 0.0
  %234 = vmatpush1.msra.mxu0 %v70
  %235 = vmatprep.subr.mxu0 0.0
  %236 = vmatpush1.msra.mxu0 %v69
  %237 = vmatprep.subr.mxu0 0.0
  %238 = vmatpush1.msra.mxu0 %v68
  %239 = vmatprep.subr.mxu0 0.0
  %240 = vmatpush1.msra.mxu0 %v67
  %241 = vmatprep.subr.mxu0 0.0
  %242 = vmatpush1.msra.mxu0 %v66
  %243 = vmatprep.subr.mxu0 0.0
  %244 = vmatpush2.msra.mxu0 %v97
  %245 = vmatprep.subr.mxu0 0.0
  %246 = vmatpush2.msra.mxu0 %v96
  %247 = vmatprep.subr.mxu0 0.0
  %248 = vmatpush2.msra.mxu0 %v95
  %249 = vmatprep.subr.mxu0 0.0
  %250 = vmatpush2.msra.mxu0 %v94
  %251 = vmatprep.subr.mxu0 0.0
  %252 = vmatpush2.msra.mxu0 %v93
  %253 = vmatprep.subr.mxu0 0.0
  %254 = vmatpush2.msra.mxu0 %v92
  %255 = vmatprep.subr.mxu0 0.0
  %256 = vmatpush2.msra.mxu0 %v91
  %257 = vmatprep.subr.mxu0 0.0
  %258 = vmatpush2.msra.mxu0 %v90
  %259 = vmatprep.subr.mxu0 0.0
  %260 = vmatpush2.msra.mxu0 %v89
  %261 = vmatprep.subr.mxu0 0.0
  %262 = vmatpush2.msra.mxu0 %v88
  %263 = vmatprep.subr.mxu0 0.0
  %264 = vmatpush2.msra.mxu0 %v87
  %265 = vmatprep.subr.mxu0 0.0
  %266 = vmatpush2.msra.mxu0 %v86
  %267 = vmatprep.subr.mxu0 0.0
  %268 = vmatpush2.msra.mxu0 %v85
  %269 = vmatprep.subr.mxu0 0.0
  %270 = vmatpush2.msra.mxu0 %v84
  %271 = vmatprep.subr.mxu0 0.0
  %272 = vmatpush2.msra.mxu0 %v83
  %273 = vmatprep.subr.mxu0 0.0
  %274 = vmatpush2.msra.mxu0 %v82
  %275 = vmatprep.mubr.f32.mxu0 %v17
  %276 = vmatmul.mubr.f32.gmra.mxu0 %v16
  %v277 = vpop.f32.mrf.mxu0
  %v278 = vadd.f32 %v193, %v277
  %v279 = vpop.f32.mrf.mxu0
  %280 = vmatprep.mubr.f32.mxu0 %v22
  %281 = vmatmul.mubr.f32.gmra.mxu0 %v21
  %v282 = vpop.f32.mrf.mxu0
  %v283 = vadd.f32 %v198, %v282
  %v284 = vpop.f32.mrf.mxu0
  %285 = vmatprep.mubr.f32.mxu0 %v27
  %286 = vmatmul.mubr.f32.gmra.mxu0 %v26
  %v287 = vpop.f32.mrf.mxu0
  %v288 = vadd.f32 %v203, %v287
  %v289 = vpop.f32.mrf.mxu0
  %290 = vmatprep.mubr.f32.mxu0 %v32
  %291 = vmatmul.mubr.f32.gmra.mxu0 %v31
  %v292 = vpop.f32.mrf.mxu0
  %v293 = vadd.f32 %v208, %v292
  %v294 = vpop.f32.mrf.mxu0
  %295 = vdwg.mxu0
  %296 = vmatprep.subr.mxu0 0.0
  %297 = vmatpush1.msra.mxu0 0.0
  %298 = vmatprep.subr.mxu0 0.0
  %299 = vmatpush1.msra.mxu0 0.0
  %300 = vmatprep.subr.mxu0 0.0
  %301 = vmatpush1.msra.mxu0 0.0
  %302 = vmatprep.subr.mxu0 0.0
  %303 = vmatpush1.msra.mxu0 0.0
  %304 = vmatprep.subr.mxu0 0.0
  %305 = vmatpush1.msra.mxu0 0.0
  %306 = vmatprep.subr.mxu0 0.0
  %307 = vmatpush1.msra.mxu0 0.0
  %308 = vmatprep.subr.mxu0 0.0
  %309 = vmatpush1.msra.mxu0 0.0
  %310 = vmatprep.subr.mxu0 0.0
  %311 = vmatpush1.msra.mxu0 0.0
  %312 = vmatprep.subr.mxu0 0.0
  %313 = vmatpush1.msra.mxu0 %v105
  %314 = vmatprep.subr.mxu0 0.0
  %315 = vmatpush1.msra.mxu0 %v104
  %316 = vmatprep.subr.mxu0 0.0
  %317 = vmatpush1.msra.mxu0 %v103
  %318 = vmatprep.subr.mxu0 0.0
  %319 = vmatpush1.msra.mxu0 %v102
  %320 = vmatprep.subr.mxu0 0.0
  %321 = vmatpush1.msra.mxu0 %v101
  %322 = vmatprep.subr.mxu0 0.0
  %323 = vmatpush1.msra.mxu0 %v100
  %324 = vmatprep.subr.mxu0 0.0
  %325 = vmatpush1.msra.mxu0 %v99
  %326 = vmatprep.subr.mxu0 0.0
  %327 = vmatpush1.msra.mxu0 %v98
  %328 = vmatprep.subr.mxu0 0.0
  %329 = vmatpush2.msra.mxu0 0.0
  %330 = vmatprep.subr.mxu0 0.0
  %331 = vmatpush2.msra.mxu0 0.0
  %332 = vmatprep.subr.mxu0 0.0
  %333 = vmatpush2.msra.mxu0 0.0
  %334 = vmatprep.subr.mxu0 0.0
  %335 = vmatpush2.msra.mxu0 0.0
  %336 = vmatprep.subr.mxu0 0.0
  %337 = vmatpush2.msra.mxu0 0.0
  %338 = vmatprep.subr.mxu0 0.0
  %339 = vmatpush2.msra.mxu0 0.0
  %340 = vmatprep.subr.mxu0 0.0
  %341 = vmatpush2.msra.mxu0 0.0
  %342 = vmatprep.subr.mxu0 0.0
  %343 = vmatpush2.msra.mxu0 0.0
  %344 = vmatprep.subr.mxu0 0.0
  %345 = vmatpush2.msra.mxu0 0.0
  %346 = vmatprep.subr.mxu0 0.0
  %347 = vmatpush2.msra.mxu0 0.0
  %348 = vmatprep.subr.mxu0 0.0
  %349 = vmatpush2.msra.mxu0 0.0
  %350 = vmatprep.subr.mxu0 0.0
  %351 = vmatpush2.msra.mxu0 0.0
  %352 = vmatprep.subr.mxu0 0.0
  %353 = vmatpush2.msra.mxu0 0.0
  %354 = vmatprep.subr.mxu0 0.0
  %355 = vmatpush2.msra.mxu0 0.0
  %356 = vmatprep.subr.mxu0 0.0
  %357 = vmatpush2.msra.mxu0 0.0
  %358 = vmatprep.subr.mxu0 0.0
  %359 = vmatpush2.msra.mxu0 0.0
  %360 = vmatprep.mubr.f32.mxu0 0.0
  %361 = vmatmul.mubr.f32.gmra.mxu0 %v115
  %v362 = vpop.f32.mrf.mxu0
  %v363 = vadd.f32 %v278, %v362
  %v364 = vpop.f32.mrf.mxu0
  %365 = vmatprep.mubr.f32.mxu0 0.0
  %366 = vmatmul.mubr.f32.gmra.mxu0 %v118
  %v367 = vpop.f32.mrf.mxu0
  %v368 = vadd.f32 %v283, %v367
  %v369 = vpop.f32.mrf.mxu0
  %370 = vmatprep.mubr.f32.mxu0 0.0
  %371 = vmatmul.mubr.f32.gmra.mxu0 %v121
  %v372 = vpop.f32.mrf.mxu0
  %v373 = vadd.f32 %v288, %v372
  %v374 = vpop.f32.mrf.mxu0
  %375 = vmatprep.mubr.f32.mxu0 0.0
  %376 = vmatmul.mubr.f32.gmra.mxu0 %v124
  %v377 = vpop.f32.mrf.mxu0
  %v378 = vadd.f32 %v293, %v377
  %v379 = vpop.f32.mrf.mxu0
  %380 = vdwg.mxu0
  %v381 = vmax.f32 %v363, 0.0
  %v382 = vmax.f32 %v368, 0.0
  %v383 = vmax.f32 %v373, 0.0
  %v384 = vmax.f32 %v378, 0.0
  %385 = vst.msk [vmem:[%s3] sm:$0xff] %vm113, %v381
  %386 = vst.msk [vmem:[%s3 + $0x8] sm:$0xff] %vm113, %v382
  %387 = vst.msk [vmem:[%s3 + $0x10] sm:$0xff] %vm113, %v383
  %388 = vst.msk [vmem:[%s3 + $0x18] sm:$0xff] %vm113, %v384
  // Predicated region
  $region14: #{dqn_rgb_forward.6} parent=0 // pred_check
    _
  $region15: #{dqn_rgb_forward.6} parent=0 // pred_check_branch
    %390 = sbr.rel (0) target = $region17
  $region16: #{dqn_rgb_forward.6} parent=0 // pred_region
    _
  $region17: #{dqn_rgb_forward.6} parent=0 // pred_fallthru
    _
  // Predicated region
  $region18: #{dqn_rgb_forward.6} parent=0 // pred_check
    _
  $region19: #{dqn_rgb_forward.6} parent=0 // pred_check_branch
    %392 = sbr.rel (0) target = $region21
  $region20: #{dqn_rgb_forward.6} parent=0 // pred_region
    _
  $region21: #{dqn_rgb_forward.6} parent=0 // pred_fallthru
    _

// kernel: dqn_rgb_forward.7
$region0: #{dqn_rgb_forward.7}
  #allocation0 [shape = 'u32[]', space=smem, size = 0x4, offset = 0x4, fixed_abs, tag = 'smem constant byte address 0x4 - core index']
  #allocation1 [shape = 'u32[144,128]{1,0:T(1,128)}', space=vmem, size = 0x12000, scoped, tag = 'internal scratch']
  #allocation2 [shape = 'f32[1,1]{1,0:T(1,128)S(1)}', space=vmem, size = 0x200, scoped, tag = 'scoped memory for dqn_rgb_forward.7']
  %s0 = inlined_call_operand.vmem [shape: f32[2,1024], index: 0, kind: input, shape index: {}]
  %s1 = inlined_call_operand.vmem [shape: f32[1024,1024], index: 1, kind: input, shape index: {}]
  %s2 = inlined_call_operand.vmem [shape: f32[1,1024], index: 2, kind: input, shape index: {}]
  %s3 = inlined_call_operand.vmem [shape: f32[512,1], index: 3, kind: input, shape index: {}]
  %s4 = inlined_call_operand.<no memory space> [shape: f32[1,1], index: 4, kind: input, shape index: {}]
  %s5 = inlined_call_operand.vmem [shape: f32[512,2], index: 5, kind: input, shape index: {}]
  %s6 = inlined_call_operand.vmem [shape: f32[1,2], index: 6, kind: input, shape index: {}]
  %s7 = inlined_call_operand.hbm [shape: f32[2,2], index: 7, kind: output, shape index: {}]
  %s8 = sld [smem:[#allocation0]]
  $region38: #{dqn_rgb_forward.7} parent=0
    _
  %s10 = ssub.s32 1, %s8
  %s11 = scalar_select 0, %s10, %s8
  %v12 = vstv %s4
  %13 = vst [vmem:[#allocation2] sm:$0x1] %v12
  $region1: #{dqn_rgb_forward.7} parent=0
    #allocation3 [shape = 'u8[1024]{0}', space=vmem, size = 0x400, scoped, tag = 'output window, operand 0, single buffered']
    #allocation4 [shape = 's32[1]{0}', space=sflag, size = 0x4, scoped, tag = 'scoped memory for dqn_rgb_forward.7']
    %14 = vsyncpa [#allocation4], 0
    // Predicated region
    $region2: #{dqn_rgb_forward.7} parent=1 // pred_check
      _
    $region3: #{dqn_rgb_forward.7} parent=1 // pred_check_branch
      %16 = sbr.rel (0) target = $region5
    $region4: #{dqn_rgb_forward.7} parent=1 // pred_region
      _
    $region5: #{dqn_rgb_forward.7} parent=1 // pred_fallthru
      _
    // Predicated region
    $region6: #{dqn_rgb_forward.7} parent=1 // pred_check
      _
    $region7: #{dqn_rgb_forward.7} parent=1 // pred_check_branch
      %18 = sbr.rel (0) target = $region9
    $region8: #{dqn_rgb_forward.7} parent=1 // pred_region
      _
    $region9: #{dqn_rgb_forward.7} parent=1 // pred_fallthru
      _
    // Predicated region
    $region10: #{dqn_rgb_forward.7} parent=1 // pred_check
      _
    $region11: #{dqn_rgb_forward.7} parent=1 // pred_check_branch
      %20 = sbr.rel (0) target = $region13
    $region12: #{dqn_rgb_forward.7} parent=1 // pred_region
      _
    $region13: #{dqn_rgb_forward.7} parent=1 // pred_fallthru
      _
    // Predicated region
    $region14: #{dqn_rgb_forward.7} parent=1 // pred_check
      _
    $region15: #{dqn_rgb_forward.7} parent=1 // pred_check_branch
      %22 = sbr.rel (0) target = $region17
    $region16: #{dqn_rgb_forward.7} parent=1 // pred_region
      _
    $region17: #{dqn_rgb_forward.7} parent=1 // pred_fallthru
      _
    // Predicated region
    $region18: #{dqn_rgb_forward.7} parent=1 // pred_check
      _
    $region19: #{dqn_rgb_forward.7} parent=1 // pred_check_branch
      %24 = sbr.rel (0) target = $region21
    $region20: #{dqn_rgb_forward.7} parent=1 // pred_region
      _
    $region21: #{dqn_rgb_forward.7} parent=1 // pred_fallthru
      _
    // Predicated region
    $region22: #{dqn_rgb_forward.7} parent=1 // pred_check
      _
    $region23: #{dqn_rgb_forward.7} parent=1 // pred_check_branch
      %26 = sbr.rel (0) target = $region25
    $region24: #{dqn_rgb_forward.7} parent=1 // pred_region
      _
    $region25: #{dqn_rgb_forward.7} parent=1 // pred_fallthru
      _
    // Predicated region
    $region26: #{dqn_rgb_forward.7} parent=1 // pred_check
      _
    $region27: #{dqn_rgb_forward.7} parent=1 // pred_check_branch
      %28 = sbr.rel (0) target = $region29
    $region28: #{dqn_rgb_forward.7} parent=1 // pred_region
      _
    $region29: #{dqn_rgb_forward.7} parent=1 // pred_fallthru
      _
    %v29 = vld [vmem:[%s0] sm:$0xff]
    %v30 = vld [vmem:[%s0 + $0x8] sm:$0xff]
    %v31 = vld [vmem:[%s1] sm:$0xff]
    %v32 = vld [vmem:[%s1 + $0x8] sm:$0xff]
    %v33 = vld [vmem:[%s1 + $0x10] sm:$0xff]
    %v34 = vld [vmem:[%s1 + $0x18] sm:$0xff]
    %v35 = vld [vmem:[%s1 + $0x20] sm:$0xff]
    %v36 = vld [vmem:[%s1 + $0x28] sm:$0xff]
    %v37 = vld [vmem:[%s1 + $0x30] sm:$0xff]
    %v38 = vld [vmem:[%s1 + $0x38] sm:$0xff]
    %v39 = vld [vmem:[%s1 + $0x40] sm:$0xff]
    %v40 = vld [vmem:[%s1 + $0x48] sm:$0xff]
    %v41 = vld [vmem:[%s1 + $0x50] sm:$0xff]
    %v42 = vld [vmem:[%s1 + $0x58] sm:$0xff]
    %v43 = vld [vmem:[%s1 + $0x60] sm:$0xff]
    %v44 = vld [vmem:[%s1 + $0x68] sm:$0xff]
    %v45 = vld [vmem:[%s1 + $0x70] sm:$0xff]
    %v46 = vld [vmem:[%s1 + $0x78] sm:$0xff]
    %v47 = vld [vmem:[%s1 + $0x80] sm:$0xff]
    %v48 = vld [vmem:[%s1 + $0x88] sm:$0xff]
    %v49 = vld [vmem:[%s1 + $0x90] sm:$0xff]
    %v50 = vld [vmem:[%s1 + $0x98] sm:$0xff]
    %v51 = vld [vmem:[%s1 + $0xa0] sm:$0xff]
    %v52 = vld [vmem:[%s1 + $0xa8] sm:$0xff]
    %v53 = vld [vmem:[%s1 + $0xb0] sm:$0xff]
    %v54 = vld [vmem:[%s1 + $0xb8] sm:$0xff]
    %v55 = vld [vmem:[%s1 + $0xc0] sm:$0xff]
    %v56 = vld [vmem:[%s1 + $0xc8] sm:$0xff]
    %v57 = vld [vmem:[%s1 + $0xd0] sm:$0xff]
    %v58 = vld [vmem:[%s1 + $0xd8] sm:$0xff]
    %v59 = vld [vmem:[%s1 + $0xe0] sm:$0xff]
    %v60 = vld [vmem:[%s1 + $0xe8] sm:$0xff]
    %v61 = vld [vmem:[%s1 + $0xf0] sm:$0xff]
    %v62 = vld [vmem:[%s1 + $0xf8] sm:$0xff]
    %v63 = vld [vmem:[%s1 + $0x100] sm:$0xff]
    %v64 = vld [vmem:[%s1 + $0x108] sm:$0xff]
    %v65 = vld [vmem:[%s1 + $0x110] sm:$0xff]
    %v66 = vld [vmem:[%s1 + $0x118] sm:$0xff]
    %v67 = vld [vmem:[%s1 + $0x120] sm:$0xff]
    %v68 = vld [vmem:[%s1 + $0x128] sm:$0xff]
    %v69 = vld [vmem:[%s1 + $0x130] sm:$0xff]
    %v70 = vld [vmem:[%s1 + $0x138] sm:$0xff]
    %v71 = vld [vmem:[%s1 + $0x140] sm:$0xff]
    %v72 = vld [vmem:[%s1 + $0x148] sm:$0xff]
    %v73 = vld [vmem:[%s1 + $0x150] sm:$0xff]
    %v74 = vld [vmem:[%s1 + $0x158] sm:$0xff]
    %v75 = vld [vmem:[%s1 + $0x160] sm:$0xff]
    %v76 = vld [vmem:[%s1 + $0x168] sm:$0xff]
    %v77 = vld [vmem:[%s1 + $0x170] sm:$0xff]
    %v78 = vld [vmem:[%s1 + $0x178] sm:$0xff]
    %v79 = vld [vmem:[%s1 + $0x180] sm:$0xff]
    %v80 = vld [vmem:[%s1 + $0x188] sm:$0xff]
    %v81 = vld [vmem:[%s1 + $0x190] sm:$0xff]
    %v82 = vld [vmem:[%s1 + $0x198] sm:$0xff]
    %v83 = vld [vmem:[%s1 + $0x1a0] sm:$0xff]
    %v84 = vld [vmem:[%s1 + $0x1a8] sm:$0xff]
    %v85 = vld [vmem:[%s1 + $0x1b0] sm:$0xff]
    %v86 = vld [vmem:[%s1 + $0x1b8] sm:$0xff]
    %v87 = vld [vmem:[%s1 + $0x1c0] sm:$0xff]
    %v88 = vld [vmem:[%s1 + $0x1c8] sm:$0xff]
    %v89 = vld [vmem:[%s1 + $0x1d0] sm:$0xff]
    %v90 = vld [vmem:[%s1 + $0x1d8] sm:$0xff]
    %v91 = vld [vmem:[%s1 + $0x1e0] sm:$0xff]
    %v92 = vld [vmem:[%s1 + $0x1e8] sm:$0xff]
    %v93 = vld [vmem:[%s1 + $0x1f0] sm:$0xff]
    %v94 = vld [vmem:[%s1 + $0x1f8] sm:$0xff]
    %v95 = vld [vmem:[%s1 + $0x200] sm:$0xff]
    %v96 = vld [vmem:[%s1 + $0x208] sm:$0xff]
    %v97 = vld [vmem:[%s1 + $0x210] sm:$0xff]
    %v98 = vld [vmem:[%s1 + $0x218] sm:$0xff]
    %v99 = vld [vmem:[%s1 + $0x220] sm:$0xff]
    %v100 = vld [vmem:[%s1 + $0x228] sm:$0xff]
    %v101 = vld [vmem:[%s1 + $0x230] sm:$0xff]
    %v102 = vld [vmem:[%s1 + $0x238] sm:$0xff]
    %v103 = vld [vmem:[%s1 + $0x240] sm:$0xff]
    %v104 = vld [vmem:[%s1 + $0x248] sm:$0xff]
    %v105 = vld [vmem:[%s1 + $0x250] sm:$0xff]
    %v106 = vld [vmem:[%s1 + $0x258] sm:$0xff]
    %v107 = vld [vmem:[%s1 + $0x260] sm:$0xff]
    %v108 = vld [vmem:[%s1 + $0x268] sm:$0xff]
    %v109 = vld [vmem:[%s1 + $0x270] sm:$0xff]
    %v110 = vld [vmem:[%s1 + $0x278] sm:$0xff]
    %v111 = vld [vmem:[%s1 + $0x280] sm:$0xff]
    %v112 = vld [vmem:[%s1 + $0x288] sm:$0xff]
    %v113 = vld [vmem:[%s1 + $0x290] sm:$0xff]
    %v114 = vld [vmem:[%s1 + $0x298] sm:$0xff]
    %v115 = vld [vmem:[%s1 + $0x2a0] sm:$0xff]
    %v116 = vld [vmem:[%s1 + $0x2a8] sm:$0xff]
    %v117 = vld [vmem:[%s1 + $0x2b0] sm:$0xff]
    %v118 = vld [vmem:[%s1 + $0x2b8] sm:$0xff]
    %v119 = vld [vmem:[%s1 + $0x2c0] sm:$0xff]
    %v120 = vld [vmem:[%s1 + $0x2c8] sm:$0xff]
    %v121 = vld [vmem:[%s1 + $0x2d0] sm:$0xff]
    %v122 = vld [vmem:[%s1 + $0x2d8] sm:$0xff]
    %v123 = vld [vmem:[%s1 + $0x2e0] sm:$0xff]
    %v124 = vld [vmem:[%s1 + $0x2e8] sm:$0xff]
    %v125 = vld [vmem:[%s1 + $0x2f0] sm:$0xff]
    %v126 = vld [vmem:[%s1 + $0x2f8] sm:$0xff]
    %v127 = vld [vmem:[%s1 + $0x300] sm:$0xff]
    %v128 = vld [vmem:[%s1 + $0x308] sm:$0xff]
    %v129 = vld [vmem:[%s1 + $0x310] sm:$0xff]
    %v130 = vld [vmem:[%s1 + $0x318] sm:$0xff]
    %v131 = vld [vmem:[%s1 + $0x320] sm:$0xff]
    %v132 = vld [vmem:[%s1 + $0x328] sm:$0xff]
    %v133 = vld [vmem:[%s1 + $0x330] sm:$0xff]
    %v134 = vld [vmem:[%s1 + $0x338] sm:$0xff]
    %v135 = vld [vmem:[%s1 + $0x340] sm:$0xff]
    %v136 = vld [vmem:[%s1 + $0x348] sm:$0xff]
    %v137 = vld [vmem:[%s1 + $0x350] sm:$0xff]
    %v138 = vld [vmem:[%s1 + $0x358] sm:$0xff]
    %v139 = vld [vmem:[%s1 + $0x360] sm:$0xff]
    %v140 = vld [vmem:[%s1 + $0x368] sm:$0xff]
    %v141 = vld [vmem:[%s1 + $0x370] sm:$0xff]
    %v142 = vld [vmem:[%s1 + $0x378] sm:$0xff]
    %v143 = vld [vmem:[%s1 + $0x380] sm:$0xff]
    %v144 = vld [vmem:[%s1 + $0x388] sm:$0xff]
    %v145 = vld [vmem:[%s1 + $0x390] sm:$0xff]
    %v146 = vld [vmem:[%s1 + $0x398] sm:$0xff]
    %v147 = vld [vmem:[%s1 + $0x3a0] sm:$0xff]
    %v148 = vld [vmem:[%s1 + $0x3a8] sm:$0xff]
    %v149 = vld [vmem:[%s1 + $0x3b0] sm:$0xff]
    %v150 = vld [vmem:[%s1 + $0x3b8] sm:$0xff]
    %v151 = vld [vmem:[%s1 + $0x3c0] sm:$0xff]
    %v152 = vld [vmem:[%s1 + $0x3c8] sm:$0xff]
    %v153 = vld [vmem:[%s1 + $0x3d0] sm:$0xff]
    %v154 = vld [vmem:[%s1 + $0x3d8] sm:$0xff]
    %v155 = vld [vmem:[%s1 + $0x3e0] sm:$0xff]
    %v156 = vld [vmem:[%s1 + $0x3e8] sm:$0xff]
    %v157 = vld [vmem:[%s1 + $0x3f0] sm:$0xff]
    %v158 = vld [vmem:[%s1 + $0x3f8] sm:$0xff]
    %v159 = vld [vmem:[%s1 + $0x400] sm:$0xff]
    %v160 = vld [vmem:[%s1 + $0x408] sm:$0xff]
    %v161 = vld [vmem:[%s1 + $0x410] sm:$0xff]
    %v162 = vld [vmem:[%s1 + $0x418] sm:$0xff]
    %v163 = vld [vmem:[%s1 + $0x420] sm:$0xff]
    %v164 = vld [vmem:[%s1 + $0x428] sm:$0xff]
    %v165 = vld [vmem:[%s1 + $0x430] sm:$0xff]
    %v166 = vld [vmem:[%s1 + $0x438] sm:$0xff]
    %v167 = vld [vmem:[%s1 + $0x440] sm:$0xff]
    %v168 = vld [vmem:[%s1 + $0x448] sm:$0xff]
    %v169 = vld [vmem:[%s1 + $0x450] sm:$0xff]
    %v170 = vld [vmem:[%s1 + $0x458] sm:$0xff]
    %v171 = vld [vmem:[%s1 + $0x460] sm:$0xff]
    %v172 = vld [vmem:[%s1 + $0x468] sm:$0xff]
    %v173 = vld [vmem:[%s1 + $0x470] sm:$0xff]
    %v174 = vld [vmem:[%s1 + $0x478] sm:$0xff]
    %v175 = vld [vmem:[%s1 + $0x480] sm:$0xff]
    %v176 = vld [vmem:[%s1 + $0x488] sm:$0xff]
    %v177 = vld [vmem:[%s1 + $0x490] sm:$0xff]
    %v178 = vld [vmem:[%s1 + $0x498] sm:$0xff]
    %v179 = vld [vmem:[%s1 + $0x4a0] sm:$0xff]
    %v180 = vld [vmem:[%s1 + $0x4a8] sm:$0xff]
    %v181 = vld [vmem:[%s1 + $0x4b0] sm:$0xff]
    %v182 = vld [vmem:[%s1 + $0x4b8] sm:$0xff]
    %v183 = vld [vmem:[%s1 + $0x4c0] sm:$0xff]
    %v184 = vld [vmem:[%s1 + $0x4c8] sm:$0xff]
    %v185 = vld [vmem:[%s1 + $0x4d0] sm:$0xff]
    %v186 = vld [vmem:[%s1 + $0x4d8] sm:$0xff]
    %v187 = vld [vmem:[%s1 + $0x4e0] sm:$0xff]
    %v188 = vld [vmem:[%s1 + $0x4e8] sm:$0xff]
    %v189 = vld [vmem:[%s1 + $0x4f0] sm:$0xff]
    %v190 = vld [vmem:[%s1 + $0x4f8] sm:$0xff]
    %v191 = vld [vmem:[%s1 + $0x500] sm:$0xff]
    %v192 = vld [vmem:[%s1 + $0x508] sm:$0xff]
    %v193 = vld [vmem:[%s1 + $0x510] sm:$0xff]
    %v194 = vld [vmem:[%s1 + $0x518] sm:$0xff]
    %v195 = vld [vmem:[%s1 + $0x520] sm:$0xff]
    %v196 = vld [vmem:[%s1 + $0x528] sm:$0xff]
    %v197 = vld [vmem:[%s1 + $0x530] sm:$0xff]
    %v198 = vld [vmem:[%s1 + $0x538] sm:$0xff]
    %v199 = vld [vmem:[%s1 + $0x540] sm:$0xff]
    %v200 = vld [vmem:[%s1 + $0x548] sm:$0xff]
    %v201 = vld [vmem:[%s1 + $0x550] sm:$0xff]
    %v202 = vld [vmem:[%s1 + $0x558] sm:$0xff]
    %v203 = vld [vmem:[%s1 + $0x560] sm:$0xff]
    %v204 = vld [vmem:[%s1 + $0x568] sm:$0xff]
    %v205 = vld [vmem:[%s1 + $0x570] sm:$0xff]
    %v206 = vld [vmem:[%s1 + $0x578] sm:$0xff]
    %v207 = vld [vmem:[%s1 + $0x580] sm:$0xff]
    %v208 = vld [vmem:[%s1 + $0x588] sm:$0xff]
    %v209 = vld [vmem:[%s1 + $0x590] sm:$0xff]
    %v210 = vld [vmem:[%s1 + $0x598] sm:$0xff]
    %v211 = vld [vmem:[%s1 + $0x5a0] sm:$0xff]
    %v212 = vld [vmem:[%s1 + $0x5a8] sm:$0xff]
    %v213 = vld [vmem:[%s1 + $0x5b0] sm:$0xff]
    %v214 = vld [vmem:[%s1 + $0x5b8] sm:$0xff]
    %v215 = vld [vmem:[%s1 + $0x5c0] sm:$0xff]
    %v216 = vld [vmem:[%s1 + $0x5c8] sm:$0xff]
    %v217 = vld [vmem:[%s1 + $0x5d0] sm:$0xff]
    %v218 = vld [vmem:[%s1 + $0x5d8] sm:$0xff]
    %v219 = vld [vmem:[%s1 + $0x5e0] sm:$0xff]
    %v220 = vld [vmem:[%s1 + $0x5e8] sm:$0xff]
    %v221 = vld [vmem:[%s1 + $0x5f0] sm:$0xff]
    %v222 = vld [vmem:[%s1 + $0x5f8] sm:$0xff]
    %v223 = vld [vmem:[%s1 + $0x600] sm:$0xff]
    %v224 = vld [vmem:[%s1 + $0x608] sm:$0xff]
    %v225 = vld [vmem:[%s1 + $0x610] sm:$0xff]
    %v226 = vld [vmem:[%s1 + $0x618] sm:$0xff]
    %v227 = vld [vmem:[%s1 + $0x620] sm:$0xff]
    %v228 = vld [vmem:[%s1 + $0x628] sm:$0xff]
    %v229 = vld [vmem:[%s1 + $0x630] sm:$0xff]
    %v230 = vld [vmem:[%s1 + $0x638] sm:$0xff]
    %v231 = vld [vmem:[%s1 + $0x640] sm:$0xff]
    %v232 = vld [vmem:[%s1 + $0x648] sm:$0xff]
    %v233 = vld [vmem:[%s1 + $0x650] sm:$0xff]
    %v234 = vld [vmem:[%s1 + $0x658] sm:$0xff]
    %v235 = vld [vmem:[%s1 + $0x660] sm:$0xff]
    %v236 = vld [vmem:[%s1 + $0x668] sm:$0xff]
    %v237 = vld [vmem:[%s1 + $0x670] sm:$0xff]
    %v238 = vld [vmem:[%s1 + $0x678] sm:$0xff]
    %v239 = vld [vmem:[%s1 + $0x680] sm:$0xff]
    %v240 = vld [vmem:[%s1 + $0x688] sm:$0xff]
    %v241 = vld [vmem:[%s1 + $0x690] sm:$0xff]
    %v242 = vld [vmem:[%s1 + $0x698] sm:$0xff]
    %v243 = vld [vmem:[%s1 + $0x6a0] sm:$0xff]
    %v244 = vld [vmem:[%s1 + $0x6a8] sm:$0xff]
    %v245 = vld [vmem:[%s1 + $0x6b0] sm:$0xff]
    %v246 = vld [vmem:[%s1 + $0x6b8] sm:$0xff]
    %v247 = vld [vmem:[%s1 + $0x6c0] sm:$0xff]
    %v248 = vld [vmem:[%s1 + $0x6c8] sm:$0xff]
    %v249 = vld [vmem:[%s1 + $0x6d0] sm:$0xff]
    %v250 = vld [vmem:[%s1 + $0x6d8] sm:$0xff]
    %v251 = vld [vmem:[%s1 + $0x6e0] sm:$0xff]
    %v252 = vld [vmem:[%s1 + $0x6e8] sm:$0xff]
    %v253 = vld [vmem:[%s1 + $0x6f0] sm:$0xff]
    %v254 = vld [vmem:[%s1 + $0x6f8] sm:$0xff]
    %v255 = vld [vmem:[%s1 + $0x700] sm:$0xff]
    %v256 = vld [vmem:[%s1 + $0x708] sm:$0xff]
    %v257 = vld [vmem:[%s1 + $0x710] sm:$0xff]
    %v258 = vld [vmem:[%s1 + $0x718] sm:$0xff]
    %v259 = vld [vmem:[%s1 + $0x720] sm:$0xff]
    %v260 = vld [vmem:[%s1 + $0x728] sm:$0xff]
    %v261 = vld [vmem:[%s1 + $0x730] sm:$0xff]
    %v262 = vld [vmem:[%s1 + $0x738] sm:$0xff]
    %v263 = vld [vmem:[%s1 + $0x740] sm:$0xff]
    %v264 = vld [vmem:[%s1 + $0x748] sm:$0xff]
    %v265 = vld [vmem:[%s1 + $0x750] sm:$0xff]
    %v266 = vld [vmem:[%s1 + $0x758] sm:$0xff]
    %v267 = vld [vmem:[%s1 + $0x760] sm:$0xff]
    %v268 = vld [vmem:[%s1 + $0x768] sm:$0xff]
    %v269 = vld [vmem:[%s1 + $0x770] sm:$0xff]
    %v270 = vld [vmem:[%s1 + $0x778] sm:$0xff]
    %v271 = vld [vmem:[%s1 + $0x780] sm:$0xff]
    %v272 = vld [vmem:[%s1 + $0x788] sm:$0xff]
    %v273 = vld [vmem:[%s1 + $0x790] sm:$0xff]
    %v274 = vld [vmem:[%s1 + $0x798] sm:$0xff]
    %v275 = vld [vmem:[%s1 + $0x7a0] sm:$0xff]
    %v276 = vld [vmem:[%s1 + $0x7a8] sm:$0xff]
    %v277 = vld [vmem:[%s1 + $0x7b0] sm:$0xff]
    %v278 = vld [vmem:[%s1 + $0x7b8] sm:$0xff]
    %v279 = vld [vmem:[%s1 + $0x7c0] sm:$0xff]
    %v280 = vld [vmem:[%s1 + $0x7c8] sm:$0xff]
    %v281 = vld [vmem:[%s1 + $0x7d0] sm:$0xff]
    %v282 = vld [vmem:[%s1 + $0x7d8] sm:$0xff]
    %v283 = vld [vmem:[%s1 + $0x7e0] sm:$0xff]
    %v284 = vld [vmem:[%s1 + $0x7e8] sm:$0xff]
    %v285 = vld [vmem:[%s1 + $0x7f0] sm:$0xff]
    %v286 = vld [vmem:[%s1 + $0x7f8] sm:$0xff]
    %v287 = vld [vmem:[%s1 + $0x800] sm:$0xff]
    %v288 = vld [vmem:[%s1 + $0x808] sm:$0xff]
    %v289 = vld [vmem:[%s1 + $0x810] sm:$0xff]
    %v290 = vld [vmem:[%s1 + $0x818] sm:$0xff]
    %v291 = vld [vmem:[%s1 + $0x820] sm:$0xff]
    %v292 = vld [vmem:[%s1 + $0x828] sm:$0xff]
    %v293 = vld [vmem:[%s1 + $0x830] sm:$0xff]
    %v294 = vld [vmem:[%s1 + $0x838] sm:$0xff]
    %v295 = vld [vmem:[%s1 + $0x840] sm:$0xff]
    %v296 = vld [vmem:[%s1 + $0x848] sm:$0xff]
    %v297 = vld [vmem:[%s1 + $0x850] sm:$0xff]
    %v298 = vld [vmem:[%s1 + $0x858] sm:$0xff]
    %v299 = vld [vmem:[%s1 + $0x860] sm:$0xff]
    %v300 = vld [vmem:[%s1 + $0x868] sm:$0xff]
    %v301 = vld [vmem:[%s1 + $0x870] sm:$0xff]
    %v302 = vld [vmem:[%s1 + $0x878] sm:$0xff]
    %v303 = vld [vmem:[%s1 + $0x880] sm:$0xff]
    %v304 = vld [vmem:[%s1 + $0x888] sm:$0xff]
    %v305 = vld [vmem:[%s1 + $0x890] sm:$0xff]
    %v306 = vld [vmem:[%s1 + $0x898] sm:$0xff]
    %v307 = vld [vmem:[%s1 + $0x8a0] sm:$0xff]
    %v308 = vld [vmem:[%s1 + $0x8a8] sm:$0xff]
    %v309 = vld [vmem:[%s1 + $0x8b0] sm:$0xff]
    %v310 = vld [vmem:[%s1 + $0x8b8] sm:$0xff]
    %v311 = vld [vmem:[%s1 + $0x8c0] sm:$0xff]
    %v312 = vld [vmem:[%s1 + $0x8c8] sm:$0xff]
    %v313 = vld [vmem:[%s1 + $0x8d0] sm:$0xff]
    %v314 = vld [vmem:[%s1 + $0x8d8] sm:$0xff]
    %v315 = vld [vmem:[%s1 + $0x8e0] sm:$0xff]
    %v316 = vld [vmem:[%s1 + $0x8e8] sm:$0xff]
    %v317 = vld [vmem:[%s1 + $0x8f0] sm:$0xff]
    %v318 = vld [vmem:[%s1 + $0x8f8] sm:$0xff]
    %v319 = vld [vmem:[%s1 + $0x900] sm:$0xff]
    %v320 = vld [vmem:[%s1 + $0x908] sm:$0xff]
    %v321 = vld [vmem:[%s1 + $0x910] sm:$0xff]
    %v322 = vld [vmem:[%s1 + $0x918] sm:$0xff]
    %v323 = vld [vmem:[%s1 + $0x920] sm:$0xff]
    %v324 = vld [vmem:[%s1 + $0x928] sm:$0xff]
    %v325 = vld [vmem:[%s1 + $0x930] sm:$0xff]
    %v326 = vld [vmem:[%s1 + $0x938] sm:$0xff]
    %v327 = vld [vmem:[%s1 + $0x940] sm:$0xff]
    %v328 = vld [vmem:[%s1 + $0x948] sm:$0xff]
    %v329 = vld [vmem:[%s1 + $0x950] sm:$0xff]
    %v330 = vld [vmem:[%s1 + $0x958] sm:$0xff]
    %v331 = vld [vmem:[%s1 + $0x960] sm:$0xff]
    %v332 = vld [vmem:[%s1 + $0x968] sm:$0xff]
    %v333 = vld [vmem:[%s1 + $0x970] sm:$0xff]
    %v334 = vld [vmem:[%s1 + $0x978] sm:$0xff]
    %v335 = vld [vmem:[%s1 + $0x980] sm:$0xff]
    %v336 = vld [vmem:[%s1 + $0x988] sm:$0xff]
    %v337 = vld [vmem:[%s1 + $0x990] sm:$0xff]
    %v338 = vld [vmem:[%s1 + $0x998] sm:$0xff]
    %v339 = vld [vmem:[%s1 + $0x9a0] sm:$0xff]
    %v340 = vld [vmem:[%s1 + $0x9a8] sm:$0xff]
    %v341 = vld [vmem:[%s1 + $0x9b0] sm:$0xff]
    %v342 = vld [vmem:[%s1 + $0x9b8] sm:$0xff]
    %v343 = vld [vmem:[%s1 + $0x9c0] sm:$0xff]
    %v344 = vld [vmem:[%s1 + $0x9c8] sm:$0xff]
    %v345 = vld [vmem:[%s1 + $0x9d0] sm:$0xff]
    %v346 = vld [vmem:[%s1 + $0x9d8] sm:$0xff]
    %v347 = vld [vmem:[%s1 + $0x9e0] sm:$0xff]
    %v348 = vld [vmem:[%s1 + $0x9e8] sm:$0xff]
    %v349 = vld [vmem:[%s1 + $0x9f0] sm:$0xff]
    %v350 = vld [vmem:[%s1 + $0x9f8] sm:$0xff]
    %v351 = vld [vmem:[%s1 + $0xa00] sm:$0xff]
    %v352 = vld [vmem:[%s1 + $0xa08] sm:$0xff]
    %v353 = vld [vmem:[%s1 + $0xa10] sm:$0xff]
    %v354 = vld [vmem:[%s1 + $0xa18] sm:$0xff]
    %v355 = vld [vmem:[%s1 + $0xa20] sm:$0xff]
    %v356 = vld [vmem:[%s1 + $0xa28] sm:$0xff]
    %v357 = vld [vmem:[%s1 + $0xa30] sm:$0xff]
    %v358 = vld [vmem:[%s1 + $0xa38] sm:$0xff]
    %v359 = vld [vmem:[%s1 + $0xa40] sm:$0xff]
    %v360 = vld [vmem:[%s1 + $0xa48] sm:$0xff]
    %v361 = vld [vmem:[%s1 + $0xa50] sm:$0xff]
    %v362 = vld [vmem:[%s1 + $0xa58] sm:$0xff]
    %v363 = vld [vmem:[%s1 + $0xa60] sm:$0xff]
    %v364 = vld [vmem:[%s1 + $0xa68] sm:$0xff]
    %v365 = vld [vmem:[%s1 + $0xa70] sm:$0xff]
    %v366 = vld [vmem:[%s1 + $0xa78] sm:$0xff]
    %v367 = vld [vmem:[%s1 + $0xa80] sm:$0xff]
    %v368 = vld [vmem:[%s1 + $0xa88] sm:$0xff]
    %v369 = vld [vmem:[%s1 + $0xa90] sm:$0xff]
    %v370 = vld [vmem:[%s1 + $0xa98] sm:$0xff]
    %v371 = vld [vmem:[%s1 + $0xaa0] sm:$0xff]
    %v372 = vld [vmem:[%s1 + $0xaa8] sm:$0xff]
    %v373 = vld [vmem:[%s1 + $0xab0] sm:$0xff]
    %v374 = vld [vmem:[%s1 + $0xab8] sm:$0xff]
    %v375 = vld [vmem:[%s1 + $0xac0] sm:$0xff]
    %v376 = vld [vmem:[%s1 + $0xac8] sm:$0xff]
    %v377 = vld [vmem:[%s1 + $0xad0] sm:$0xff]
    %v378 = vld [vmem:[%s1 + $0xad8] sm:$0xff]
    %v379 = vld [vmem:[%s1 + $0xae0] sm:$0xff]
    %v380 = vld [vmem:[%s1 + $0xae8] sm:$0xff]
    %v381 = vld [vmem:[%s1 + $0xaf0] sm:$0xff]
    %v382 = vld [vmem:[%s1 + $0xaf8] sm:$0xff]
    %v383 = vld [vmem:[%s1 + $0xb00] sm:$0xff]
    %v384 = vld [vmem:[%s1 + $0xb08] sm:$0xff]
    %v385 = vld [vmem:[%s1 + $0xb10] sm:$0xff]
    %v386 = vld [vmem:[%s1 + $0xb18] sm:$0xff]
    %v387 = vld [vmem:[%s1 + $0xb20] sm:$0xff]
    %v388 = vld [vmem:[%s1 + $0xb28] sm:$0xff]
    %v389 = vld [vmem:[%s1 + $0xb30] sm:$0xff]
    %v390 = vld [vmem:[%s1 + $0xb38] sm:$0xff]
    %v391 = vld [vmem:[%s1 + $0xb40] sm:$0xff]
    %v392 = vld [vmem:[%s1 + $0xb48] sm:$0xff]
    %v393 = vld [vmem:[%s1 + $0xb50] sm:$0xff]
    %v394 = vld [vmem:[%s1 + $0xb58] sm:$0xff]
    %v395 = vld [vmem:[%s1 + $0xb60] sm:$0xff]
    %v396 = vld [vmem:[%s1 + $0xb68] sm:$0xff]
    %v397 = vld [vmem:[%s1 + $0xb70] sm:$0xff]
    %v398 = vld [vmem:[%s1 + $0xb78] sm:$0xff]
    %v399 = vld [vmem:[%s1 + $0xb80] sm:$0xff]
    %v400 = vld [vmem:[%s1 + $0xb88] sm:$0xff]
    %v401 = vld [vmem:[%s1 + $0xb90] sm:$0xff]
    %v402 = vld [vmem:[%s1 + $0xb98] sm:$0xff]
    %v403 = vld [vmem:[%s1 + $0xba0] sm:$0xff]
    %v404 = vld [vmem:[%s1 + $0xba8] sm:$0xff]
    %v405 = vld [vmem:[%s1 + $0xbb0] sm:$0xff]
    %v406 = vld [vmem:[%s1 + $0xbb8] sm:$0xff]
    %v407 = vld [vmem:[%s1 + $0xbc0] sm:$0xff]
    %v408 = vld [vmem:[%s1 + $0xbc8] sm:$0xff]
    %v409 = vld [vmem:[%s1 + $0xbd0] sm:$0xff]
    %v410 = vld [vmem:[%s1 + $0xbd8] sm:$0xff]
    %v411 = vld [vmem:[%s1 + $0xbe0] sm:$0xff]
    %v412 = vld [vmem:[%s1 + $0xbe8] sm:$0xff]
    %v413 = vld [vmem:[%s1 + $0xbf0] sm:$0xff]
    %v414 = vld [vmem:[%s1 + $0xbf8] sm:$0xff]
    %v415 = vld [vmem:[%s1 + $0xc00] sm:$0xff]
    %v416 = vld [vmem:[%s1 + $0xc08] sm:$0xff]
    %v417 = vld [vmem:[%s1 + $0xc10] sm:$0xff]
    %v418 = vld [vmem:[%s1 + $0xc18] sm:$0xff]
    %v419 = vld [vmem:[%s1 + $0xc20] sm:$0xff]
    %v420 = vld [vmem:[%s1 + $0xc28] sm:$0xff]
    %v421 = vld [vmem:[%s1 + $0xc30] sm:$0xff]
    %v422 = vld [vmem:[%s1 + $0xc38] sm:$0xff]
    %v423 = vld [vmem:[%s1 + $0xc40] sm:$0xff]
    %v424 = vld [vmem:[%s1 + $0xc48] sm:$0xff]
    %v425 = vld [vmem:[%s1 + $0xc50] sm:$0xff]
    %v426 = vld [vmem:[%s1 + $0xc58] sm:$0xff]
    %v427 = vld [vmem:[%s1 + $0xc60] sm:$0xff]
    %v428 = vld [vmem:[%s1 + $0xc68] sm:$0xff]
    %v429 = vld [vmem:[%s1 + $0xc70] sm:$0xff]
    %v430 = vld [vmem:[%s1 + $0xc78] sm:$0xff]
    %v431 = vld [vmem:[%s1 + $0xc80] sm:$0xff]
    %v432 = vld [vmem:[%s1 + $0xc88] sm:$0xff]
    %v433 = vld [vmem:[%s1 + $0xc90] sm:$0xff]
    %v434 = vld [vmem:[%s1 + $0xc98] sm:$0xff]
    %v435 = vld [vmem:[%s1 + $0xca0] sm:$0xff]
    %v436 = vld [vmem:[%s1 + $0xca8] sm:$0xff]
    %v437 = vld [vmem:[%s1 + $0xcb0] sm:$0xff]
    %v438 = vld [vmem:[%s1 + $0xcb8] sm:$0xff]
    %v439 = vld [vmem:[%s1 + $0xcc0] sm:$0xff]
    %v440 = vld [vmem:[%s1 + $0xcc8] sm:$0xff]
    %v441 = vld [vmem:[%s1 + $0xcd0] sm:$0xff]
    %v442 = vld [vmem:[%s1 + $0xcd8] sm:$0xff]
    %v443 = vld [vmem:[%s1 + $0xce0] sm:$0xff]
    %v444 = vld [vmem:[%s1 + $0xce8] sm:$0xff]
    %v445 = vld [vmem:[%s1 + $0xcf0] sm:$0xff]
    %v446 = vld [vmem:[%s1 + $0xcf8] sm:$0xff]
    %v447 = vld [vmem:[%s1 + $0xd00] sm:$0xff]
    %v448 = vld [vmem:[%s1 + $0xd08] sm:$0xff]
    %v449 = vld [vmem:[%s1 + $0xd10] sm:$0xff]
    %v450 = vld [vmem:[%s1 + $0xd18] sm:$0xff]
    %v451 = vld [vmem:[%s1 + $0xd20] sm:$0xff]
    %v452 = vld [vmem:[%s1 + $0xd28] sm:$0xff]
    %v453 = vld [vmem:[%s1 + $0xd30] sm:$0xff]
    %v454 = vld [vmem:[%s1 + $0xd38] sm:$0xff]
    %v455 = vld [vmem:[%s1 + $0xd40] sm:$0xff]
    %v456 = vld [vmem:[%s1 + $0xd48] sm:$0xff]
    %v457 = vld [vmem:[%s1 + $0xd50] sm:$0xff]
    %v458 = vld [vmem:[%s1 + $0xd58] sm:$0xff]
    %v459 = vld [vmem:[%s1 + $0xd60] sm:$0xff]
    %v460 = vld [vmem:[%s1 + $0xd68] sm:$0xff]
    %v461 = vld [vmem:[%s1 + $0xd70] sm:$0xff]
    %v462 = vld [vmem:[%s1 + $0xd78] sm:$0xff]
    %v463 = vld [vmem:[%s1 + $0xd80] sm:$0xff]
    %v464 = vld [vmem:[%s1 + $0xd88] sm:$0xff]
    %v465 = vld [vmem:[%s1 + $0xd90] sm:$0xff]
    %v466 = vld [vmem:[%s1 + $0xd98] sm:$0xff]
    %v467 = vld [vmem:[%s1 + $0xda0] sm:$0xff]
    %v468 = vld [vmem:[%s1 + $0xda8] sm:$0xff]
    %v469 = vld [vmem:[%s1 + $0xdb0] sm:$0xff]
    %v470 = vld [vmem:[%s1 + $0xdb8] sm:$0xff]
    %v471 = vld [vmem:[%s1 + $0xdc0] sm:$0xff]
    %v472 = vld [vmem:[%s1 + $0xdc8] sm:$0xff]
    %v473 = vld [vmem:[%s1 + $0xdd0] sm:$0xff]
    %v474 = vld [vmem:[%s1 + $0xdd8] sm:$0xff]
    %v475 = vld [vmem:[%s1 + $0xde0] sm:$0xff]
    %v476 = vld [vmem:[%s1 + $0xde8] sm:$0xff]
    %v477 = vld [vmem:[%s1 + $0xdf0] sm:$0xff]
    %v478 = vld [vmem:[%s1 + $0xdf8] sm:$0xff]
    %v479 = vld [vmem:[%s1 + $0xe00] sm:$0xff]
    %v480 = vld [vmem:[%s1 + $0xe08] sm:$0xff]
    %v481 = vld [vmem:[%s1 + $0xe10] sm:$0xff]
    %v482 = vld [vmem:[%s1 + $0xe18] sm:$0xff]
    %v483 = vld [vmem:[%s1 + $0xe20] sm:$0xff]
    %v484 = vld [vmem:[%s1 + $0xe28] sm:$0xff]
    %v485 = vld [vmem:[%s1 + $0xe30] sm:$0xff]
    %v486 = vld [vmem:[%s1 + $0xe38] sm:$0xff]
    %v487 = vld [vmem:[%s1 + $0xe40] sm:$0xff]
    %v488 = vld [vmem:[%s1 + $0xe48] sm:$0xff]
    %v489 = vld [vmem:[%s1 + $0xe50] sm:$0xff]
    %v490 = vld [vmem:[%s1 + $0xe58] sm:$0xff]
    %v491 = vld [vmem:[%s1 + $0xe60] sm:$0xff]
    %v492 = vld [vmem:[%s1 + $0xe68] sm:$0xff]
    %v493 = vld [vmem:[%s1 + $0xe70] sm:$0xff]
    %v494 = vld [vmem:[%s1 + $0xe78] sm:$0xff]
    %v495 = vld [vmem:[%s1 + $0xe80] sm:$0xff]
    %v496 = vld [vmem:[%s1 + $0xe88] sm:$0xff]
    %v497 = vld [vmem:[%s1 + $0xe90] sm:$0xff]
    %v498 = vld [vmem:[%s1 + $0xe98] sm:$0xff]
    %v499 = vld [vmem:[%s1 + $0xea0] sm:$0xff]
    %v500 = vld [vmem:[%s1 + $0xea8] sm:$0xff]
    %v501 = vld [vmem:[%s1 + $0xeb0] sm:$0xff]
    %v502 = vld [vmem:[%s1 + $0xeb8] sm:$0xff]
    %v503 = vld [vmem:[%s1 + $0xec0] sm:$0xff]
    %v504 = vld [vmem:[%s1 + $0xec8] sm:$0xff]
    %v505 = vld [vmem:[%s1 + $0xed0] sm:$0xff]
    %v506 = vld [vmem:[%s1 + $0xed8] sm:$0xff]
    %v507 = vld [vmem:[%s1 + $0xee0] sm:$0xff]
    %v508 = vld [vmem:[%s1 + $0xee8] sm:$0xff]
    %v509 = vld [vmem:[%s1 + $0xef0] sm:$0xff]
    %v510 = vld [vmem:[%s1 + $0xef8] sm:$0xff]
    %v511 = vld [vmem:[%s1 + $0xf00] sm:$0xff]
    %v512 = vld [vmem:[%s1 + $0xf08] sm:$0xff]
    %v513 = vld [vmem:[%s1 + $0xf10] sm:$0xff]
    %v514 = vld [vmem:[%s1 + $0xf18] sm:$0xff]
    %v515 = vld [vmem:[%s1 + $0xf20] sm:$0xff]
    %v516 = vld [vmem:[%s1 + $0xf28] sm:$0xff]
    %v517 = vld [vmem:[%s1 + $0xf30] sm:$0xff]
    %v518 = vld [vmem:[%s1 + $0xf38] sm:$0xff]
    %v519 = vld [vmem:[%s1 + $0xf40] sm:$0xff]
    %v520 = vld [vmem:[%s1 + $0xf48] sm:$0xff]
    %v521 = vld [vmem:[%s1 + $0xf50] sm:$0xff]
    %v522 = vld [vmem:[%s1 + $0xf58] sm:$0xff]
    %v523 = vld [vmem:[%s1 + $0xf60] sm:$0xff]
    %v524 = vld [vmem:[%s1 + $0xf68] sm:$0xff]
    %v525 = vld [vmem:[%s1 + $0xf70] sm:$0xff]
    %v526 = vld [vmem:[%s1 + $0xf78] sm:$0xff]
    %v527 = vld [vmem:[%s1 + $0xf80] sm:$0xff]
    %v528 = vld [vmem:[%s1 + $0xf88] sm:$0xff]
    %v529 = vld [vmem:[%s1 + $0xf90] sm:$0xff]
    %v530 = vld [vmem:[%s1 + $0xf98] sm:$0xff]
    %v531 = vld [vmem:[%s1 + $0xfa0] sm:$0xff]
    %v532 = vld [vmem:[%s1 + $0xfa8] sm:$0xff]
    %v533 = vld [vmem:[%s1 + $0xfb0] sm:$0xff]
    %v534 = vld [vmem:[%s1 + $0xfb8] sm:$0xff]
    %v535 = vld [vmem:[%s1 + $0xfc0] sm:$0xff]
    %v536 = vld [vmem:[%s1 + $0xfc8] sm:$0xff]
    %v537 = vld [vmem:[%s1 + $0xfd0] sm:$0xff]
    %v538 = vld [vmem:[%s1 + $0xfd8] sm:$0xff]
    %v539 = vld [vmem:[%s1 + $0xfe0] sm:$0xff]
    %v540 = vld [vmem:[%s1 + $0xfe8] sm:$0xff]
    %v541 = vld [vmem:[%s1 + $0xff0] sm:$0xff]
    %v542 = vld [vmem:[%s1 + $0xff8] sm:$0xff]
    %v543 = vld [vmem:[%s1 + $0x1000] sm:$0xff]
    %v544 = vld [vmem:[%s1 + $0x1008] sm:$0xff]
    %v545 = vld [vmem:[%s1 + $0x1010] sm:$0xff]
    %v546 = vld [vmem:[%s1 + $0x1018] sm:$0xff]
    %v547 = vld [vmem:[%s1 + $0x1020] sm:$0xff]
    %v548 = vld [vmem:[%s1 + $0x1028] sm:$0xff]
    %v549 = vld [vmem:[%s1 + $0x1030] sm:$0xff]
    %v550 = vld [vmem:[%s1 + $0x1038] sm:$0xff]
    %v551 = vld [vmem:[%s1 + $0x1040] sm:$0xff]
    %v552 = vld [vmem:[%s1 + $0x1048] sm:$0xff]
    %v553 = vld [vmem:[%s1 + $0x1050] sm:$0xff]
    %v554 = vld [vmem:[%s1 + $0x1058] sm:$0xff]
    %v555 = vld [vmem:[%s1 + $0x1060] sm:$0xff]
    %v556 = vld [vmem:[%s1 + $0x1068] sm:$0xff]
    %v557 = vld [vmem:[%s1 + $0x1070] sm:$0xff]
    %v558 = vld [vmem:[%s1 + $0x1078] sm:$0xff]
    %v559 = vld [vmem:[%s1 + $0x1080] sm:$0xff]
    %v560 = vld [vmem:[%s1 + $0x1088] sm:$0xff]
    %v561 = vld [vmem:[%s1 + $0x1090] sm:$0xff]
    %v562 = vld [vmem:[%s1 + $0x1098] sm:$0xff]
    %v563 = vld [vmem:[%s1 + $0x10a0] sm:$0xff]
    %v564 = vld [vmem:[%s1 + $0x10a8] sm:$0xff]
    %v565 = vld [vmem:[%s1 + $0x10b0] sm:$0xff]
    %v566 = vld [vmem:[%s1 + $0x10b8] sm:$0xff]
    %v567 = vld [vmem:[%s1 + $0x10c0] sm:$0xff]
    %v568 = vld [vmem:[%s1 + $0x10c8] sm:$0xff]
    %v569 = vld [vmem:[%s1 + $0x10d0] sm:$0xff]
    %v570 = vld [vmem:[%s1 + $0x10d8] sm:$0xff]
    %v571 = vld [vmem:[%s1 + $0x10e0] sm:$0xff]
    %v572 = vld [vmem:[%s1 + $0x10e8] sm:$0xff]
    %v573 = vld [vmem:[%s1 + $0x10f0] sm:$0xff]
    %v574 = vld [vmem:[%s1 + $0x10f8] sm:$0xff]
    %v575 = vld [vmem:[%s1 + $0x1100] sm:$0xff]
    %v576 = vld [vmem:[%s1 + $0x1108] sm:$0xff]
    %v577 = vld [vmem:[%s1 + $0x1110] sm:$0xff]
    %v578 = vld [vmem:[%s1 + $0x1118] sm:$0xff]
    %v579 = vld [vmem:[%s1 + $0x1120] sm:$0xff]
    %v580 = vld [vmem:[%s1 + $0x1128] sm:$0xff]
    %v581 = vld [vmem:[%s1 + $0x1130] sm:$0xff]
    %v582 = vld [vmem:[%s1 + $0x1138] sm:$0xff]
    %v583 = vld [vmem:[%s1 + $0x1140] sm:$0xff]
    %v584 = vld [vmem:[%s1 + $0x1148] sm:$0xff]
    %v585 = vld [vmem:[%s1 + $0x1150] sm:$0xff]
    %v586 = vld [vmem:[%s1 + $0x1158] sm:$0xff]
    %v587 = vld [vmem:[%s1 + $0x1160] sm:$0xff]
    %v588 = vld [vmem:[%s1 + $0x1168] sm:$0xff]
    %v589 = vld [vmem:[%s1 + $0x1170] sm:$0xff]
    %v590 = vld [vmem:[%s1 + $0x1178] sm:$0xff]
    %v591 = vld [vmem:[%s1 + $0x1180] sm:$0xff]
    %v592 = vld [vmem:[%s1 + $0x1188] sm:$0xff]
    %v593 = vld [vmem:[%s1 + $0x1190] sm:$0xff]
    %v594 = vld [vmem:[%s1 + $0x1198] sm:$0xff]
    %v595 = vld [vmem:[%s1 + $0x11a0] sm:$0xff]
    %v596 = vld [vmem:[%s1 + $0x11a8] sm:$0xff]
    %v597 = vld [vmem:[%s1 + $0x11b0] sm:$0xff]
    %v598 = vld [vmem:[%s1 + $0x11b8] sm:$0xff]
    %v599 = vld [vmem:[%s1 + $0x11c0] sm:$0xff]
    %v600 = vld [vmem:[%s1 + $0x11c8] sm:$0xff]
    %v601 = vld [vmem:[%s1 + $0x11d0] sm:$0xff]
    %v602 = vld [vmem:[%s1 + $0x11d8] sm:$0xff]
    %v603 = vld [vmem:[%s1 + $0x11e0] sm:$0xff]
    %v604 = vld [vmem:[%s1 + $0x11e8] sm:$0xff]
    %v605 = vld [vmem:[%s1 + $0x11f0] sm:$0xff]
    %v606 = vld [vmem:[%s1 + $0x11f8] sm:$0xff]
    %v607 = vld [vmem:[%s1 + $0x1200] sm:$0xff]
    %v608 = vld [vmem:[%s1 + $0x1208] sm:$0xff]
    %v609 = vld [vmem:[%s1 + $0x1210] sm:$0xff]
    %v610 = vld [vmem:[%s1 + $0x1218] sm:$0xff]
    %v611 = vld [vmem:[%s1 + $0x1220] sm:$0xff]
    %v612 = vld [vmem:[%s1 + $0x1228] sm:$0xff]
    %v613 = vld [vmem:[%s1 + $0x1230] sm:$0xff]
    %v614 = vld [vmem:[%s1 + $0x1238] sm:$0xff]
    %v615 = vld [vmem:[%s1 + $0x1240] sm:$0xff]
    %v616 = vld [vmem:[%s1 + $0x1248] sm:$0xff]
    %v617 = vld [vmem:[%s1 + $0x1250] sm:$0xff]
    %v618 = vld [vmem:[%s1 + $0x1258] sm:$0xff]
    %v619 = vld [vmem:[%s1 + $0x1260] sm:$0xff]
    %v620 = vld [vmem:[%s1 + $0x1268] sm:$0xff]
    %v621 = vld [vmem:[%s1 + $0x1270] sm:$0xff]
    %v622 = vld [vmem:[%s1 + $0x1278] sm:$0xff]
    %v623 = vld [vmem:[%s1 + $0x1280] sm:$0xff]
    %v624 = vld [vmem:[%s1 + $0x1288] sm:$0xff]
    %v625 = vld [vmem:[%s1 + $0x1290] sm:$0xff]
    %v626 = vld [vmem:[%s1 + $0x1298] sm:$0xff]
    %v627 = vld [vmem:[%s1 + $0x12a0] sm:$0xff]
    %v628 = vld [vmem:[%s1 + $0x12a8] sm:$0xff]
    %v629 = vld [vmem:[%s1 + $0x12b0] sm:$0xff]
    %v630 = vld [vmem:[%s1 + $0x12b8] sm:$0xff]
    %v631 = vld [vmem:[%s1 + $0x12c0] sm:$0xff]
    %v632 = vld [vmem:[%s1 + $0x12c8] sm:$0xff]
    %v633 = vld [vmem:[%s1 + $0x12d0] sm:$0xff]
    %v634 = vld [vmem:[%s1 + $0x12d8] sm:$0xff]
    %v635 = vld [vmem:[%s1 + $0x12e0] sm:$0xff]
    %v636 = vld [vmem:[%s1 + $0x12e8] sm:$0xff]
    %v637 = vld [vmem:[%s1 + $0x12f0] sm:$0xff]
    %v638 = vld [vmem:[%s1 + $0x12f8] sm:$0xff]
    %v639 = vld [vmem:[%s1 + $0x1300] sm:$0xff]
    %v640 = vld [vmem:[%s1 + $0x1308] sm:$0xff]
    %v641 = vld [vmem:[%s1 + $0x1310] sm:$0xff]
    %v642 = vld [vmem:[%s1 + $0x1318] sm:$0xff]
    %v643 = vld [vmem:[%s1 + $0x1320] sm:$0xff]
    %v644 = vld [vmem:[%s1 + $0x1328] sm:$0xff]
    %v645 = vld [vmem:[%s1 + $0x1330] sm:$0xff]
    %v646 = vld [vmem:[%s1 + $0x1338] sm:$0xff]
    %v647 = vld [vmem:[%s1 + $0x1340] sm:$0xff]
    %v648 = vld [vmem:[%s1 + $0x1348] sm:$0xff]
    %v649 = vld [vmem:[%s1 + $0x1350] sm:$0xff]
    %v650 = vld [vmem:[%s1 + $0x1358] sm:$0xff]
    %v651 = vld [vmem:[%s1 + $0x1360] sm:$0xff]
    %v652 = vld [vmem:[%s1 + $0x1368] sm:$0xff]
    %v653 = vld [vmem:[%s1 + $0x1370] sm:$0xff]
    %v654 = vld [vmem:[%s1 + $0x1378] sm:$0xff]
    %v655 = vld [vmem:[%s1 + $0x1380] sm:$0xff]
    %v656 = vld [vmem:[%s1 + $0x1388] sm:$0xff]
    %v657 = vld [vmem:[%s1 + $0x1390] sm:$0xff]
    %v658 = vld [vmem:[%s1 + $0x1398] sm:$0xff]
    %v659 = vld [vmem:[%s1 + $0x13a0] sm:$0xff]
    %v660 = vld [vmem:[%s1 + $0x13a8] sm:$0xff]
    %v661 = vld [vmem:[%s1 + $0x13b0] sm:$0xff]
    %v662 = vld [vmem:[%s1 + $0x13b8] sm:$0xff]
    %v663 = vld [vmem:[%s1 + $0x13c0] sm:$0xff]
    %v664 = vld [vmem:[%s1 + $0x13c8] sm:$0xff]
    %v665 = vld [vmem:[%s1 + $0x13d0] sm:$0xff]
    %v666 = vld [vmem:[%s1 + $0x13d8] sm:$0xff]
    %v667 = vld [vmem:[%s1 + $0x13e0] sm:$0xff]
    %v668 = vld [vmem:[%s1 + $0x13e8] sm:$0xff]
    %v669 = vld [vmem:[%s1 + $0x13f0] sm:$0xff]
    %v670 = vld [vmem:[%s1 + $0x13f8] sm:$0xff]
    %v671 = vld [vmem:[%s1 + $0x1400] sm:$0xff]
    %v672 = vld [vmem:[%s1 + $0x1408] sm:$0xff]
    %v673 = vld [vmem:[%s1 + $0x1410] sm:$0xff]
    %v674 = vld [vmem:[%s1 + $0x1418] sm:$0xff]
    %v675 = vld [vmem:[%s1 + $0x1420] sm:$0xff]
    %v676 = vld [vmem:[%s1 + $0x1428] sm:$0xff]
    %v677 = vld [vmem:[%s1 + $0x1430] sm:$0xff]
    %v678 = vld [vmem:[%s1 + $0x1438] sm:$0xff]
    %v679 = vld [vmem:[%s1 + $0x1440] sm:$0xff]
    %v680 = vld [vmem:[%s1 + $0x1448] sm:$0xff]
    %v681 = vld [vmem:[%s1 + $0x1450] sm:$0xff]
    %v682 = vld [vmem:[%s1 + $0x1458] sm:$0xff]
    %v683 = vld [vmem:[%s1 + $0x1460] sm:$0xff]
    %v684 = vld [vmem:[%s1 + $0x1468] sm:$0xff]
    %v685 = vld [vmem:[%s1 + $0x1470] sm:$0xff]
    %v686 = vld [vmem:[%s1 + $0x1478] sm:$0xff]
    %v687 = vld [vmem:[%s1 + $0x1480] sm:$0xff]
    %v688 = vld [vmem:[%s1 + $0x1488] sm:$0xff]
    %v689 = vld [vmem:[%s1 + $0x1490] sm:$0xff]
    %v690 = vld [vmem:[%s1 + $0x1498] sm:$0xff]
    %v691 = vld [vmem:[%s1 + $0x14a0] sm:$0xff]
    %v692 = vld [vmem:[%s1 + $0x14a8] sm:$0xff]
    %v693 = vld [vmem:[%s1 + $0x14b0] sm:$0xff]
    %v694 = vld [vmem:[%s1 + $0x14b8] sm:$0xff]
    %v695 = vld [vmem:[%s1 + $0x14c0] sm:$0xff]
    %v696 = vld [vmem:[%s1 + $0x14c8] sm:$0xff]
    %v697 = vld [vmem:[%s1 + $0x14d0] sm:$0xff]
    %v698 = vld [vmem:[%s1 + $0x14d8] sm:$0xff]
    %v699 = vld [vmem:[%s1 + $0x14e0] sm:$0xff]
    %v700 = vld [vmem:[%s1 + $0x14e8] sm:$0xff]
    %v701 = vld [vmem:[%s1 + $0x14f0] sm:$0xff]
    %v702 = vld [vmem:[%s1 + $0x14f8] sm:$0xff]
    %v703 = vld [vmem:[%s1 + $0x1500] sm:$0xff]
    %v704 = vld [vmem:[%s1 + $0x1508] sm:$0xff]
    %v705 = vld [vmem:[%s1 + $0x1510] sm:$0xff]
    %v706 = vld [vmem:[%s1 + $0x1518] sm:$0xff]
    %v707 = vld [vmem:[%s1 + $0x1520] sm:$0xff]
    %v708 = vld [vmem:[%s1 + $0x1528] sm:$0xff]
    %v709 = vld [vmem:[%s1 + $0x1530] sm:$0xff]
    %v710 = vld [vmem:[%s1 + $0x1538] sm:$0xff]
    %v711 = vld [vmem:[%s1 + $0x1540] sm:$0xff]
    %v712 = vld [vmem:[%s1 + $0x1548] sm:$0xff]
    %v713 = vld [vmem:[%s1 + $0x1550] sm:$0xff]
    %v714 = vld [vmem:[%s1 + $0x1558] sm:$0xff]
    %v715 = vld [vmem:[%s1 + $0x1560] sm:$0xff]
    %v716 = vld [vmem:[%s1 + $0x1568] sm:$0xff]
    %v717 = vld [vmem:[%s1 + $0x1570] sm:$0xff]
    %v718 = vld [vmem:[%s1 + $0x1578] sm:$0xff]
    %v719 = vld [vmem:[%s1 + $0x1580] sm:$0xff]
    %v720 = vld [vmem:[%s1 + $0x1588] sm:$0xff]
    %v721 = vld [vmem:[%s1 + $0x1590] sm:$0xff]
    %v722 = vld [vmem:[%s1 + $0x1598] sm:$0xff]
    %v723 = vld [vmem:[%s1 + $0x15a0] sm:$0xff]
    %v724 = vld [vmem:[%s1 + $0x15a8] sm:$0xff]
    %v725 = vld [vmem:[%s1 + $0x15b0] sm:$0xff]
    %v726 = vld [vmem:[%s1 + $0x15b8] sm:$0xff]
    %v727 = vld [vmem:[%s1 + $0x15c0] sm:$0xff]
    %v728 = vld [vmem:[%s1 + $0x15c8] sm:$0xff]
    %v729 = vld [vmem:[%s1 + $0x15d0] sm:$0xff]
    %v730 = vld [vmem:[%s1 + $0x15d8] sm:$0xff]
    %v731 = vld [vmem:[%s1 + $0x15e0] sm:$0xff]
    %v732 = vld [vmem:[%s1 + $0x15e8] sm:$0xff]
    %v733 = vld [vmem:[%s1 + $0x15f0] sm:$0xff]
    %v734 = vld [vmem:[%s1 + $0x15f8] sm:$0xff]
    %v735 = vld [vmem:[%s1 + $0x1600] sm:$0xff]
    %v736 = vld [vmem:[%s1 + $0x1608] sm:$0xff]
    %v737 = vld [vmem:[%s1 + $0x1610] sm:$0xff]
    %v738 = vld [vmem:[%s1 + $0x1618] sm:$0xff]
    %v739 = vld [vmem:[%s1 + $0x1620] sm:$0xff]
    %v740 = vld [vmem:[%s1 + $0x1628] sm:$0xff]
    %v741 = vld [vmem:[%s1 + $0x1630] sm:$0xff]
    %v742 = vld [vmem:[%s1 + $0x1638] sm:$0xff]
    %v743 = vld [vmem:[%s1 + $0x1640] sm:$0xff]
    %v744 = vld [vmem:[%s1 + $0x1648] sm:$0xff]
    %v745 = vld [vmem:[%s1 + $0x1650] sm:$0xff]
    %v746 = vld [vmem:[%s1 + $0x1658] sm:$0xff]
    %v747 = vld [vmem:[%s1 + $0x1660] sm:$0xff]
    %v748 = vld [vmem:[%s1 + $0x1668] sm:$0xff]
    %v749 = vld [vmem:[%s1 + $0x1670] sm:$0xff]
    %v750 = vld [vmem:[%s1 + $0x1678] sm:$0xff]
    %v751 = vld [vmem:[%s1 + $0x1680] sm:$0xff]
    %v752 = vld [vmem:[%s1 + $0x1688] sm:$0xff]
    %v753 = vld [vmem:[%s1 + $0x1690] sm:$0xff]
    %v754 = vld [vmem:[%s1 + $0x1698] sm:$0xff]
    %v755 = vld [vmem:[%s1 + $0x16a0] sm:$0xff]
    %v756 = vld [vmem:[%s1 + $0x16a8] sm:$0xff]
    %v757 = vld [vmem:[%s1 + $0x16b0] sm:$0xff]
    %v758 = vld [vmem:[%s1 + $0x16b8] sm:$0xff]
    %v759 = vld [vmem:[%s1 + $0x16c0] sm:$0xff]
    %v760 = vld [vmem:[%s1 + $0x16c8] sm:$0xff]
    %v761 = vld [vmem:[%s1 + $0x16d0] sm:$0xff]
    %v762 = vld [vmem:[%s1 + $0x16d8] sm:$0xff]
    %v763 = vld [vmem:[%s1 + $0x16e0] sm:$0xff]
    %v764 = vld [vmem:[%s1 + $0x16e8] sm:$0xff]
    %v765 = vld [vmem:[%s1 + $0x16f0] sm:$0xff]
    %v766 = vld [vmem:[%s1 + $0x16f8] sm:$0xff]
    %v767 = vld [vmem:[%s1 + $0x1700] sm:$0xff]
    %v768 = vld [vmem:[%s1 + $0x1708] sm:$0xff]
    %v769 = vld [vmem:[%s1 + $0x1710] sm:$0xff]
    %v770 = vld [vmem:[%s1 + $0x1718] sm:$0xff]
    %v771 = vld [vmem:[%s1 + $0x1720] sm:$0xff]
    %v772 = vld [vmem:[%s1 + $0x1728] sm:$0xff]
    %v773 = vld [vmem:[%s1 + $0x1730] sm:$0xff]
    %v774 = vld [vmem:[%s1 + $0x1738] sm:$0xff]
    %v775 = vld [vmem:[%s1 + $0x1740] sm:$0xff]
    %v776 = vld [vmem:[%s1 + $0x1748] sm:$0xff]
    %v777 = vld [vmem:[%s1 + $0x1750] sm:$0xff]
    %v778 = vld [vmem:[%s1 + $0x1758] sm:$0xff]
    %v779 = vld [vmem:[%s1 + $0x1760] sm:$0xff]
    %v780 = vld [vmem:[%s1 + $0x1768] sm:$0xff]
    %v781 = vld [vmem:[%s1 + $0x1770] sm:$0xff]
    %v782 = vld [vmem:[%s1 + $0x1778] sm:$0xff]
    %v783 = vld [vmem:[%s1 + $0x1780] sm:$0xff]
    %v784 = vld [vmem:[%s1 + $0x1788] sm:$0xff]
    %v785 = vld [vmem:[%s1 + $0x1790] sm:$0xff]
    %v786 = vld [vmem:[%s1 + $0x1798] sm:$0xff]
    %v787 = vld [vmem:[%s1 + $0x17a0] sm:$0xff]
    %v788 = vld [vmem:[%s1 + $0x17a8] sm:$0xff]
    %v789 = vld [vmem:[%s1 + $0x17b0] sm:$0xff]
    %v790 = vld [vmem:[%s1 + $0x17b8] sm:$0xff]
    %v791 = vld [vmem:[%s1 + $0x17c0] sm:$0xff]
    %v792 = vld [vmem:[%s1 + $0x17c8] sm:$0xff]
    %v793 = vld [vmem:[%s1 + $0x17d0] sm:$0xff]
    %v794 = vld [vmem:[%s1 + $0x17d8] sm:$0xff]
    %v795 = vld [vmem:[%s1 + $0x17e0] sm:$0xff]
    %v796 = vld [vmem:[%s1 + $0x17e8] sm:$0xff]
    %v797 = vld [vmem:[%s1 + $0x17f0] sm:$0xff]
    %v798 = vld [vmem:[%s1 + $0x17f8] sm:$0xff]
    %v799 = vld [vmem:[%s1 + $0x1800] sm:$0xff]
    %v800 = vld [vmem:[%s1 + $0x1808] sm:$0xff]
    %v801 = vld [vmem:[%s1 + $0x1810] sm:$0xff]
    %v802 = vld [vmem:[%s1 + $0x1818] sm:$0xff]
    %v803 = vld [vmem:[%s1 + $0x1820] sm:$0xff]
    %v804 = vld [vmem:[%s1 + $0x1828] sm:$0xff]
    %v805 = vld [vmem:[%s1 + $0x1830] sm:$0xff]
    %v806 = vld [vmem:[%s1 + $0x1838] sm:$0xff]
    %v807 = vld [vmem:[%s1 + $0x1840] sm:$0xff]
    %v808 = vld [vmem:[%s1 + $0x1848] sm:$0xff]
    %v809 = vld [vmem:[%s1 + $0x1850] sm:$0xff]
    %v810 = vld [vmem:[%s1 + $0x1858] sm:$0xff]
    %v811 = vld [vmem:[%s1 + $0x1860] sm:$0xff]
    %v812 = vld [vmem:[%s1 + $0x1868] sm:$0xff]
    %v813 = vld [vmem:[%s1 + $0x1870] sm:$0xff]
    %v814 = vld [vmem:[%s1 + $0x1878] sm:$0xff]
    %v815 = vld [vmem:[%s1 + $0x1880] sm:$0xff]
    %v816 = vld [vmem:[%s1 + $0x1888] sm:$0xff]
    %v817 = vld [vmem:[%s1 + $0x1890] sm:$0xff]
    %v818 = vld [vmem:[%s1 + $0x1898] sm:$0xff]
    %v819 = vld [vmem:[%s1 + $0x18a0] sm:$0xff]
    %v820 = vld [vmem:[%s1 + $0x18a8] sm:$0xff]
    %v821 = vld [vmem:[%s1 + $0x18b0] sm:$0xff]
    %v822 = vld [vmem:[%s1 + $0x18b8] sm:$0xff]
    %v823 = vld [vmem:[%s1 + $0x18c0] sm:$0xff]
    %v824 = vld [vmem:[%s1 + $0x18c8] sm:$0xff]
    %v825 = vld [vmem:[%s1 + $0x18d0] sm:$0xff]
    %v826 = vld [vmem:[%s1 + $0x18d8] sm:$0xff]
    %v827 = vld [vmem:[%s1 + $0x18e0] sm:$0xff]
    %v828 = vld [vmem:[%s1 + $0x18e8] sm:$0xff]
    %v829 = vld [vmem:[%s1 + $0x18f0] sm:$0xff]
    %v830 = vld [vmem:[%s1 + $0x18f8] sm:$0xff]
    %v831 = vld [vmem:[%s1 + $0x1900] sm:$0xff]
    %v832 = vld [vmem:[%s1 + $0x1908] sm:$0xff]
    %v833 = vld [vmem:[%s1 + $0x1910] sm:$0xff]
    %v834 = vld [vmem:[%s1 + $0x1918] sm:$0xff]
    %v835 = vld [vmem:[%s1 + $0x1920] sm:$0xff]
    %v836 = vld [vmem:[%s1 + $0x1928] sm:$0xff]
    %v837 = vld [vmem:[%s1 + $0x1930] sm:$0xff]
    %v838 = vld [vmem:[%s1 + $0x1938] sm:$0xff]
    %v839 = vld [vmem:[%s1 + $0x1940] sm:$0xff]
    %v840 = vld [vmem:[%s1 + $0x1948] sm:$0xff]
    %v841 = vld [vmem:[%s1 + $0x1950] sm:$0xff]
    %v842 = vld [vmem:[%s1 + $0x1958] sm:$0xff]
    %v843 = vld [vmem:[%s1 + $0x1960] sm:$0xff]
    %v844 = vld [vmem:[%s1 + $0x1968] sm:$0xff]
    %v845 = vld [vmem:[%s1 + $0x1970] sm:$0xff]
    %v846 = vld [vmem:[%s1 + $0x1978] sm:$0xff]
    %v847 = vld [vmem:[%s1 + $0x1980] sm:$0xff]
    %v848 = vld [vmem:[%s1 + $0x1988] sm:$0xff]
    %v849 = vld [vmem:[%s1 + $0x1990] sm:$0xff]
    %v850 = vld [vmem:[%s1 + $0x1998] sm:$0xff]
    %v851 = vld [vmem:[%s1 + $0x19a0] sm:$0xff]
    %v852 = vld [vmem:[%s1 + $0x19a8] sm:$0xff]
    %v853 = vld [vmem:[%s1 + $0x19b0] sm:$0xff]
    %v854 = vld [vmem:[%s1 + $0x19b8] sm:$0xff]
    %v855 = vld [vmem:[%s1 + $0x19c0] sm:$0xff]
    %v856 = vld [vmem:[%s1 + $0x19c8] sm:$0xff]
    %v857 = vld [vmem:[%s1 + $0x19d0] sm:$0xff]
    %v858 = vld [vmem:[%s1 + $0x19d8] sm:$0xff]
    %v859 = vld [vmem:[%s1 + $0x19e0] sm:$0xff]
    %v860 = vld [vmem:[%s1 + $0x19e8] sm:$0xff]
    %v861 = vld [vmem:[%s1 + $0x19f0] sm:$0xff]
    %v862 = vld [vmem:[%s1 + $0x19f8] sm:$0xff]
    %v863 = vld [vmem:[%s1 + $0x1a00] sm:$0xff]
    %v864 = vld [vmem:[%s1 + $0x1a08] sm:$0xff]
    %v865 = vld [vmem:[%s1 + $0x1a10] sm:$0xff]
    %v866 = vld [vmem:[%s1 + $0x1a18] sm:$0xff]
    %v867 = vld [vmem:[%s1 + $0x1a20] sm:$0xff]
    %v868 = vld [vmem:[%s1 + $0x1a28] sm:$0xff]
    %v869 = vld [vmem:[%s1 + $0x1a30] sm:$0xff]
    %v870 = vld [vmem:[%s1 + $0x1a38] sm:$0xff]
    %v871 = vld [vmem:[%s1 + $0x1a40] sm:$0xff]
    %v872 = vld [vmem:[%s1 + $0x1a48] sm:$0xff]
    %v873 = vld [vmem:[%s1 + $0x1a50] sm:$0xff]
    %v874 = vld [vmem:[%s1 + $0x1a58] sm:$0xff]
    %v875 = vld [vmem:[%s1 + $0x1a60] sm:$0xff]
    %v876 = vld [vmem:[%s1 + $0x1a68] sm:$0xff]
    %v877 = vld [vmem:[%s1 + $0x1a70] sm:$0xff]
    %v878 = vld [vmem:[%s1 + $0x1a78] sm:$0xff]
    %v879 = vld [vmem:[%s1 + $0x1a80] sm:$0xff]
    %v880 = vld [vmem:[%s1 + $0x1a88] sm:$0xff]
    %v881 = vld [vmem:[%s1 + $0x1a90] sm:$0xff]
    %v882 = vld [vmem:[%s1 + $0x1a98] sm:$0xff]
    %v883 = vld [vmem:[%s1 + $0x1aa0] sm:$0xff]
    %v884 = vld [vmem:[%s1 + $0x1aa8] sm:$0xff]
    %v885 = vld [vmem:[%s1 + $0x1ab0] sm:$0xff]
    %v886 = vld [vmem:[%s1 + $0x1ab8] sm:$0xff]
    %v887 = vld [vmem:[%s1 + $0x1ac0] sm:$0xff]
    %v888 = vld [vmem:[%s1 + $0x1ac8] sm:$0xff]
    %v889 = vld [vmem:[%s1 + $0x1ad0] sm:$0xff]
    %v890 = vld [vmem:[%s1 + $0x1ad8] sm:$0xff]
    %v891 = vld [vmem:[%s1 + $0x1ae0] sm:$0xff]
    %v892 = vld [vmem:[%s1 + $0x1ae8] sm:$0xff]
    %v893 = vld [vmem:[%s1 + $0x1af0] sm:$0xff]
    %v894 = vld [vmem:[%s1 + $0x1af8] sm:$0xff]
    %v895 = vld [vmem:[%s1 + $0x1b00] sm:$0xff]
    %v896 = vld [vmem:[%s1 + $0x1b08] sm:$0xff]
    %v897 = vld [vmem:[%s1 + $0x1b10] sm:$0xff]
    %v898 = vld [vmem:[%s1 + $0x1b18] sm:$0xff]
    %v899 = vld [vmem:[%s1 + $0x1b20] sm:$0xff]
    %v900 = vld [vmem:[%s1 + $0x1b28] sm:$0xff]
    %v901 = vld [vmem:[%s1 + $0x1b30] sm:$0xff]
    %v902 = vld [vmem:[%s1 + $0x1b38] sm:$0xff]
    %v903 = vld [vmem:[%s1 + $0x1b40] sm:$0xff]
    %v904 = vld [vmem:[%s1 + $0x1b48] sm:$0xff]
    %v905 = vld [vmem:[%s1 + $0x1b50] sm:$0xff]
    %v906 = vld [vmem:[%s1 + $0x1b58] sm:$0xff]
    %v907 = vld [vmem:[%s1 + $0x1b60] sm:$0xff]
    %v908 = vld [vmem:[%s1 + $0x1b68] sm:$0xff]
    %v909 = vld [vmem:[%s1 + $0x1b70] sm:$0xff]
    %v910 = vld [vmem:[%s1 + $0x1b78] sm:$0xff]
    %v911 = vld [vmem:[%s1 + $0x1b80] sm:$0xff]
    %v912 = vld [vmem:[%s1 + $0x1b88] sm:$0xff]
    %v913 = vld [vmem:[%s1 + $0x1b90] sm:$0xff]
    %v914 = vld [vmem:[%s1 + $0x1b98] sm:$0xff]
    %v915 = vld [vmem:[%s1 + $0x1ba0] sm:$0xff]
    %v916 = vld [vmem:[%s1 + $0x1ba8] sm:$0xff]
    %v917 = vld [vmem:[%s1 + $0x1bb0] sm:$0xff]
    %v918 = vld [vmem:[%s1 + $0x1bb8] sm:$0xff]
    %v919 = vld [vmem:[%s1 + $0x1bc0] sm:$0xff]
    %v920 = vld [vmem:[%s1 + $0x1bc8] sm:$0xff]
    %v921 = vld [vmem:[%s1 + $0x1bd0] sm:$0xff]
    %v922 = vld [vmem:[%s1 + $0x1bd8] sm:$0xff]
    %v923 = vld [vmem:[%s1 + $0x1be0] sm:$0xff]
    %v924 = vld [vmem:[%s1 + $0x1be8] sm:$0xff]
    %v925 = vld [vmem:[%s1 + $0x1bf0] sm:$0xff]
    %v926 = vld [vmem:[%s1 + $0x1bf8] sm:$0xff]
    %v927 = vld [vmem:[%s1 + $0x1c00] sm:$0xff]
    %v928 = vld [vmem:[%s1 + $0x1c08] sm:$0xff]
    %v929 = vld [vmem:[%s1 + $0x1c10] sm:$0xff]
    %v930 = vld [vmem:[%s1 + $0x1c18] sm:$0xff]
    %v931 = vld [vmem:[%s1 + $0x1c20] sm:$0xff]
    %v932 = vld [vmem:[%s1 + $0x1c28] sm:$0xff]
    %v933 = vld [vmem:[%s1 + $0x1c30] sm:$0xff]
    %v934 = vld [vmem:[%s1 + $0x1c38] sm:$0xff]
    %v935 = vld [vmem:[%s1 + $0x1c40] sm:$0xff]
    %v936 = vld [vmem:[%s1 + $0x1c48] sm:$0xff]
    %v937 = vld [vmem:[%s1 + $0x1c50] sm:$0xff]
    %v938 = vld [vmem:[%s1 + $0x1c58] sm:$0xff]
    %v939 = vld [vmem:[%s1 + $0x1c60] sm:$0xff]
    %v940 = vld [vmem:[%s1 + $0x1c68] sm:$0xff]
    %v941 = vld [vmem:[%s1 + $0x1c70] sm:$0xff]
    %v942 = vld [vmem:[%s1 + $0x1c78] sm:$0xff]
    %v943 = vld [vmem:[%s1 + $0x1c80] sm:$0xff]
    %v944 = vld [vmem:[%s1 + $0x1c88] sm:$0xff]
    %v945 = vld [vmem:[%s1 + $0x1c90] sm:$0xff]
    %v946 = vld [vmem:[%s1 + $0x1c98] sm:$0xff]
    %v947 = vld [vmem:[%s1 + $0x1ca0] sm:$0xff]
    %v948 = vld [vmem:[%s1 + $0x1ca8] sm:$0xff]
    %v949 = vld [vmem:[%s1 + $0x1cb0] sm:$0xff]
    %v950 = vld [vmem:[%s1 + $0x1cb8] sm:$0xff]
    %v951 = vld [vmem:[%s1 + $0x1cc0] sm:$0xff]
    %v952 = vld [vmem:[%s1 + $0x1cc8] sm:$0xff]
    %v953 = vld [vmem:[%s1 + $0x1cd0] sm:$0xff]
    %v954 = vld [vmem:[%s1 + $0x1cd8] sm:$0xff]
    %v955 = vld [vmem:[%s1 + $0x1ce0] sm:$0xff]
    %v956 = vld [vmem:[%s1 + $0x1ce8] sm:$0xff]
    %v957 = vld [vmem:[%s1 + $0x1cf0] sm:$0xff]
    %v958 = vld [vmem:[%s1 + $0x1cf8] sm:$0xff]
    %v959 = vld [vmem:[%s1 + $0x1d00] sm:$0xff]
    %v960 = vld [vmem:[%s1 + $0x1d08] sm:$0xff]
    %v961 = vld [vmem:[%s1 + $0x1d10] sm:$0xff]
    %v962 = vld [vmem:[%s1 + $0x1d18] sm:$0xff]
    %v963 = vld [vmem:[%s1 + $0x1d20] sm:$0xff]
    %v964 = vld [vmem:[%s1 + $0x1d28] sm:$0xff]
    %v965 = vld [vmem:[%s1 + $0x1d30] sm:$0xff]
    %v966 = vld [vmem:[%s1 + $0x1d38] sm:$0xff]
    %v967 = vld [vmem:[%s1 + $0x1d40] sm:$0xff]
    %v968 = vld [vmem:[%s1 + $0x1d48] sm:$0xff]
    %v969 = vld [vmem:[%s1 + $0x1d50] sm:$0xff]
    %v970 = vld [vmem:[%s1 + $0x1d58] sm:$0xff]
    %v971 = vld [vmem:[%s1 + $0x1d60] sm:$0xff]
    %v972 = vld [vmem:[%s1 + $0x1d68] sm:$0xff]
    %v973 = vld [vmem:[%s1 + $0x1d70] sm:$0xff]
    %v974 = vld [vmem:[%s1 + $0x1d78] sm:$0xff]
    %v975 = vld [vmem:[%s1 + $0x1d80] sm:$0xff]
    %v976 = vld [vmem:[%s1 + $0x1d88] sm:$0xff]
    %v977 = vld [vmem:[%s1 + $0x1d90] sm:$0xff]
    %v978 = vld [vmem:[%s1 + $0x1d98] sm:$0xff]
    %v979 = vld [vmem:[%s1 + $0x1da0] sm:$0xff]
    %v980 = vld [vmem:[%s1 + $0x1da8] sm:$0xff]
    %v981 = vld [vmem:[%s1 + $0x1db0] sm:$0xff]
    %v982 = vld [vmem:[%s1 + $0x1db8] sm:$0xff]
    %v983 = vld [vmem:[%s1 + $0x1dc0] sm:$0xff]
    %v984 = vld [vmem:[%s1 + $0x1dc8] sm:$0xff]
    %v985 = vld [vmem:[%s1 + $0x1dd0] sm:$0xff]
    %v986 = vld [vmem:[%s1 + $0x1dd8] sm:$0xff]
    %v987 = vld [vmem:[%s1 + $0x1de0] sm:$0xff]
    %v988 = vld [vmem:[%s1 + $0x1de8] sm:$0xff]
    %v989 = vld [vmem:[%s1 + $0x1df0] sm:$0xff]
    %v990 = vld [vmem:[%s1 + $0x1df8] sm:$0xff]
    %v991 = vld [vmem:[%s1 + $0x1e00] sm:$0xff]
    %v992 = vld [vmem:[%s1 + $0x1e08] sm:$0xff]
    %v993 = vld [vmem:[%s1 + $0x1e10] sm:$0xff]
    %v994 = vld [vmem:[%s1 + $0x1e18] sm:$0xff]
    %v995 = vld [vmem:[%s1 + $0x1e20] sm:$0xff]
    %v996 = vld [vmem:[%s1 + $0x1e28] sm:$0xff]
    %v997 = vld [vmem:[%s1 + $0x1e30] sm:$0xff]
    %v998 = vld [vmem:[%s1 + $0x1e38] sm:$0xff]
    %v999 = vld [vmem:[%s1 + $0x1e40] sm:$0xff]
    %v1000 = vld [vmem:[%s1 + $0x1e48] sm:$0xff]
    %v1001 = vld [vmem:[%s1 + $0x1e50] sm:$0xff]
    %v1002 = vld [vmem:[%s1 + $0x1e58] sm:$0xff]
    %v1003 = vld [vmem:[%s1 + $0x1e60] sm:$0xff]
    %v1004 = vld [vmem:[%s1 + $0x1e68] sm:$0xff]
    %v1005 = vld [vmem:[%s1 + $0x1e70] sm:$0xff]
    %v1006 = vld [vmem:[%s1 + $0x1e78] sm:$0xff]
    %v1007 = vld [vmem:[%s1 + $0x1e80] sm:$0xff]
    %v1008 = vld [vmem:[%s1 + $0x1e88] sm:$0xff]
    %v1009 = vld [vmem:[%s1 + $0x1e90] sm:$0xff]
    %v1010 = vld [vmem:[%s1 + $0x1e98] sm:$0xff]
    %v1011 = vld [vmem:[%s1 + $0x1ea0] sm:$0xff]
    %v1012 = vld [vmem:[%s1 + $0x1ea8] sm:$0xff]
    %v1013 = vld [vmem:[%s1 + $0x1eb0] sm:$0xff]
    %v1014 = vld [vmem:[%s1 + $0x1eb8] sm:$0xff]
    %v1015 = vld [vmem:[%s1 + $0x1ec0] sm:$0xff]
    %v1016 = vld [vmem:[%s1 + $0x1ec8] sm:$0xff]
    %v1017 = vld [vmem:[%s1 + $0x1ed0] sm:$0xff]
    %v1018 = vld [vmem:[%s1 + $0x1ed8] sm:$0xff]
    %v1019 = vld [vmem:[%s1 + $0x1ee0] sm:$0xff]
    %v1020 = vld [vmem:[%s1 + $0x1ee8] sm:$0xff]
    %v1021 = vld [vmem:[%s1 + $0x1ef0] sm:$0xff]
    %v1022 = vld [vmem:[%s1 + $0x1ef8] sm:$0xff]
    %v1023 = vld [vmem:[%s1 + $0x1f00] sm:$0xff]
    %v1024 = vld [vmem:[%s1 + $0x1f08] sm:$0xff]
    %v1025 = vld [vmem:[%s1 + $0x1f10] sm:$0xff]
    %v1026 = vld [vmem:[%s1 + $0x1f18] sm:$0xff]
    %v1027 = vld [vmem:[%s1 + $0x1f20] sm:$0xff]
    %v1028 = vld [vmem:[%s1 + $0x1f28] sm:$0xff]
    %v1029 = vld [vmem:[%s1 + $0x1f30] sm:$0xff]
    %v1030 = vld [vmem:[%s1 + $0x1f38] sm:$0xff]
    %v1031 = vld [vmem:[%s1 + $0x1f40] sm:$0xff]
    %v1032 = vld [vmem:[%s1 + $0x1f48] sm:$0xff]
    %v1033 = vld [vmem:[%s1 + $0x1f50] sm:$0xff]
    %v1034 = vld [vmem:[%s1 + $0x1f58] sm:$0xff]
    %v1035 = vld [vmem:[%s1 + $0x1f60] sm:$0xff]
    %v1036 = vld [vmem:[%s1 + $0x1f68] sm:$0xff]
    %v1037 = vld [vmem:[%s1 + $0x1f70] sm:$0xff]
    %v1038 = vld [vmem:[%s1 + $0x1f78] sm:$0xff]
    %v1039 = vld [vmem:[%s1 + $0x1f80] sm:$0xff]
    %v1040 = vld [vmem:[%s1 + $0x1f88] sm:$0xff]
    %v1041 = vld [vmem:[%s1 + $0x1f90] sm:$0xff]
    %v1042 = vld [vmem:[%s1 + $0x1f98] sm:$0xff]
    %v1043 = vld [vmem:[%s1 + $0x1fa0] sm:$0xff]
    %v1044 = vld [vmem:[%s1 + $0x1fa8] sm:$0xff]
    %v1045 = vld [vmem:[%s1 + $0x1fb0] sm:$0xff]
    %v1046 = vld [vmem:[%s1 + $0x1fb8] sm:$0xff]
    %v1047 = vld [vmem:[%s1 + $0x1fc0] sm:$0xff]
    %v1048 = vld [vmem:[%s1 + $0x1fc8] sm:$0xff]
    %v1049 = vld [vmem:[%s1 + $0x1fd0] sm:$0xff]
    %v1050 = vld [vmem:[%s1 + $0x1fd8] sm:$0xff]
    %v1051 = vld [vmem:[%s1 + $0x1fe0] sm:$0xff]
    %v1052 = vld [vmem:[%s1 + $0x1fe8] sm:$0xff]
    %v1053 = vld [vmem:[%s1 + $0x1ff0] sm:$0xff]
    %v1054 = vld [vmem:[%s1 + $0x1ff8] sm:$0xff]
    %v1055 = vld [vmem:[%s2] sm:$0xff]
    %v1057 = vlaneseq
    %v1058 = vshrl.u32 %v1057, 7
    %v1059 = vsub.s32 0, %v1058
    %v1060 = vrot.slane %v1055, %v1059
    %v1061 = vlaneseq
    %v1062 = vshrl.u32 %v1061, 7
    %v1063 = vsub.s32 1, %v1062
    %v1064 = vrot.slane %v1055, %v1063
    %v1065 = vlaneseq
    %v1066 = vshrl.u32 %v1065, 7
    %v1067 = vsub.s32 2, %v1066
    %v1068 = vrot.slane %v1055, %v1067
    %v1069 = vlaneseq
    %v1070 = vshrl.u32 %v1069, 7
    %v1071 = vsub.s32 3, %v1070
    %v1072 = vrot.slane %v1055, %v1071
    %v1073 = vlaneseq
    %v1074 = vshrl.u32 %v1073, 7
    %v1075 = vsub.s32 4, %v1074
    %v1076 = vrot.slane %v1055, %v1075
    %v1077 = vlaneseq
    %v1078 = vshrl.u32 %v1077, 7
    %v1079 = vsub.s32 5, %v1078
    %v1080 = vrot.slane %v1055, %v1079
    %v1081 = vlaneseq
    %v1082 = vshrl.u32 %v1081, 7
    %v1083 = vsub.s32 6, %v1082
    %v1084 = vrot.slane %v1055, %v1083
    %v1085 = vlaneseq
    %v1086 = vshrl.u32 %v1085, 7
    %v1087 = vsub.s32 7, %v1086
    %v1088 = vrot.slane %v1055, %v1087
    %v1099 = vcombine.high %v29, %v29
    %v1101 = vunpack.c.l.s4 1983009808
    %v1102 = vunpack.c.0.s8 %v1101
    %v1103 = vlaneseq
    %v1104 = vshrl.u32 %v1103, 7
    %v1105 = vsub.s32 %v1102, %v1104
    %v1106 = vrot.slane %v29, %v1105
    %v1108 = vunpack.c.l.s4 1983009808
    %v1109 = vunpack.c.0.s8 %v1108
    %v1110 = vlaneseq
    %v1111 = vshrl.u32 %v1110, 7
    %v1112 = vsub.s32 %v1109, %v1111
    %v1113 = vrot.slane %v1099, %v1112
    %v1114 = vcombine.high %v1106, %v1106
    %v1115 = vcombine.high %v1113, %v1113
    %v1116 = vcombine.high %v30, %v30
    %v1118 = vunpack.c.l.s4 1983009808
    %v1119 = vunpack.c.0.s8 %v1118
    %v1120 = vlaneseq
    %v1121 = vshrl.u32 %v1120, 7
    %v1122 = vsub.s32 %v1119, %v1121
    %v1123 = vrot.slane %v30, %v1122
    %v1125 = vunpack.c.l.s4 1983009808
    %v1126 = vunpack.c.0.s8 %v1125
    %v1127 = vlaneseq
    %v1128 = vshrl.u32 %v1127, 7
    %v1129 = vsub.s32 %v1126, %v1128
    %v1130 = vrot.slane %v1116, %v1129
    %v1131 = vcombine.high %v1123, %v1123
    %v1132 = vcombine.high %v1130, %v1130
    %1141 = vmatprep.subr.mxu0 %v152
    %1142 = vmatpush1.msra.mxu0 %v151
    %1143 = vmatprep.subr.mxu0 %v144
    %1144 = vmatpush1.msra.mxu0 %v143
    %1145 = vmatprep.subr.mxu0 %v136
    %1146 = vmatpush1.msra.mxu0 %v135
    %1147 = vmatprep.subr.mxu0 %v128
    %1148 = vmatpush1.msra.mxu0 %v127
    %1149 = vmatprep.subr.mxu0 %v120
    %1150 = vmatpush1.msra.mxu0 %v119
    %1151 = vmatprep.subr.mxu0 %v112
    %1152 = vmatpush1.msra.mxu0 %v111
    %1153 = vmatprep.subr.mxu0 %v104
    %1154 = vmatpush1.msra.mxu0 %v103
    %1155 = vmatprep.subr.mxu0 %v96
    %1156 = vmatpush1.msra.mxu0 %v95
    %1157 = vmatprep.subr.mxu0 %v88
    %1158 = vmatpush1.msra.mxu0 %v87
    %1159 = vmatprep.subr.mxu0 %v80
    %1160 = vmatpush1.msra.mxu0 %v79
    %1161 = vmatprep.subr.mxu0 %v72
    %1162 = vmatpush1.msra.mxu0 %v71
    %1163 = vmatprep.subr.mxu0 %v64
    %1164 = vmatpush1.msra.mxu0 %v63
    %1165 = vmatprep.subr.mxu0 %v56
    %1166 = vmatpush1.msra.mxu0 %v55
    %1167 = vmatprep.subr.mxu0 %v48
    %1168 = vmatpush1.msra.mxu0 %v47
    %1169 = vmatprep.subr.mxu0 %v40
    %1170 = vmatpush1.msra.mxu0 %v39
    %1171 = vmatprep.subr.mxu0 %v32
    %1172 = vmatpush1.msra.mxu0 %v31
    %1173 = vmatprep.subr.mxu0 %v280
    %1174 = vmatpush2.msra.mxu0 %v279
    %1175 = vmatprep.subr.mxu0 %v272
    %1176 = vmatpush2.msra.mxu0 %v271
    %1177 = vmatprep.subr.mxu0 %v264
    %1178 = vmatpush2.msra.mxu0 %v263
    %1179 = vmatprep.subr.mxu0 %v256
    %1180 = vmatpush2.msra.mxu0 %v255
    %1181 = vmatprep.subr.mxu0 %v248
    %1182 = vmatpush2.msra.mxu0 %v247
    %1183 = vmatprep.subr.mxu0 %v240
    %1184 = vmatpush2.msra.mxu0 %v239
    %1185 = vmatprep.subr.mxu0 %v232
    %1186 = vmatpush2.msra.mxu0 %v231
    %1187 = vmatprep.subr.mxu0 %v224
    %1188 = vmatpush2.msra.mxu0 %v223
    %1189 = vmatprep.subr.mxu0 %v216
    %1190 = vmatpush2.msra.mxu0 %v215
    %1191 = vmatprep.subr.mxu0 %v208
    %1192 = vmatpush2.msra.mxu0 %v207
    %1193 = vmatprep.subr.mxu0 %v200
    %1194 = vmatpush2.msra.mxu0 %v199
    %1195 = vmatprep.subr.mxu0 %v192
    %1196 = vmatpush2.msra.mxu0 %v191
    %1197 = vmatprep.subr.mxu0 %v184
    %1198 = vmatpush2.msra.mxu0 %v183
    %1199 = vmatprep.subr.mxu0 %v176
    %1200 = vmatpush2.msra.mxu0 %v175
    %1201 = vmatprep.subr.mxu0 %v168
    %1202 = vmatpush2.msra.mxu0 %v167
    %1203 = vmatprep.subr.mxu0 %v160
    %1204 = vmatpush2.msra.mxu0 %v159
    %1205 = vmatprep.mubr.f32.mxu0 %v1114
    %1206 = vmatmul.mubr.f32.gmra.mxu0 %v1106
    %v1207 = vpop.f32.mrf.mxu0
    %v1208 = vadd.f32 %v1060, %v1207
    %v1209 = vpop.f32.mrf.mxu0
    %v1210 = vadd.f32 %v1064, %v1209
    %1211 = vdwg.mxu0
    %1212 = vmatprep.subr.mxu0 %v408
    %1213 = vmatpush1.msra.mxu0 %v407
    %1214 = vmatprep.subr.mxu0 %v400
    %1215 = vmatpush1.msra.mxu0 %v399
    %1216 = vmatprep.subr.mxu0 %v392
    %1217 = vmatpush1.msra.mxu0 %v391
    %1218 = vmatprep.subr.mxu0 %v384
    %1219 = vmatpush1.msra.mxu0 %v383
    %1220 = vmatprep.subr.mxu0 %v376
    %1221 = vmatpush1.msra.mxu0 %v375
    %1222 = vmatprep.subr.mxu0 %v368
    %1223 = vmatpush1.msra.mxu0 %v367
    %1224 = vmatprep.subr.mxu0 %v360
    %1225 = vmatpush1.msra.mxu0 %v359
    %1226 = vmatprep.subr.mxu0 %v352
    %1227 = vmatpush1.msra.mxu0 %v351
    %1228 = vmatprep.subr.mxu0 %v344
    %1229 = vmatpush1.msra.mxu0 %v343
    %1230 = vmatprep.subr.mxu0 %v336
    %1231 = vmatpush1.msra.mxu0 %v335
    %1232 = vmatprep.subr.mxu0 %v328
    %1233 = vmatpush1.msra.mxu0 %v327
    %1234 = vmatprep.subr.mxu0 %v320
    %1235 = vmatpush1.msra.mxu0 %v319
    %1236 = vmatprep.subr.mxu0 %v312
    %1237 = vmatpush1.msra.mxu0 %v311
    %1238 = vmatprep.subr.mxu0 %v304
    %1239 = vmatpush1.msra.mxu0 %v303
    %1240 = vmatprep.subr.mxu0 %v296
    %1241 = vmatpush1.msra.mxu0 %v295
    %1242 = vmatprep.subr.mxu0 %v288
    %1243 = vmatpush1.msra.mxu0 %v287
    %1244 = vmatprep.subr.mxu0 %v536
    %1245 = vmatpush2.msra.mxu0 %v535
    %1246 = vmatprep.subr.mxu0 %v528
    %1247 = vmatpush2.msra.mxu0 %v527
    %1248 = vmatprep.subr.mxu0 %v520
    %1249 = vmatpush2.msra.mxu0 %v519
    %1250 = vmatprep.subr.mxu0 %v512
    %1251 = vmatpush2.msra.mxu0 %v511
    %1252 = vmatprep.subr.mxu0 %v504
    %1253 = vmatpush2.msra.mxu0 %v503
    %1254 = vmatprep.subr.mxu0 %v496
    %1255 = vmatpush2.msra.mxu0 %v495
    %1256 = vmatprep.subr.mxu0 %v488
    %1257 = vmatpush2.msra.mxu0 %v487
    %1258 = vmatprep.subr.mxu0 %v480
    %1259 = vmatpush2.msra.mxu0 %v479
    %1260 = vmatprep.subr.mxu0 %v472
    %1261 = vmatpush2.msra.mxu0 %v471
    %1262 = vmatprep.subr.mxu0 %v464
    %1263 = vmatpush2.msra.mxu0 %v463
    %1264 = vmatprep.subr.mxu0 %v456
    %1265 = vmatpush2.msra.mxu0 %v455
    %1266 = vmatprep.subr.mxu0 %v448
    %1267 = vmatpush2.msra.mxu0 %v447
    %1268 = vmatprep.subr.mxu0 %v440
    %1269 = vmatpush2.msra.mxu0 %v439
    %1270 = vmatprep.subr.mxu0 %v432
    %1271 = vmatpush2.msra.mxu0 %v431
    %1272 = vmatprep.subr.mxu0 %v424
    %1273 = vmatpush2.msra.mxu0 %v423
    %1274 = vmatprep.subr.mxu0 %v416
    %1275 = vmatpush2.msra.mxu0 %v415
    %1276 = vmatprep.mubr.f32.mxu0 %v1115
    %1277 = vmatmul.mubr.f32.gmra.mxu0 %v1113
    %v1278 = vpop.f32.mrf.mxu0
    %v1279 = vadd.f32 %v1208, %v1278
    %v1280 = vpop.f32.mrf.mxu0
    %v1281 = vadd.f32 %v1210, %v1280
    %1282 = vdwg.mxu0
    %1283 = vmatprep.subr.mxu0 %v664
    %1284 = vmatpush1.msra.mxu0 %v663
    %1285 = vmatprep.subr.mxu0 %v656
    %1286 = vmatpush1.msra.mxu0 %v655
    %1287 = vmatprep.subr.mxu0 %v648
    %1288 = vmatpush1.msra.mxu0 %v647
    %1289 = vmatprep.subr.mxu0 %v640
    %1290 = vmatpush1.msra.mxu0 %v639
    %1291 = vmatprep.subr.mxu0 %v632
    %1292 = vmatpush1.msra.mxu0 %v631
    %1293 = vmatprep.subr.mxu0 %v624
    %1294 = vmatpush1.msra.mxu0 %v623
    %1295 = vmatprep.subr.mxu0 %v616
    %1296 = vmatpush1.msra.mxu0 %v615
    %1297 = vmatprep.subr.mxu0 %v608
    %1298 = vmatpush1.msra.mxu0 %v607
    %1299 = vmatprep.subr.mxu0 %v600
    %1300 = vmatpush1.msra.mxu0 %v599
    %1301 = vmatprep.subr.mxu0 %v592
    %1302 = vmatpush1.msra.mxu0 %v591
    %1303 = vmatprep.subr.mxu0 %v584
    %1304 = vmatpush1.msra.mxu0 %v583
    %1305 = vmatprep.subr.mxu0 %v576
    %1306 = vmatpush1.msra.mxu0 %v575
    %1307 = vmatprep.subr.mxu0 %v568
    %1308 = vmatpush1.msra.mxu0 %v567
    %1309 = vmatprep.subr.mxu0 %v560
    %1310 = vmatpush1.msra.mxu0 %v559
    %1311 = vmatprep.subr.mxu0 %v552
    %1312 = vmatpush1.msra.mxu0 %v551
    %1313 = vmatprep.subr.mxu0 %v544
    %1314 = vmatpush1.msra.mxu0 %v543
    %1315 = vmatprep.subr.mxu0 %v792
    %1316 = vmatpush2.msra.mxu0 %v791
    %1317 = vmatprep.subr.mxu0 %v784
    %1318 = vmatpush2.msra.mxu0 %v783
    %1319 = vmatprep.subr.mxu0 %v776
    %1320 = vmatpush2.msra.mxu0 %v775
    %1321 = vmatprep.subr.mxu0 %v768
    %1322 = vmatpush2.msra.mxu0 %v767
    %1323 = vmatprep.subr.mxu0 %v760
    %1324 = vmatpush2.msra.mxu0 %v759
    %1325 = vmatprep.subr.mxu0 %v752
    %1326 = vmatpush2.msra.mxu0 %v751
    %1327 = vmatprep.subr.mxu0 %v744
    %1328 = vmatpush2.msra.mxu0 %v743
    %1329 = vmatprep.subr.mxu0 %v736
    %1330 = vmatpush2.msra.mxu0 %v735
    %1331 = vmatprep.subr.mxu0 %v728
    %1332 = vmatpush2.msra.mxu0 %v727
    %1333 = vmatprep.subr.mxu0 %v720
    %1334 = vmatpush2.msra.mxu0 %v719
    %1335 = vmatprep.subr.mxu0 %v712
    %1336 = vmatpush2.msra.mxu0 %v711
    %1337 = vmatprep.subr.mxu0 %v704
    %1338 = vmatpush2.msra.mxu0 %v703
    %1339 = vmatprep.subr.mxu0 %v696
    %1340 = vmatpush2.msra.mxu0 %v695
    %1341 = vmatprep.subr.mxu0 %v688
    %1342 = vmatpush2.msra.mxu0 %v687
    %1343 = vmatprep.subr.mxu0 %v680
    %1344 = vmatpush2.msra.mxu0 %v679
    %1345 = vmatprep.subr.mxu0 %v672
    %1346 = vmatpush2.msra.mxu0 %v671
    %1347 = vmatprep.mubr.f32.mxu0 %v1131
    %1348 = vmatmul.mubr.f32.gmra.mxu0 %v1123
    %v1349 = vpop.f32.mrf.mxu0
    %v1350 = vadd.f32 %v1279, %v1349
    %v1351 = vpop.f32.mrf.mxu0
    %v1352 = vadd.f32 %v1281, %v1351
    %1353 = vdwg.mxu0
    %1354 = vmatprep.subr.mxu0 %v920
    %1355 = vmatpush1.msra.mxu0 %v919
    %1356 = vmatprep.subr.mxu0 %v912
    %1357 = vmatpush1.msra.mxu0 %v911
    %1358 = vmatprep.subr.mxu0 %v904
    %1359 = vmatpush1.msra.mxu0 %v903
    %1360 = vmatprep.subr.mxu0 %v896
    %1361 = vmatpush1.msra.mxu0 %v895
    %1362 = vmatprep.subr.mxu0 %v888
    %1363 = vmatpush1.msra.mxu0 %v887
    %1364 = vmatprep.subr.mxu0 %v880
    %1365 = vmatpush1.msra.mxu0 %v879
    %1366 = vmatprep.subr.mxu0 %v872
    %1367 = vmatpush1.msra.mxu0 %v871
    %1368 = vmatprep.subr.mxu0 %v864
    %1369 = vmatpush1.msra.mxu0 %v863
    %1370 = vmatprep.subr.mxu0 %v856
    %1371 = vmatpush1.msra.mxu0 %v855
    %1372 = vmatprep.subr.mxu0 %v848
    %1373 = vmatpush1.msra.mxu0 %v847
    %1374 = vmatprep.subr.mxu0 %v840
    %1375 = vmatpush1.msra.mxu0 %v839
    %1376 = vmatprep.subr.mxu0 %v832
    %1377 = vmatpush1.msra.mxu0 %v831
    %1378 = vmatprep.subr.mxu0 %v824
    %1379 = vmatpush1.msra.mxu0 %v823
    %1380 = vmatprep.subr.mxu0 %v816
    %1381 = vmatpush1.msra.mxu0 %v815
    %1382 = vmatprep.subr.mxu0 %v808
    %1383 = vmatpush1.msra.mxu0 %v807
    %1384 = vmatprep.subr.mxu0 %v800
    %1385 = vmatpush1.msra.mxu0 %v799
    %1386 = vmatprep.subr.mxu0 %v1048
    %1387 = vmatpush2.msra.mxu0 %v1047
    %1388 = vmatprep.subr.mxu0 %v1040
    %1389 = vmatpush2.msra.mxu0 %v1039
    %1390 = vmatprep.subr.mxu0 %v1032
    %1391 = vmatpush2.msra.mxu0 %v1031
    %1392 = vmatprep.subr.mxu0 %v1024
    %1393 = vmatpush2.msra.mxu0 %v1023
    %1394 = vmatprep.subr.mxu0 %v1016
    %1395 = vmatpush2.msra.mxu0 %v1015
    %1396 = vmatprep.subr.mxu0 %v1008
    %1397 = vmatpush2.msra.mxu0 %v1007
    %1398 = vmatprep.subr.mxu0 %v1000
    %1399 = vmatpush2.msra.mxu0 %v999
    %1400 = vmatprep.subr.mxu0 %v992
    %1401 = vmatpush2.msra.mxu0 %v991
    %1402 = vmatprep.subr.mxu0 %v984
    %1403 = vmatpush2.msra.mxu0 %v983
    %1404 = vmatprep.subr.mxu0 %v976
    %1405 = vmatpush2.msra.mxu0 %v975
    %1406 = vmatprep.subr.mxu0 %v968
    %1407 = vmatpush2.msra.mxu0 %v967
    %1408 = vmatprep.subr.mxu0 %v960
    %1409 = vmatpush2.msra.mxu0 %v959
    %1410 = vmatprep.subr.mxu0 %v952
    %1411 = vmatpush2.msra.mxu0 %v951
    %1412 = vmatprep.subr.mxu0 %v944
    %1413 = vmatpush2.msra.mxu0 %v943
    %1414 = vmatprep.subr.mxu0 %v936
    %1415 = vmatpush2.msra.mxu0 %v935
    %1416 = vmatprep.subr.mxu0 %v928
    %1417 = vmatpush2.msra.mxu0 %v927
    %1418 = vmatprep.mubr.f32.mxu0 %v1132
    %1419 = vmatmul.mubr.f32.gmra.mxu0 %v1130
    %v1420 = vpop.f32.mrf.mxu0
    %v1421 = vadd.f32 %v1350, %v1420
    %v1422 = vpop.f32.mrf.mxu0
    %v1423 = vadd.f32 %v1352, %v1422
    %1424 = vdwg.mxu0
    %1425 = vmatprep.subr.mxu0 %v154
    %1426 = vmatpush1.msra.mxu0 %v153
    %1427 = vmatprep.subr.mxu0 %v146
    %1428 = vmatpush1.msra.mxu0 %v145
    %1429 = vmatprep.subr.mxu0 %v138
    %1430 = vmatpush1.msra.mxu0 %v137
    %1431 = vmatprep.subr.mxu0 %v130
    %1432 = vmatpush1.msra.mxu0 %v129
    %1433 = vmatprep.subr.mxu0 %v122
    %1434 = vmatpush1.msra.mxu0 %v121
    %1435 = vmatprep.subr.mxu0 %v114
    %1436 = vmatpush1.msra.mxu0 %v113
    %1437 = vmatprep.subr.mxu0 %v106
    %1438 = vmatpush1.msra.mxu0 %v105
    %1439 = vmatprep.subr.mxu0 %v98
    %1440 = vmatpush1.msra.mxu0 %v97
    %1441 = vmatprep.subr.mxu0 %v90
    %1442 = vmatpush1.msra.mxu0 %v89
    %1443 = vmatprep.subr.mxu0 %v82
    %1444 = vmatpush1.msra.mxu0 %v81
    %1445 = vmatprep.subr.mxu0 %v74
    %1446 = vmatpush1.msra.mxu0 %v73
    %1447 = vmatprep.subr.mxu0 %v66
    %1448 = vmatpush1.msra.mxu0 %v65
    %1449 = vmatprep.subr.mxu0 %v58
    %1450 = vmatpush1.msra.mxu0 %v57
    %1451 = vmatprep.subr.mxu0 %v50
    %1452 = vmatpush1.msra.mxu0 %v49
    %1453 = vmatprep.subr.mxu0 %v42
    %1454 = vmatpush1.msra.mxu0 %v41
    %1455 = vmatprep.subr.mxu0 %v34
    %1456 = vmatpush1.msra.mxu0 %v33
    %1457 = vmatprep.subr.mxu0 %v282
    %1458 = vmatpush2.msra.mxu0 %v281
    %1459 = vmatprep.subr.mxu0 %v274
    %1460 = vmatpush2.msra.mxu0 %v273
    %1461 = vmatprep.subr.mxu0 %v266
    %1462 = vmatpush2.msra.mxu0 %v265
    %1463 = vmatprep.subr.mxu0 %v258
    %1464 = vmatpush2.msra.mxu0 %v257
    %1465 = vmatprep.subr.mxu0 %v250
    %1466 = vmatpush2.msra.mxu0 %v249
    %1467 = vmatprep.subr.mxu0 %v242
    %1468 = vmatpush2.msra.mxu0 %v241
    %1469 = vmatprep.subr.mxu0 %v234
    %1470 = vmatpush2.msra.mxu0 %v233
    %1471 = vmatprep.subr.mxu0 %v226
    %1472 = vmatpush2.msra.mxu0 %v225
    %1473 = vmatprep.subr.mxu0 %v218
    %1474 = vmatpush2.msra.mxu0 %v217
    %1475 = vmatprep.subr.mxu0 %v210
    %1476 = vmatpush2.msra.mxu0 %v209
    %1477 = vmatprep.subr.mxu0 %v202
    %1478 = vmatpush2.msra.mxu0 %v201
    %1479 = vmatprep.subr.mxu0 %v194
    %1480 = vmatpush2.msra.mxu0 %v193
    %1481 = vmatprep.subr.mxu0 %v186
    %1482 = vmatpush2.msra.mxu0 %v185
    %1483 = vmatprep.subr.mxu0 %v178
    %1484 = vmatpush2.msra.mxu0 %v177
    %1485 = vmatprep.subr.mxu0 %v170
    %1486 = vmatpush2.msra.mxu0 %v169
    %1487 = vmatprep.subr.mxu0 %v162
    %1488 = vmatpush2.msra.mxu0 %v161
    %1489 = vmatprep.mubr.f32.mxu0 %v1114
    %1490 = vmatmul.mubr.f32.gmra.mxu0 %v1106
    %v1491 = vpop.f32.mrf.mxu0
    %v1492 = vadd.f32 %v1068, %v1491
    %v1493 = vpop.f32.mrf.mxu0
    %v1494 = vadd.f32 %v1072, %v1493
    %1495 = vdwg.mxu0
    %1496 = vmatprep.subr.mxu0 %v410
    %1497 = vmatpush1.msra.mxu0 %v409
    %1498 = vmatprep.subr.mxu0 %v402
    %1499 = vmatpush1.msra.mxu0 %v401
    %1500 = vmatprep.subr.mxu0 %v394
    %1501 = vmatpush1.msra.mxu0 %v393
    %1502 = vmatprep.subr.mxu0 %v386
    %1503 = vmatpush1.msra.mxu0 %v385
    %1504 = vmatprep.subr.mxu0 %v378
    %1505 = vmatpush1.msra.mxu0 %v377
    %1506 = vmatprep.subr.mxu0 %v370
    %1507 = vmatpush1.msra.mxu0 %v369
    %1508 = vmatprep.subr.mxu0 %v362
    %1509 = vmatpush1.msra.mxu0 %v361
    %1510 = vmatprep.subr.mxu0 %v354
    %1511 = vmatpush1.msra.mxu0 %v353
    %1512 = vmatprep.subr.mxu0 %v346
    %1513 = vmatpush1.msra.mxu0 %v345
    %1514 = vmatprep.subr.mxu0 %v338
    %1515 = vmatpush1.msra.mxu0 %v337
    %1516 = vmatprep.subr.mxu0 %v330
    %1517 = vmatpush1.msra.mxu0 %v329
    %1518 = vmatprep.subr.mxu0 %v322
    %1519 = vmatpush1.msra.mxu0 %v321
    %1520 = vmatprep.subr.mxu0 %v314
    %1521 = vmatpush1.msra.mxu0 %v313
    %1522 = vmatprep.subr.mxu0 %v306
    %1523 = vmatpush1.msra.mxu0 %v305
    %1524 = vmatprep.subr.mxu0 %v298
    %1525 = vmatpush1.msra.mxu0 %v297
    %1526 = vmatprep.subr.mxu0 %v290
    %1527 = vmatpush1.msra.mxu0 %v289
    %1528 = vmatprep.subr.mxu0 %v538
    %1529 = vmatpush2.msra.mxu0 %v537
    %1530 = vmatprep.subr.mxu0 %v530
    %1531 = vmatpush2.msra.mxu0 %v529
    %1532 = vmatprep.subr.mxu0 %v522
    %1533 = vmatpush2.msra.mxu0 %v521
    %1534 = vmatprep.subr.mxu0 %v514
    %1535 = vmatpush2.msra.mxu0 %v513
    %1536 = vmatprep.subr.mxu0 %v506
    %1537 = vmatpush2.msra.mxu0 %v505
    %1538 = vmatprep.subr.mxu0 %v498
    %1539 = vmatpush2.msra.mxu0 %v497
    %1540 = vmatprep.subr.mxu0 %v490
    %1541 = vmatpush2.msra.mxu0 %v489
    %1542 = vmatprep.subr.mxu0 %v482
    %1543 = vmatpush2.msra.mxu0 %v481
    %1544 = vmatprep.subr.mxu0 %v474
    %1545 = vmatpush2.msra.mxu0 %v473
    %1546 = vmatprep.subr.mxu0 %v466
    %1547 = vmatpush2.msra.mxu0 %v465
    %1548 = vmatprep.subr.mxu0 %v458
    %1549 = vmatpush2.msra.mxu0 %v457
    %1550 = vmatprep.subr.mxu0 %v450
    %1551 = vmatpush2.msra.mxu0 %v449
    %1552 = vmatprep.subr.mxu0 %v442
    %1553 = vmatpush2.msra.mxu0 %v441
    %1554 = vmatprep.subr.mxu0 %v434
    %1555 = vmatpush2.msra.mxu0 %v433
    %1556 = vmatprep.subr.mxu0 %v426
    %1557 = vmatpush2.msra.mxu0 %v425
    %1558 = vmatprep.subr.mxu0 %v418
    %1559 = vmatpush2.msra.mxu0 %v417
    %1560 = vmatprep.mubr.f32.mxu0 %v1115
    %1561 = vmatmul.mubr.f32.gmra.mxu0 %v1113
    %v1562 = vpop.f32.mrf.mxu0
    %v1563 = vadd.f32 %v1492, %v1562
    %v1564 = vpop.f32.mrf.mxu0
    %v1565 = vadd.f32 %v1494, %v1564
    %1566 = vdwg.mxu0
    %1567 = vmatprep.subr.mxu0 %v666
    %1568 = vmatpush1.msra.mxu0 %v665
    %1569 = vmatprep.subr.mxu0 %v658
    %1570 = vmatpush1.msra.mxu0 %v657
    %1571 = vmatprep.subr.mxu0 %v650
    %1572 = vmatpush1.msra.mxu0 %v649
    %1573 = vmatprep.subr.mxu0 %v642
    %1574 = vmatpush1.msra.mxu0 %v641
    %1575 = vmatprep.subr.mxu0 %v634
    %1576 = vmatpush1.msra.mxu0 %v633
    %1577 = vmatprep.subr.mxu0 %v626
    %1578 = vmatpush1.msra.mxu0 %v625
    %1579 = vmatprep.subr.mxu0 %v618
    %1580 = vmatpush1.msra.mxu0 %v617
    %1581 = vmatprep.subr.mxu0 %v610
    %1582 = vmatpush1.msra.mxu0 %v609
    %1583 = vmatprep.subr.mxu0 %v602
    %1584 = vmatpush1.msra.mxu0 %v601
    %1585 = vmatprep.subr.mxu0 %v594
    %1586 = vmatpush1.msra.mxu0 %v593
    %1587 = vmatprep.subr.mxu0 %v586
    %1588 = vmatpush1.msra.mxu0 %v585
    %1589 = vmatprep.subr.mxu0 %v578
    %1590 = vmatpush1.msra.mxu0 %v577
    %1591 = vmatprep.subr.mxu0 %v570
    %1592 = vmatpush1.msra.mxu0 %v569
    %1593 = vmatprep.subr.mxu0 %v562
    %1594 = vmatpush1.msra.mxu0 %v561
    %1595 = vmatprep.subr.mxu0 %v554
    %1596 = vmatpush1.msra.mxu0 %v553
    %1597 = vmatprep.subr.mxu0 %v546
    %1598 = vmatpush1.msra.mxu0 %v545
    %1599 = vmatprep.subr.mxu0 %v794
    %1600 = vmatpush2.msra.mxu0 %v793
    %1601 = vmatprep.subr.mxu0 %v786
    %1602 = vmatpush2.msra.mxu0 %v785
    %1603 = vmatprep.subr.mxu0 %v778
    %1604 = vmatpush2.msra.mxu0 %v777
    %1605 = vmatprep.subr.mxu0 %v770
    %1606 = vmatpush2.msra.mxu0 %v769
    %1607 = vmatprep.subr.mxu0 %v762
    %1608 = vmatpush2.msra.mxu0 %v761
    %1609 = vmatprep.subr.mxu0 %v754
    %1610 = vmatpush2.msra.mxu0 %v753
    %1611 = vmatprep.subr.mxu0 %v746
    %1612 = vmatpush2.msra.mxu0 %v745
    %1613 = vmatprep.subr.mxu0 %v738
    %1614 = vmatpush2.msra.mxu0 %v737
    %1615 = vmatprep.subr.mxu0 %v730
    %1616 = vmatpush2.msra.mxu0 %v729
    %1617 = vmatprep.subr.mxu0 %v722
    %1618 = vmatpush2.msra.mxu0 %v721
    %1619 = vmatprep.subr.mxu0 %v714
    %1620 = vmatpush2.msra.mxu0 %v713
    %1621 = vmatprep.subr.mxu0 %v706
    %1622 = vmatpush2.msra.mxu0 %v705
    %1623 = vmatprep.subr.mxu0 %v698
    %1624 = vmatpush2.msra.mxu0 %v697
    %1625 = vmatprep.subr.mxu0 %v690
    %1626 = vmatpush2.msra.mxu0 %v689
    %1627 = vmatprep.subr.mxu0 %v682
    %1628 = vmatpush2.msra.mxu0 %v681
    %1629 = vmatprep.subr.mxu0 %v674
    %1630 = vmatpush2.msra.mxu0 %v673
    %1631 = vmatprep.mubr.f32.mxu0 %v1131
    %1632 = vmatmul.mubr.f32.gmra.mxu0 %v1123
    %v1633 = vpop.f32.mrf.mxu0
    %v1634 = vadd.f32 %v1563, %v1633
    %v1635 = vpop.f32.mrf.mxu0
    %v1636 = vadd.f32 %v1565, %v1635
    %1637 = vdwg.mxu0
    %1638 = vmatprep.subr.mxu0 %v922
    %1639 = vmatpush1.msra.mxu0 %v921
    %1640 = vmatprep.subr.mxu0 %v914
    %1641 = vmatpush1.msra.mxu0 %v913
    %1642 = vmatprep.subr.mxu0 %v906
    %1643 = vmatpush1.msra.mxu0 %v905
    %1644 = vmatprep.subr.mxu0 %v898
    %1645 = vmatpush1.msra.mxu0 %v897
    %1646 = vmatprep.subr.mxu0 %v890
    %1647 = vmatpush1.msra.mxu0 %v889
    %1648 = vmatprep.subr.mxu0 %v882
    %1649 = vmatpush1.msra.mxu0 %v881
    %1650 = vmatprep.subr.mxu0 %v874
    %1651 = vmatpush1.msra.mxu0 %v873
    %1652 = vmatprep.subr.mxu0 %v866
    %1653 = vmatpush1.msra.mxu0 %v865
    %1654 = vmatprep.subr.mxu0 %v858
    %1655 = vmatpush1.msra.mxu0 %v857
    %1656 = vmatprep.subr.mxu0 %v850
    %1657 = vmatpush1.msra.mxu0 %v849
    %1658 = vmatprep.subr.mxu0 %v842
    %1659 = vmatpush1.msra.mxu0 %v841
    %1660 = vmatprep.subr.mxu0 %v834
    %1661 = vmatpush1.msra.mxu0 %v833
    %1662 = vmatprep.subr.mxu0 %v826
    %1663 = vmatpush1.msra.mxu0 %v825
    %1664 = vmatprep.subr.mxu0 %v818
    %1665 = vmatpush1.msra.mxu0 %v817
    %1666 = vmatprep.subr.mxu0 %v810
    %1667 = vmatpush1.msra.mxu0 %v809
    %1668 = vmatprep.subr.mxu0 %v802
    %1669 = vmatpush1.msra.mxu0 %v801
    %1670 = vmatprep.subr.mxu0 %v1050
    %1671 = vmatpush2.msra.mxu0 %v1049
    %1672 = vmatprep.subr.mxu0 %v1042
    %1673 = vmatpush2.msra.mxu0 %v1041
    %1674 = vmatprep.subr.mxu0 %v1034
    %1675 = vmatpush2.msra.mxu0 %v1033
    %1676 = vmatprep.subr.mxu0 %v1026
    %1677 = vmatpush2.msra.mxu0 %v1025
    %1678 = vmatprep.subr.mxu0 %v1018
    %1679 = vmatpush2.msra.mxu0 %v1017
    %1680 = vmatprep.subr.mxu0 %v1010
    %1681 = vmatpush2.msra.mxu0 %v1009
    %1682 = vmatprep.subr.mxu0 %v1002
    %1683 = vmatpush2.msra.mxu0 %v1001
    %1684 = vmatprep.subr.mxu0 %v994
    %1685 = vmatpush2.msra.mxu0 %v993
    %1686 = vmatprep.subr.mxu0 %v986
    %1687 = vmatpush2.msra.mxu0 %v985
    %1688 = vmatprep.subr.mxu0 %v978
    %1689 = vmatpush2.msra.mxu0 %v977
    %1690 = vmatprep.subr.mxu0 %v970
    %1691 = vmatpush2.msra.mxu0 %v969
    %1692 = vmatprep.subr.mxu0 %v962
    %1693 = vmatpush2.msra.mxu0 %v961
    %1694 = vmatprep.subr.mxu0 %v954
    %1695 = vmatpush2.msra.mxu0 %v953
    %1696 = vmatprep.subr.mxu0 %v946
    %1697 = vmatpush2.msra.mxu0 %v945
    %1698 = vmatprep.subr.mxu0 %v938
    %1699 = vmatpush2.msra.mxu0 %v937
    %1700 = vmatprep.subr.mxu0 %v930
    %1701 = vmatpush2.msra.mxu0 %v929
    %1702 = vmatprep.mubr.f32.mxu0 %v1132
    %1703 = vmatmul.mubr.f32.gmra.mxu0 %v1130
    %v1704 = vpop.f32.mrf.mxu0
    %v1705 = vadd.f32 %v1634, %v1704
    %v1706 = vpop.f32.mrf.mxu0
    %v1707 = vadd.f32 %v1636, %v1706
    %1708 = vdwg.mxu0
    %1709 = vmatprep.subr.mxu0 %v156
    %1710 = vmatpush1.msra.mxu0 %v155
    %1711 = vmatprep.subr.mxu0 %v148
    %1712 = vmatpush1.msra.mxu0 %v147
    %1713 = vmatprep.subr.mxu0 %v140
    %1714 = vmatpush1.msra.mxu0 %v139
    %1715 = vmatprep.subr.mxu0 %v132
    %1716 = vmatpush1.msra.mxu0 %v131
    %1717 = vmatprep.subr.mxu0 %v124
    %1718 = vmatpush1.msra.mxu0 %v123
    %1719 = vmatprep.subr.mxu0 %v116
    %1720 = vmatpush1.msra.mxu0 %v115
    %1721 = vmatprep.subr.mxu0 %v108
    %1722 = vmatpush1.msra.mxu0 %v107
    %1723 = vmatprep.subr.mxu0 %v100
    %1724 = vmatpush1.msra.mxu0 %v99
    %1725 = vmatprep.subr.mxu0 %v92
    %1726 = vmatpush1.msra.mxu0 %v91
    %1727 = vmatprep.subr.mxu0 %v84
    %1728 = vmatpush1.msra.mxu0 %v83
    %1729 = vmatprep.subr.mxu0 %v76
    %1730 = vmatpush1.msra.mxu0 %v75
    %1731 = vmatprep.subr.mxu0 %v68
    %1732 = vmatpush1.msra.mxu0 %v67
    %1733 = vmatprep.subr.mxu0 %v60
    %1734 = vmatpush1.msra.mxu0 %v59
    %1735 = vmatprep.subr.mxu0 %v52
    %1736 = vmatpush1.msra.mxu0 %v51
    %1737 = vmatprep.subr.mxu0 %v44
    %1738 = vmatpush1.msra.mxu0 %v43
    %1739 = vmatprep.subr.mxu0 %v36
    %1740 = vmatpush1.msra.mxu0 %v35
    %1741 = vmatprep.subr.mxu0 %v284
    %1742 = vmatpush2.msra.mxu0 %v283
    %1743 = vmatprep.subr.mxu0 %v276
    %1744 = vmatpush2.msra.mxu0 %v275
    %1745 = vmatprep.subr.mxu0 %v268
    %1746 = vmatpush2.msra.mxu0 %v267
    %1747 = vmatprep.subr.mxu0 %v260
    %1748 = vmatpush2.msra.mxu0 %v259
    %1749 = vmatprep.subr.mxu0 %v252
    %1750 = vmatpush2.msra.mxu0 %v251
    %1751 = vmatprep.subr.mxu0 %v244
    %1752 = vmatpush2.msra.mxu0 %v243
    %1753 = vmatprep.subr.mxu0 %v236
    %1754 = vmatpush2.msra.mxu0 %v235
    %1755 = vmatprep.subr.mxu0 %v228
    %1756 = vmatpush2.msra.mxu0 %v227
    %1757 = vmatprep.subr.mxu0 %v220
    %1758 = vmatpush2.msra.mxu0 %v219
    %1759 = vmatprep.subr.mxu0 %v212
    %1760 = vmatpush2.msra.mxu0 %v211
    %1761 = vmatprep.subr.mxu0 %v204
    %1762 = vmatpush2.msra.mxu0 %v203
    %1763 = vmatprep.subr.mxu0 %v196
    %1764 = vmatpush2.msra.mxu0 %v195
    %1765 = vmatprep.subr.mxu0 %v188
    %1766 = vmatpush2.msra.mxu0 %v187
    %1767 = vmatprep.subr.mxu0 %v180
    %1768 = vmatpush2.msra.mxu0 %v179
    %1769 = vmatprep.subr.mxu0 %v172
    %1770 = vmatpush2.msra.mxu0 %v171
    %1771 = vmatprep.subr.mxu0 %v164
    %1772 = vmatpush2.msra.mxu0 %v163
    %1773 = vmatprep.mubr.f32.mxu0 %v1114
    %1774 = vmatmul.mubr.f32.gmra.mxu0 %v1106
    %v1775 = vpop.f32.mrf.mxu0
    %v1776 = vadd.f32 %v1076, %v1775
    %v1777 = vpop.f32.mrf.mxu0
    %v1778 = vadd.f32 %v1080, %v1777
    %1779 = vdwg.mxu0
    %1780 = vmatprep.subr.mxu0 %v412
    %1781 = vmatpush1.msra.mxu0 %v411
    %1782 = vmatprep.subr.mxu0 %v404
    %1783 = vmatpush1.msra.mxu0 %v403
    %1784 = vmatprep.subr.mxu0 %v396
    %1785 = vmatpush1.msra.mxu0 %v395
    %1786 = vmatprep.subr.mxu0 %v388
    %1787 = vmatpush1.msra.mxu0 %v387
    %1788 = vmatprep.subr.mxu0 %v380
    %1789 = vmatpush1.msra.mxu0 %v379
    %1790 = vmatprep.subr.mxu0 %v372
    %1791 = vmatpush1.msra.mxu0 %v371
    %1792 = vmatprep.subr.mxu0 %v364
    %1793 = vmatpush1.msra.mxu0 %v363
    %1794 = vmatprep.subr.mxu0 %v356
    %1795 = vmatpush1.msra.mxu0 %v355
    %1796 = vmatprep.subr.mxu0 %v348
    %1797 = vmatpush1.msra.mxu0 %v347
    %1798 = vmatprep.subr.mxu0 %v340
    %1799 = vmatpush1.msra.mxu0 %v339
    %1800 = vmatprep.subr.mxu0 %v332
    %1801 = vmatpush1.msra.mxu0 %v331
    %1802 = vmatprep.subr.mxu0 %v324
    %1803 = vmatpush1.msra.mxu0 %v323
    %1804 = vmatprep.subr.mxu0 %v316
    %1805 = vmatpush1.msra.mxu0 %v315
    %1806 = vmatprep.subr.mxu0 %v308
    %1807 = vmatpush1.msra.mxu0 %v307
    %1808 = vmatprep.subr.mxu0 %v300
    %1809 = vmatpush1.msra.mxu0 %v299
    %1810 = vmatprep.subr.mxu0 %v292
    %1811 = vmatpush1.msra.mxu0 %v291
    %1812 = vmatprep.subr.mxu0 %v540
    %1813 = vmatpush2.msra.mxu0 %v539
    %1814 = vmatprep.subr.mxu0 %v532
    %1815 = vmatpush2.msra.mxu0 %v531
    %1816 = vmatprep.subr.mxu0 %v524
    %1817 = vmatpush2.msra.mxu0 %v523
    %1818 = vmatprep.subr.mxu0 %v516
    %1819 = vmatpush2.msra.mxu0 %v515
    %1820 = vmatprep.subr.mxu0 %v508
    %1821 = vmatpush2.msra.mxu0 %v507
    %1822 = vmatprep.subr.mxu0 %v500
    %1823 = vmatpush2.msra.mxu0 %v499
    %1824 = vmatprep.subr.mxu0 %v492
    %1825 = vmatpush2.msra.mxu0 %v491
    %1826 = vmatprep.subr.mxu0 %v484
    %1827 = vmatpush2.msra.mxu0 %v483
    %1828 = vmatprep.subr.mxu0 %v476
    %1829 = vmatpush2.msra.mxu0 %v475
    %1830 = vmatprep.subr.mxu0 %v468
    %1831 = vmatpush2.msra.mxu0 %v467
    %1832 = vmatprep.subr.mxu0 %v460
    %1833 = vmatpush2.msra.mxu0 %v459
    %1834 = vmatprep.subr.mxu0 %v452
    %1835 = vmatpush2.msra.mxu0 %v451
    %1836 = vmatprep.subr.mxu0 %v444
    %1837 = vmatpush2.msra.mxu0 %v443
    %1838 = vmatprep.subr.mxu0 %v436
    %1839 = vmatpush2.msra.mxu0 %v435
    %1840 = vmatprep.subr.mxu0 %v428
    %1841 = vmatpush2.msra.mxu0 %v427
    %1842 = vmatprep.subr.mxu0 %v420
    %1843 = vmatpush2.msra.mxu0 %v419
    %1844 = vmatprep.mubr.f32.mxu0 %v1115
    %1845 = vmatmul.mubr.f32.gmra.mxu0 %v1113
    %v1846 = vpop.f32.mrf.mxu0
    %v1847 = vadd.f32 %v1776, %v1846
    %v1848 = vpop.f32.mrf.mxu0
    %v1849 = vadd.f32 %v1778, %v1848
    %1850 = vdwg.mxu0
    %1851 = vmatprep.subr.mxu0 %v668
    %1852 = vmatpush1.msra.mxu0 %v667
    %1853 = vmatprep.subr.mxu0 %v660
    %1854 = vmatpush1.msra.mxu0 %v659
    %1855 = vmatprep.subr.mxu0 %v652
    %1856 = vmatpush1.msra.mxu0 %v651
    %1857 = vmatprep.subr.mxu0 %v644
    %1858 = vmatpush1.msra.mxu0 %v643
    %1859 = vmatprep.subr.mxu0 %v636
    %1860 = vmatpush1.msra.mxu0 %v635
    %1861 = vmatprep.subr.mxu0 %v628
    %1862 = vmatpush1.msra.mxu0 %v627
    %1863 = vmatprep.subr.mxu0 %v620
    %1864 = vmatpush1.msra.mxu0 %v619
    %1865 = vmatprep.subr.mxu0 %v612
    %1866 = vmatpush1.msra.mxu0 %v611
    %1867 = vmatprep.subr.mxu0 %v604
    %1868 = vmatpush1.msra.mxu0 %v603
    %1869 = vmatprep.subr.mxu0 %v596
    %1870 = vmatpush1.msra.mxu0 %v595
    %1871 = vmatprep.subr.mxu0 %v588
    %1872 = vmatpush1.msra.mxu0 %v587
    %1873 = vmatprep.subr.mxu0 %v580
    %1874 = vmatpush1.msra.mxu0 %v579
    %1875 = vmatprep.subr.mxu0 %v572
    %1876 = vmatpush1.msra.mxu0 %v571
    %1877 = vmatprep.subr.mxu0 %v564
    %1878 = vmatpush1.msra.mxu0 %v563
    %1879 = vmatprep.subr.mxu0 %v556
    %1880 = vmatpush1.msra.mxu0 %v555
    %1881 = vmatprep.subr.mxu0 %v548
    %1882 = vmatpush1.msra.mxu0 %v547
    %1883 = vmatprep.subr.mxu0 %v796
    %1884 = vmatpush2.msra.mxu0 %v795
    %1885 = vmatprep.subr.mxu0 %v788
    %1886 = vmatpush2.msra.mxu0 %v787
    %1887 = vmatprep.subr.mxu0 %v780
    %1888 = vmatpush2.msra.mxu0 %v779
    %1889 = vmatprep.subr.mxu0 %v772
    %1890 = vmatpush2.msra.mxu0 %v771
    %1891 = vmatprep.subr.mxu0 %v764
    %1892 = vmatpush2.msra.mxu0 %v763
    %1893 = vmatprep.subr.mxu0 %v756
    %1894 = vmatpush2.msra.mxu0 %v755
    %1895 = vmatprep.subr.mxu0 %v748
    %1896 = vmatpush2.msra.mxu0 %v747
    %1897 = vmatprep.subr.mxu0 %v740
    %1898 = vmatpush2.msra.mxu0 %v739
    %1899 = vmatprep.subr.mxu0 %v732
    %1900 = vmatpush2.msra.mxu0 %v731
    %1901 = vmatprep.subr.mxu0 %v724
    %1902 = vmatpush2.msra.mxu0 %v723
    %1903 = vmatprep.subr.mxu0 %v716
    %1904 = vmatpush2.msra.mxu0 %v715
    %1905 = vmatprep.subr.mxu0 %v708
    %1906 = vmatpush2.msra.mxu0 %v707
    %1907 = vmatprep.subr.mxu0 %v700
    %1908 = vmatpush2.msra.mxu0 %v699
    %1909 = vmatprep.subr.mxu0 %v692
    %1910 = vmatpush2.msra.mxu0 %v691
    %1911 = vmatprep.subr.mxu0 %v684
    %1912 = vmatpush2.msra.mxu0 %v683
    %1913 = vmatprep.subr.mxu0 %v676
    %1914 = vmatpush2.msra.mxu0 %v675
    %1915 = vmatprep.mubr.f32.mxu0 %v1131
    %1916 = vmatmul.mubr.f32.gmra.mxu0 %v1123
    %v1917 = vpop.f32.mrf.mxu0
    %v1918 = vadd.f32 %v1847, %v1917
    %v1919 = vpop.f32.mrf.mxu0
    %v1920 = vadd.f32 %v1849, %v1919
    %1921 = vdwg.mxu0
    %1922 = vmatprep.subr.mxu0 %v924
    %1923 = vmatpush1.msra.mxu0 %v923
    %1924 = vmatprep.subr.mxu0 %v916
    %1925 = vmatpush1.msra.mxu0 %v915
    %1926 = vmatprep.subr.mxu0 %v908
    %1927 = vmatpush1.msra.mxu0 %v907
    %1928 = vmatprep.subr.mxu0 %v900
    %1929 = vmatpush1.msra.mxu0 %v899
    %1930 = vmatprep.subr.mxu0 %v892
    %1931 = vmatpush1.msra.mxu0 %v891
    %1932 = vmatprep.subr.mxu0 %v884
    %1933 = vmatpush1.msra.mxu0 %v883
    %1934 = vmatprep.subr.mxu0 %v876
    %1935 = vmatpush1.msra.mxu0 %v875
    %1936 = vmatprep.subr.mxu0 %v868
    %1937 = vmatpush1.msra.mxu0 %v867
    %1938 = vmatprep.subr.mxu0 %v860
    %1939 = vmatpush1.msra.mxu0 %v859
    %1940 = vmatprep.subr.mxu0 %v852
    %1941 = vmatpush1.msra.mxu0 %v851
    %1942 = vmatprep.subr.mxu0 %v844
    %1943 = vmatpush1.msra.mxu0 %v843
    %1944 = vmatprep.subr.mxu0 %v836
    %1945 = vmatpush1.msra.mxu0 %v835
    %1946 = vmatprep.subr.mxu0 %v828
    %1947 = vmatpush1.msra.mxu0 %v827
    %1948 = vmatprep.subr.mxu0 %v820
    %1949 = vmatpush1.msra.mxu0 %v819
    %1950 = vmatprep.subr.mxu0 %v812
    %1951 = vmatpush1.msra.mxu0 %v811
    %1952 = vmatprep.subr.mxu0 %v804
    %1953 = vmatpush1.msra.mxu0 %v803
    %1954 = vmatprep.subr.mxu0 %v1052
    %1955 = vmatpush2.msra.mxu0 %v1051
    %1956 = vmatprep.subr.mxu0 %v1044
    %1957 = vmatpush2.msra.mxu0 %v1043
    %1958 = vmatprep.subr.mxu0 %v1036
    %1959 = vmatpush2.msra.mxu0 %v1035
    %1960 = vmatprep.subr.mxu0 %v1028
    %1961 = vmatpush2.msra.mxu0 %v1027
    %1962 = vmatprep.subr.mxu0 %v1020
    %1963 = vmatpush2.msra.mxu0 %v1019
    %1964 = vmatprep.subr.mxu0 %v1012
    %1965 = vmatpush2.msra.mxu0 %v1011
    %1966 = vmatprep.subr.mxu0 %v1004
    %1967 = vmatpush2.msra.mxu0 %v1003
    %1968 = vmatprep.subr.mxu0 %v996
    %1969 = vmatpush2.msra.mxu0 %v995
    %1970 = vmatprep.subr.mxu0 %v988
    %1971 = vmatpush2.msra.mxu0 %v987
    %1972 = vmatprep.subr.mxu0 %v980
    %1973 = vmatpush2.msra.mxu0 %v979
    %1974 = vmatprep.subr.mxu0 %v972
    %1975 = vmatpush2.msra.mxu0 %v971
    %1976 = vmatprep.subr.mxu0 %v964
    %1977 = vmatpush2.msra.mxu0 %v963
    %1978 = vmatprep.subr.mxu0 %v956
    %1979 = vmatpush2.msra.mxu0 %v955
    %1980 = vmatprep.subr.mxu0 %v948
    %1981 = vmatpush2.msra.mxu0 %v947
    %1982 = vmatprep.subr.mxu0 %v940
    %1983 = vmatpush2.msra.mxu0 %v939
    %1984 = vmatprep.subr.mxu0 %v932
    %1985 = vmatpush2.msra.mxu0 %v931
    %1986 = vmatprep.mubr.f32.mxu0 %v1132
    %1987 = vmatmul.mubr.f32.gmra.mxu0 %v1130
    %v1988 = vpop.f32.mrf.mxu0
    %v1989 = vadd.f32 %v1918, %v1988
    %v1990 = vpop.f32.mrf.mxu0
    %v1991 = vadd.f32 %v1920, %v1990
    %1992 = vdwg.mxu0
    %1993 = vmatprep.subr.mxu0 %v158
    %1994 = vmatpush1.msra.mxu0 %v157
    %1995 = vmatprep.subr.mxu0 %v150
    %1996 = vmatpush1.msra.mxu0 %v149
    %1997 = vmatprep.subr.mxu0 %v142
    %1998 = vmatpush1.msra.mxu0 %v141
    %1999 = vmatprep.subr.mxu0 %v134
    %2000 = vmatpush1.msra.mxu0 %v133
    %2001 = vmatprep.subr.mxu0 %v126
    %2002 = vmatpush1.msra.mxu0 %v125
    %2003 = vmatprep.subr.mxu0 %v118
    %2004 = vmatpush1.msra.mxu0 %v117
    %2005 = vmatprep.subr.mxu0 %v110
    %2006 = vmatpush1.msra.mxu0 %v109
    %2007 = vmatprep.subr.mxu0 %v102
    %2008 = vmatpush1.msra.mxu0 %v101
    %2009 = vmatprep.subr.mxu0 %v94
    %2010 = vmatpush1.msra.mxu0 %v93
    %2011 = vmatprep.subr.mxu0 %v86
    %2012 = vmatpush1.msra.mxu0 %v85
    %2013 = vmatprep.subr.mxu0 %v78
    %2014 = vmatpush1.msra.mxu0 %v77
    %2015 = vmatprep.subr.mxu0 %v70
    %2016 = vmatpush1.msra.mxu0 %v69
    %2017 = vmatprep.subr.mxu0 %v62
    %2018 = vmatpush1.msra.mxu0 %v61
    %2019 = vmatprep.subr.mxu0 %v54
    %2020 = vmatpush1.msra.mxu0 %v53
    %2021 = vmatprep.subr.mxu0 %v46
    %2022 = vmatpush1.msra.mxu0 %v45
    %2023 = vmatprep.subr.mxu0 %v38
    %2024 = vmatpush1.msra.mxu0 %v37
    %2025 = vmatprep.subr.mxu0 %v286
    %2026 = vmatpush2.msra.mxu0 %v285
    %2027 = vmatprep.subr.mxu0 %v278
    %2028 = vmatpush2.msra.mxu0 %v277
    %2029 = vmatprep.subr.mxu0 %v270
    %2030 = vmatpush2.msra.mxu0 %v269
    %2031 = vmatprep.subr.mxu0 %v262
    %2032 = vmatpush2.msra.mxu0 %v261
    %2033 = vmatprep.subr.mxu0 %v254
    %2034 = vmatpush2.msra.mxu0 %v253
    %2035 = vmatprep.subr.mxu0 %v246
    %2036 = vmatpush2.msra.mxu0 %v245
    %2037 = vmatprep.subr.mxu0 %v238
    %2038 = vmatpush2.msra.mxu0 %v237
    %2039 = vmatprep.subr.mxu0 %v230
    %2040 = vmatpush2.msra.mxu0 %v229
    %2041 = vmatprep.subr.mxu0 %v222
    %2042 = vmatpush2.msra.mxu0 %v221
    %2043 = vmatprep.subr.mxu0 %v214
    %2044 = vmatpush2.msra.mxu0 %v213
    %2045 = vmatprep.subr.mxu0 %v206
    %2046 = vmatpush2.msra.mxu0 %v205
    %2047 = vmatprep.subr.mxu0 %v198
    %2048 = vmatpush2.msra.mxu0 %v197
    %2049 = vmatprep.subr.mxu0 %v190
    %2050 = vmatpush2.msra.mxu0 %v189
    %2051 = vmatprep.subr.mxu0 %v182
    %2052 = vmatpush2.msra.mxu0 %v181
    %2053 = vmatprep.subr.mxu0 %v174
    %2054 = vmatpush2.msra.mxu0 %v173
    %2055 = vmatprep.subr.mxu0 %v166
    %2056 = vmatpush2.msra.mxu0 %v165
    %2057 = vmatprep.mubr.f32.mxu0 %v1114
    %2058 = vmatmul.mubr.f32.gmra.mxu0 %v1106
    %v2059 = vpop.f32.mrf.mxu0
    %v2060 = vadd.f32 %v1084, %v2059
    %v2061 = vpop.f32.mrf.mxu0
    %v2062 = vadd.f32 %v1088, %v2061
    %2063 = vdwg.mxu0
    %2064 = vmatprep.subr.mxu0 %v414
    %2065 = vmatpush1.msra.mxu0 %v413
    %2066 = vmatprep.subr.mxu0 %v406
    %2067 = vmatpush1.msra.mxu0 %v405
    %2068 = vmatprep.subr.mxu0 %v398
    %2069 = vmatpush1.msra.mxu0 %v397
    %2070 = vmatprep.subr.mxu0 %v390
    %2071 = vmatpush1.msra.mxu0 %v389
    %2072 = vmatprep.subr.mxu0 %v382
    %2073 = vmatpush1.msra.mxu0 %v381
    %2074 = vmatprep.subr.mxu0 %v374
    %2075 = vmatpush1.msra.mxu0 %v373
    %2076 = vmatprep.subr.mxu0 %v366
    %2077 = vmatpush1.msra.mxu0 %v365
    %2078 = vmatprep.subr.mxu0 %v358
    %2079 = vmatpush1.msra.mxu0 %v357
    %2080 = vmatprep.subr.mxu0 %v350
    %2081 = vmatpush1.msra.mxu0 %v349
    %2082 = vmatprep.subr.mxu0 %v342
    %2083 = vmatpush1.msra.mxu0 %v341
    %2084 = vmatprep.subr.mxu0 %v334
    %2085 = vmatpush1.msra.mxu0 %v333
    %2086 = vmatprep.subr.mxu0 %v326
    %2087 = vmatpush1.msra.mxu0 %v325
    %2088 = vmatprep.subr.mxu0 %v318
    %2089 = vmatpush1.msra.mxu0 %v317
    %2090 = vmatprep.subr.mxu0 %v310
    %2091 = vmatpush1.msra.mxu0 %v309
    %2092 = vmatprep.subr.mxu0 %v302
    %2093 = vmatpush1.msra.mxu0 %v301
    %2094 = vmatprep.subr.mxu0 %v294
    %2095 = vmatpush1.msra.mxu0 %v293
    %2096 = vmatprep.subr.mxu0 %v542
    %2097 = vmatpush2.msra.mxu0 %v541
    %2098 = vmatprep.subr.mxu0 %v534
    %2099 = vmatpush2.msra.mxu0 %v533
    %2100 = vmatprep.subr.mxu0 %v526
    %2101 = vmatpush2.msra.mxu0 %v525
    %2102 = vmatprep.subr.mxu0 %v518
    %2103 = vmatpush2.msra.mxu0 %v517
    %2104 = vmatprep.subr.mxu0 %v510
    %2105 = vmatpush2.msra.mxu0 %v509
    %2106 = vmatprep.subr.mxu0 %v502
    %2107 = vmatpush2.msra.mxu0 %v501
    %2108 = vmatprep.subr.mxu0 %v494
    %2109 = vmatpush2.msra.mxu0 %v493
    %2110 = vmatprep.subr.mxu0 %v486
    %2111 = vmatpush2.msra.mxu0 %v485
    %2112 = vmatprep.subr.mxu0 %v478
    %2113 = vmatpush2.msra.mxu0 %v477
    %2114 = vmatprep.subr.mxu0 %v470
    %2115 = vmatpush2.msra.mxu0 %v469
    %2116 = vmatprep.subr.mxu0 %v462
    %2117 = vmatpush2.msra.mxu0 %v461
    %2118 = vmatprep.subr.mxu0 %v454
    %2119 = vmatpush2.msra.mxu0 %v453
    %2120 = vmatprep.subr.mxu0 %v446
    %2121 = vmatpush2.msra.mxu0 %v445
    %2122 = vmatprep.subr.mxu0 %v438
    %2123 = vmatpush2.msra.mxu0 %v437
    %2124 = vmatprep.subr.mxu0 %v430
    %2125 = vmatpush2.msra.mxu0 %v429
    %2126 = vmatprep.subr.mxu0 %v422
    %2127 = vmatpush2.msra.mxu0 %v421
    %2128 = vmatprep.mubr.f32.mxu0 %v1115
    %2129 = vmatmul.mubr.f32.gmra.mxu0 %v1113
    %v2130 = vpop.f32.mrf.mxu0
    %v2131 = vadd.f32 %v2060, %v2130
    %v2132 = vpop.f32.mrf.mxu0
    %v2133 = vadd.f32 %v2062, %v2132
    %2134 = vdwg.mxu0
    %2135 = vmatprep.subr.mxu0 %v670
    %2136 = vmatpush1.msra.mxu0 %v669
    %2137 = vmatprep.subr.mxu0 %v662
    %2138 = vmatpush1.msra.mxu0 %v661
    %2139 = vmatprep.subr.mxu0 %v654
    %2140 = vmatpush1.msra.mxu0 %v653
    %2141 = vmatprep.subr.mxu0 %v646
    %2142 = vmatpush1.msra.mxu0 %v645
    %2143 = vmatprep.subr.mxu0 %v638
    %2144 = vmatpush1.msra.mxu0 %v637
    %2145 = vmatprep.subr.mxu0 %v630
    %2146 = vmatpush1.msra.mxu0 %v629
    %2147 = vmatprep.subr.mxu0 %v622
    %2148 = vmatpush1.msra.mxu0 %v621
    %2149 = vmatprep.subr.mxu0 %v614
    %2150 = vmatpush1.msra.mxu0 %v613
    %2151 = vmatprep.subr.mxu0 %v606
    %2152 = vmatpush1.msra.mxu0 %v605
    %2153 = vmatprep.subr.mxu0 %v598
    %2154 = vmatpush1.msra.mxu0 %v597
    %2155 = vmatprep.subr.mxu0 %v590
    %2156 = vmatpush1.msra.mxu0 %v589
    %2157 = vmatprep.subr.mxu0 %v582
    %2158 = vmatpush1.msra.mxu0 %v581
    %2159 = vmatprep.subr.mxu0 %v574
    %2160 = vmatpush1.msra.mxu0 %v573
    %2161 = vmatprep.subr.mxu0 %v566
    %2162 = vmatpush1.msra.mxu0 %v565
    %2163 = vmatprep.subr.mxu0 %v558
    %2164 = vmatpush1.msra.mxu0 %v557
    %2165 = vmatprep.subr.mxu0 %v550
    %2166 = vmatpush1.msra.mxu0 %v549
    %2167 = vmatprep.subr.mxu0 %v798
    %2168 = vmatpush2.msra.mxu0 %v797
    %2169 = vmatprep.subr.mxu0 %v790
    %2170 = vmatpush2.msra.mxu0 %v789
    %2171 = vmatprep.subr.mxu0 %v782
    %2172 = vmatpush2.msra.mxu0 %v781
    %2173 = vmatprep.subr.mxu0 %v774
    %2174 = vmatpush2.msra.mxu0 %v773
    %2175 = vmatprep.subr.mxu0 %v766
    %2176 = vmatpush2.msra.mxu0 %v765
    %2177 = vmatprep.subr.mxu0 %v758
    %2178 = vmatpush2.msra.mxu0 %v757
    %2179 = vmatprep.subr.mxu0 %v750
    %2180 = vmatpush2.msra.mxu0 %v749
    %2181 = vmatprep.subr.mxu0 %v742
    %2182 = vmatpush2.msra.mxu0 %v741
    %2183 = vmatprep.subr.mxu0 %v734
    %2184 = vmatpush2.msra.mxu0 %v733
    %2185 = vmatprep.subr.mxu0 %v726
    %2186 = vmatpush2.msra.mxu0 %v725
    %2187 = vmatprep.subr.mxu0 %v718
    %2188 = vmatpush2.msra.mxu0 %v717
    %2189 = vmatprep.subr.mxu0 %v710
    %2190 = vmatpush2.msra.mxu0 %v709
    %2191 = vmatprep.subr.mxu0 %v702
    %2192 = vmatpush2.msra.mxu0 %v701
    %2193 = vmatprep.subr.mxu0 %v694
    %2194 = vmatpush2.msra.mxu0 %v693
    %2195 = vmatprep.subr.mxu0 %v686
    %2196 = vmatpush2.msra.mxu0 %v685
    %2197 = vmatprep.subr.mxu0 %v678
    %2198 = vmatpush2.msra.mxu0 %v677
    %2199 = vmatprep.mubr.f32.mxu0 %v1131
    %2200 = vmatmul.mubr.f32.gmra.mxu0 %v1123
    %v2201 = vpop.f32.mrf.mxu0
    %v2202 = vadd.f32 %v2131, %v2201
    %v2203 = vpop.f32.mrf.mxu0
    %v2204 = vadd.f32 %v2133, %v2203
    %2205 = vdwg.mxu0
    %2206 = vmatprep.subr.mxu0 %v926
    %2207 = vmatpush1.msra.mxu0 %v925
    %2208 = vmatprep.subr.mxu0 %v918
    %2209 = vmatpush1.msra.mxu0 %v917
    %2210 = vmatprep.subr.mxu0 %v910
    %2211 = vmatpush1.msra.mxu0 %v909
    %2212 = vmatprep.subr.mxu0 %v902
    %2213 = vmatpush1.msra.mxu0 %v901
    %2214 = vmatprep.subr.mxu0 %v894
    %2215 = vmatpush1.msra.mxu0 %v893
    %2216 = vmatprep.subr.mxu0 %v886
    %2217 = vmatpush1.msra.mxu0 %v885
    %2218 = vmatprep.subr.mxu0 %v878
    %2219 = vmatpush1.msra.mxu0 %v877
    %2220 = vmatprep.subr.mxu0 %v870
    %2221 = vmatpush1.msra.mxu0 %v869
    %2222 = vmatprep.subr.mxu0 %v862
    %2223 = vmatpush1.msra.mxu0 %v861
    %2224 = vmatprep.subr.mxu0 %v854
    %2225 = vmatpush1.msra.mxu0 %v853
    %2226 = vmatprep.subr.mxu0 %v846
    %2227 = vmatpush1.msra.mxu0 %v845
    %2228 = vmatprep.subr.mxu0 %v838
    %2229 = vmatpush1.msra.mxu0 %v837
    %2230 = vmatprep.subr.mxu0 %v830
    %2231 = vmatpush1.msra.mxu0 %v829
    %2232 = vmatprep.subr.mxu0 %v822
    %2233 = vmatpush1.msra.mxu0 %v821
    %2234 = vmatprep.subr.mxu0 %v814
    %2235 = vmatpush1.msra.mxu0 %v813
    %2236 = vmatprep.subr.mxu0 %v806
    %2237 = vmatpush1.msra.mxu0 %v805
    %2238 = vmatprep.subr.mxu0 %v1054
    %2239 = vmatpush2.msra.mxu0 %v1053
    %2240 = vmatprep.subr.mxu0 %v1046
    %2241 = vmatpush2.msra.mxu0 %v1045
    %2242 = vmatprep.subr.mxu0 %v1038
    %2243 = vmatpush2.msra.mxu0 %v1037
    %2244 = vmatprep.subr.mxu0 %v1030
    %2245 = vmatpush2.msra.mxu0 %v1029
    %2246 = vmatprep.subr.mxu0 %v1022
    %2247 = vmatpush2.msra.mxu0 %v1021
    %2248 = vmatprep.subr.mxu0 %v1014
    %2249 = vmatpush2.msra.mxu0 %v1013
    %2250 = vmatprep.subr.mxu0 %v1006
    %2251 = vmatpush2.msra.mxu0 %v1005
    %2252 = vmatprep.subr.mxu0 %v998
    %2253 = vmatpush2.msra.mxu0 %v997
    %2254 = vmatprep.subr.mxu0 %v990
    %2255 = vmatpush2.msra.mxu0 %v989
    %2256 = vmatprep.subr.mxu0 %v982
    %2257 = vmatpush2.msra.mxu0 %v981
    %2258 = vmatprep.subr.mxu0 %v974
    %2259 = vmatpush2.msra.mxu0 %v973
    %2260 = vmatprep.subr.mxu0 %v966
    %2261 = vmatpush2.msra.mxu0 %v965
    %2262 = vmatprep.subr.mxu0 %v958
    %2263 = vmatpush2.msra.mxu0 %v957
    %2264 = vmatprep.subr.mxu0 %v950
    %2265 = vmatpush2.msra.mxu0 %v949
    %2266 = vmatprep.subr.mxu0 %v942
    %2267 = vmatpush2.msra.mxu0 %v941
    %2268 = vmatprep.subr.mxu0 %v934
    %2269 = vmatpush2.msra.mxu0 %v933
    %2270 = vmatprep.mubr.f32.mxu0 %v1132
    %2271 = vmatmul.mubr.f32.gmra.mxu0 %v1130
    %v2272 = vpop.f32.mrf.mxu0
    %v2273 = vadd.f32 %v2202, %v2272
    %v2274 = vpop.f32.mrf.mxu0
    %v2275 = vadd.f32 %v2204, %v2274
    %2276 = vdwg.mxu0
    %v2277 = vmax.f32 %v1421, 0.0
    %v2278 = vmax.f32 %v1423, 0.0
    %v2279 = vmax.f32 %v1705, 0.0
    %v2280 = vmax.f32 %v1707, 0.0
    %v2281 = vmax.f32 %v1989, 0.0
    %v2282 = vmax.f32 %v1991, 0.0
    %v2283 = vmax.f32 %v2273, 0.0
    %v2284 = vmax.f32 %v2275, 0.0
    %v2285 = vld [vmem:[%s3] sm:$0xff]
    %v2286 = vld [vmem:[%s3 + $0x8] sm:$0xff]
    %v2287 = vld [vmem:[%s3 + $0x10] sm:$0xff]
    %v2288 = vld [vmem:[%s3 + $0x18] sm:$0xff]
    %v2289 = vld [vmem:[%s3 + $0x20] sm:$0xff]
    %v2290 = vld [vmem:[%s3 + $0x28] sm:$0xff]
    %v2291 = vld [vmem:[%s3 + $0x30] sm:$0xff]
    %v2292 = vld [vmem:[%s3 + $0x38] sm:$0xff]
    %v2293 = vld [vmem:[%s3 + $0x40] sm:$0xff]
    %v2294 = vld [vmem:[%s3 + $0x48] sm:$0xff]
    %v2295 = vld [vmem:[%s3 + $0x50] sm:$0xff]
    %v2296 = vld [vmem:[%s3 + $0x58] sm:$0xff]
    %v2297 = vld [vmem:[%s3 + $0x60] sm:$0xff]
    %v2298 = vld [vmem:[%s3 + $0x68] sm:$0xff]
    %v2299 = vld [vmem:[%s3 + $0x70] sm:$0xff]
    %v2300 = vld [vmem:[%s3 + $0x78] sm:$0xff]
    %v2301 = vld [vmem:[%s3 + $0x80] sm:$0xff]
    %v2302 = vld [vmem:[%s3 + $0x88] sm:$0xff]
    %v2303 = vld [vmem:[%s3 + $0x90] sm:$0xff]
    %v2304 = vld [vmem:[%s3 + $0x98] sm:$0xff]
    %v2305 = vld [vmem:[%s3 + $0xa0] sm:$0xff]
    %v2306 = vld [vmem:[%s3 + $0xa8] sm:$0xff]
    %v2307 = vld [vmem:[%s3 + $0xb0] sm:$0xff]
    %v2308 = vld [vmem:[%s3 + $0xb8] sm:$0xff]
    %v2309 = vld [vmem:[%s3 + $0xc0] sm:$0xff]
    %v2310 = vld [vmem:[%s3 + $0xc8] sm:$0xff]
    %v2311 = vld [vmem:[%s3 + $0xd0] sm:$0xff]
    %v2312 = vld [vmem:[%s3 + $0xd8] sm:$0xff]
    %v2313 = vld [vmem:[%s3 + $0xe0] sm:$0xff]
    %v2314 = vld [vmem:[%s3 + $0xe8] sm:$0xff]
    %v2315 = vld [vmem:[%s3 + $0xf0] sm:$0xff]
    %v2316 = vld [vmem:[%s3 + $0xf8] sm:$0xff]
    %v2317 = vld [vmem:[%s3 + $0x100] sm:$0xff]
    %v2318 = vld [vmem:[%s3 + $0x108] sm:$0xff]
    %v2319 = vld [vmem:[%s3 + $0x110] sm:$0xff]
    %v2320 = vld [vmem:[%s3 + $0x118] sm:$0xff]
    %v2321 = vld [vmem:[%s3 + $0x120] sm:$0xff]
    %v2322 = vld [vmem:[%s3 + $0x128] sm:$0xff]
    %v2323 = vld [vmem:[%s3 + $0x130] sm:$0xff]
    %v2324 = vld [vmem:[%s3 + $0x138] sm:$0xff]
    %v2325 = vld [vmem:[%s3 + $0x140] sm:$0xff]
    %v2326 = vld [vmem:[%s3 + $0x148] sm:$0xff]
    %v2327 = vld [vmem:[%s3 + $0x150] sm:$0xff]
    %v2328 = vld [vmem:[%s3 + $0x158] sm:$0xff]
    %v2329 = vld [vmem:[%s3 + $0x160] sm:$0xff]
    %v2330 = vld [vmem:[%s3 + $0x168] sm:$0xff]
    %v2331 = vld [vmem:[%s3 + $0x170] sm:$0xff]
    %v2332 = vld [vmem:[%s3 + $0x178] sm:$0xff]
    %v2333 = vld [vmem:[%s3 + $0x180] sm:$0xff]
    %v2334 = vld [vmem:[%s3 + $0x188] sm:$0xff]
    %v2335 = vld [vmem:[%s3 + $0x190] sm:$0xff]
    %v2336 = vld [vmem:[%s3 + $0x198] sm:$0xff]
    %v2337 = vld [vmem:[%s3 + $0x1a0] sm:$0xff]
    %v2338 = vld [vmem:[%s3 + $0x1a8] sm:$0xff]
    %v2339 = vld [vmem:[%s3 + $0x1b0] sm:$0xff]
    %v2340 = vld [vmem:[%s3 + $0x1b8] sm:$0xff]
    %v2341 = vld [vmem:[%s3 + $0x1c0] sm:$0xff]
    %v2342 = vld [vmem:[%s3 + $0x1c8] sm:$0xff]
    %v2343 = vld [vmem:[%s3 + $0x1d0] sm:$0xff]
    %v2344 = vld [vmem:[%s3 + $0x1d8] sm:$0xff]
    %v2345 = vld [vmem:[%s3 + $0x1e0] sm:$0xff]
    %v2346 = vld [vmem:[%s3 + $0x1e8] sm:$0xff]
    %v2347 = vld [vmem:[%s3 + $0x1f0] sm:$0xff]
    %v2348 = vld [vmem:[%s3 + $0x1f8] sm:$0xff]
    %v2349 = vld [vmem:[#allocation2] sm:$0x1]
    %v2351 = vlaneseq
    %v2352 = vshrl.u32 %v2351, 7
    %v2353 = vsub.s32 0, %v2352
    %v2354 = vrot.slane %v2349, %v2353
    %2356 = vmatprep.subr.mxu0 0.0
    %2357 = vmatpush1.msra.mxu0 %v2300
    %2358 = vmatprep.subr.mxu0 0.0
    %2359 = vmatpush1.msra.mxu0 %v2299
    %2360 = vmatprep.subr.mxu0 0.0
    %2361 = vmatpush1.msra.mxu0 %v2298
    %2362 = vmatprep.subr.mxu0 0.0
    %2363 = vmatpush1.msra.mxu0 %v2297
    %2364 = vmatprep.subr.mxu0 0.0
    %2365 = vmatpush1.msra.mxu0 %v2296
    %2366 = vmatprep.subr.mxu0 0.0
    %2367 = vmatpush1.msra.mxu0 %v2295
    %2368 = vmatprep.subr.mxu0 0.0
    %2369 = vmatpush1.msra.mxu0 %v2294
    %2370 = vmatprep.subr.mxu0 0.0
    %2371 = vmatpush1.msra.mxu0 %v2293
    %2372 = vmatprep.subr.mxu0 0.0
    %2373 = vmatpush1.msra.mxu0 %v2292
    %2374 = vmatprep.subr.mxu0 0.0
    %2375 = vmatpush1.msra.mxu0 %v2291
    %2376 = vmatprep.subr.mxu0 0.0
    %2377 = vmatpush1.msra.mxu0 %v2290
    %2378 = vmatprep.subr.mxu0 0.0
    %2379 = vmatpush1.msra.mxu0 %v2289
    %2380 = vmatprep.subr.mxu0 0.0
    %2381 = vmatpush1.msra.mxu0 %v2288
    %2382 = vmatprep.subr.mxu0 0.0
    %2383 = vmatpush1.msra.mxu0 %v2287
    %2384 = vmatprep.subr.mxu0 0.0
    %2385 = vmatpush1.msra.mxu0 %v2286
    %2386 = vmatprep.subr.mxu0 0.0
    %2387 = vmatpush1.msra.mxu0 %v2285
    %2388 = vmatprep.subr.mxu0 0.0
    %2389 = vmatpush2.msra.mxu0 %v2316
    %2390 = vmatprep.subr.mxu0 0.0
    %2391 = vmatpush2.msra.mxu0 %v2315
    %2392 = vmatprep.subr.mxu0 0.0
    %2393 = vmatpush2.msra.mxu0 %v2314
    %2394 = vmatprep.subr.mxu0 0.0
    %2395 = vmatpush2.msra.mxu0 %v2313
    %2396 = vmatprep.subr.mxu0 0.0
    %2397 = vmatpush2.msra.mxu0 %v2312
    %2398 = vmatprep.subr.mxu0 0.0
    %2399 = vmatpush2.msra.mxu0 %v2311
    %2400 = vmatprep.subr.mxu0 0.0
    %2401 = vmatpush2.msra.mxu0 %v2310
    %2402 = vmatprep.subr.mxu0 0.0
    %2403 = vmatpush2.msra.mxu0 %v2309
    %2404 = vmatprep.subr.mxu0 0.0
    %2405 = vmatpush2.msra.mxu0 %v2308
    %2406 = vmatprep.subr.mxu0 0.0
    %2407 = vmatpush2.msra.mxu0 %v2307
    %2408 = vmatprep.subr.mxu0 0.0
    %2409 = vmatpush2.msra.mxu0 %v2306
    %2410 = vmatprep.subr.mxu0 0.0
    %2411 = vmatpush2.msra.mxu0 %v2305
    %2412 = vmatprep.subr.mxu0 0.0
    %2413 = vmatpush2.msra.mxu0 %v2304
    %2414 = vmatprep.subr.mxu0 0.0
    %2415 = vmatpush2.msra.mxu0 %v2303
    %2416 = vmatprep.subr.mxu0 0.0
    %2417 = vmatpush2.msra.mxu0 %v2302
    %2418 = vmatprep.subr.mxu0 0.0
    %2419 = vmatpush2.msra.mxu0 %v2301
    %2420 = vmatprep.mubr.f32.mxu0 %v2278
    %2421 = vmatmul.mubr.f32.gmra.mxu0 %v2277
    %v2422 = vpop.f32.mrf.mxu0
    %v2423 = vadd.f32 %v2354, %v2422
    %v2424 = vpop.f32.mrf.mxu0
    %2425 = vdwg.mxu0
    %2426 = vmatprep.subr.mxu0 0.0
    %2427 = vmatpush1.msra.mxu0 %v2332
    %2428 = vmatprep.subr.mxu0 0.0
    %2429 = vmatpush1.msra.mxu0 %v2331
    %2430 = vmatprep.subr.mxu0 0.0
    %2431 = vmatpush1.msra.mxu0 %v2330
    %2432 = vmatprep.subr.mxu0 0.0
    %2433 = vmatpush1.msra.mxu0 %v2329
    %2434 = vmatprep.subr.mxu0 0.0
    %2435 = vmatpush1.msra.mxu0 %v2328
    %2436 = vmatprep.subr.mxu0 0.0
    %2437 = vmatpush1.msra.mxu0 %v2327
    %2438 = vmatprep.subr.mxu0 0.0
    %2439 = vmatpush1.msra.mxu0 %v2326
    %2440 = vmatprep.subr.mxu0 0.0
    %2441 = vmatpush1.msra.mxu0 %v2325
    %2442 = vmatprep.subr.mxu0 0.0
    %2443 = vmatpush1.msra.mxu0 %v2324
    %2444 = vmatprep.subr.mxu0 0.0
    %2445 = vmatpush1.msra.mxu0 %v2323
    %2446 = vmatprep.subr.mxu0 0.0
    %2447 = vmatpush1.msra.mxu0 %v2322
    %2448 = vmatprep.subr.mxu0 0.0
    %2449 = vmatpush1.msra.mxu0 %v2321
    %2450 = vmatprep.subr.mxu0 0.0
    %2451 = vmatpush1.msra.mxu0 %v2320
    %2452 = vmatprep.subr.mxu0 0.0
    %2453 = vmatpush1.msra.mxu0 %v2319
    %2454 = vmatprep.subr.mxu0 0.0
    %2455 = vmatpush1.msra.mxu0 %v2318
    %2456 = vmatprep.subr.mxu0 0.0
    %2457 = vmatpush1.msra.mxu0 %v2317
    %2458 = vmatprep.subr.mxu0 0.0
    %2459 = vmatpush2.msra.mxu0 %v2348
    %2460 = vmatprep.subr.mxu0 0.0
    %2461 = vmatpush2.msra.mxu0 %v2347
    %2462 = vmatprep.subr.mxu0 0.0
    %2463 = vmatpush2.msra.mxu0 %v2346
    %2464 = vmatprep.subr.mxu0 0.0
    %2465 = vmatpush2.msra.mxu0 %v2345
    %2466 = vmatprep.subr.mxu0 0.0
    %2467 = vmatpush2.msra.mxu0 %v2344
    %2468 = vmatprep.subr.mxu0 0.0
    %2469 = vmatpush2.msra.mxu0 %v2343
    %2470 = vmatprep.subr.mxu0 0.0
    %2471 = vmatpush2.msra.mxu0 %v2342
    %2472 = vmatprep.subr.mxu0 0.0
    %2473 = vmatpush2.msra.mxu0 %v2341
    %2474 = vmatprep.subr.mxu0 0.0
    %2475 = vmatpush2.msra.mxu0 %v2340
    %2476 = vmatprep.subr.mxu0 0.0
    %2477 = vmatpush2.msra.mxu0 %v2339
    %2478 = vmatprep.subr.mxu0 0.0
    %2479 = vmatpush2.msra.mxu0 %v2338
    %2480 = vmatprep.subr.mxu0 0.0
    %2481 = vmatpush2.msra.mxu0 %v2337
    %2482 = vmatprep.subr.mxu0 0.0
    %2483 = vmatpush2.msra.mxu0 %v2336
    %2484 = vmatprep.subr.mxu0 0.0
    %2485 = vmatpush2.msra.mxu0 %v2335
    %2486 = vmatprep.subr.mxu0 0.0
    %2487 = vmatpush2.msra.mxu0 %v2334
    %2488 = vmatprep.subr.mxu0 0.0
    %2489 = vmatpush2.msra.mxu0 %v2333
    %2490 = vmatprep.mubr.f32.mxu0 %v2280
    %2491 = vmatmul.mubr.f32.gmra.mxu0 %v2279
    %v2492 = vpop.f32.mrf.mxu0
    %v2493 = vadd.f32 %v2423, %v2492
    %v2494 = vpop.f32.mrf.mxu0
    %2495 = vdwg.mxu0
    %v2496 = vld [vmem:[%s5] sm:$0xff]
    %v2497 = vld [vmem:[%s5 + $0x8] sm:$0xff]
    %v2498 = vld [vmem:[%s5 + $0x10] sm:$0xff]
    %v2499 = vld [vmem:[%s5 + $0x18] sm:$0xff]
    %v2500 = vld [vmem:[%s5 + $0x20] sm:$0xff]
    %v2501 = vld [vmem:[%s5 + $0x28] sm:$0xff]
    %v2502 = vld [vmem:[%s5 + $0x30] sm:$0xff]
    %v2503 = vld [vmem:[%s5 + $0x38] sm:$0xff]
    %v2504 = vld [vmem:[%s5 + $0x40] sm:$0xff]
    %v2505 = vld [vmem:[%s5 + $0x48] sm:$0xff]
    %v2506 = vld [vmem:[%s5 + $0x50] sm:$0xff]
    %v2507 = vld [vmem:[%s5 + $0x58] sm:$0xff]
    %v2508 = vld [vmem:[%s5 + $0x60] sm:$0xff]
    %v2509 = vld [vmem:[%s5 + $0x68] sm:$0xff]
    %v2510 = vld [vmem:[%s5 + $0x70] sm:$0xff]
    %v2511 = vld [vmem:[%s5 + $0x78] sm:$0xff]
    %v2512 = vld [vmem:[%s5 + $0x80] sm:$0xff]
    %v2513 = vld [vmem:[%s5 + $0x88] sm:$0xff]
    %v2514 = vld [vmem:[%s5 + $0x90] sm:$0xff]
    %v2515 = vld [vmem:[%s5 + $0x98] sm:$0xff]
    %v2516 = vld [vmem:[%s5 + $0xa0] sm:$0xff]
    %v2517 = vld [vmem:[%s5 + $0xa8] sm:$0xff]
    %v2518 = vld [vmem:[%s5 + $0xb0] sm:$0xff]
    %v2519 = vld [vmem:[%s5 + $0xb8] sm:$0xff]
    %v2520 = vld [vmem:[%s5 + $0xc0] sm:$0xff]
    %v2521 = vld [vmem:[%s5 + $0xc8] sm:$0xff]
    %v2522 = vld [vmem:[%s5 + $0xd0] sm:$0xff]
    %v2523 = vld [vmem:[%s5 + $0xd8] sm:$0xff]
    %v2524 = vld [vmem:[%s5 + $0xe0] sm:$0xff]
    %v2525 = vld [vmem:[%s5 + $0xe8] sm:$0xff]
    %v2526 = vld [vmem:[%s5 + $0xf0] sm:$0xff]
    %v2527 = vld [vmem:[%s5 + $0xf8] sm:$0xff]
    %v2528 = vld [vmem:[%s5 + $0x100] sm:$0xff]
    %v2529 = vld [vmem:[%s5 + $0x108] sm:$0xff]
    %v2530 = vld [vmem:[%s5 + $0x110] sm:$0xff]
    %v2531 = vld [vmem:[%s5 + $0x118] sm:$0xff]
    %v2532 = vld [vmem:[%s5 + $0x120] sm:$0xff]
    %v2533 = vld [vmem:[%s5 + $0x128] sm:$0xff]
    %v2534 = vld [vmem:[%s5 + $0x130] sm:$0xff]
    %v2535 = vld [vmem:[%s5 + $0x138] sm:$0xff]
    %v2536 = vld [vmem:[%s5 + $0x140] sm:$0xff]
    %v2537 = vld [vmem:[%s5 + $0x148] sm:$0xff]
    %v2538 = vld [vmem:[%s5 + $0x150] sm:$0xff]
    %v2539 = vld [vmem:[%s5 + $0x158] sm:$0xff]
    %v2540 = vld [vmem:[%s5 + $0x160] sm:$0xff]
    %v2541 = vld [vmem:[%s5 + $0x168] sm:$0xff]
    %v2542 = vld [vmem:[%s5 + $0x170] sm:$0xff]
    %v2543 = vld [vmem:[%s5 + $0x178] sm:$0xff]
    %v2544 = vld [vmem:[%s5 + $0x180] sm:$0xff]
    %v2545 = vld [vmem:[%s5 + $0x188] sm:$0xff]
    %v2546 = vld [vmem:[%s5 + $0x190] sm:$0xff]
    %v2547 = vld [vmem:[%s5 + $0x198] sm:$0xff]
    %v2548 = vld [vmem:[%s5 + $0x1a0] sm:$0xff]
    %v2549 = vld [vmem:[%s5 + $0x1a8] sm:$0xff]
    %v2550 = vld [vmem:[%s5 + $0x1b0] sm:$0xff]
    %v2551 = vld [vmem:[%s5 + $0x1b8] sm:$0xff]
    %v2552 = vld [vmem:[%s5 + $0x1c0] sm:$0xff]
    %v2553 = vld [vmem:[%s5 + $0x1c8] sm:$0xff]
    %v2554 = vld [vmem:[%s5 + $0x1d0] sm:$0xff]
    %v2555 = vld [vmem:[%s5 + $0x1d8] sm:$0xff]
    %v2556 = vld [vmem:[%s5 + $0x1e0] sm:$0xff]
    %v2557 = vld [vmem:[%s5 + $0x1e8] sm:$0xff]
    %v2558 = vld [vmem:[%s5 + $0x1f0] sm:$0xff]
    %v2559 = vld [vmem:[%s5 + $0x1f8] sm:$0xff]
    %v2560 = vld [vmem:[%s6] sm:$0x1]
    %v2562 = vlaneseq
    %v2563 = vshrl.u32 %v2562, 7
    %v2564 = vsub.s32 0, %v2563
    %v2565 = vrot.slane %v2560, %v2564
    %2567 = vmatprep.subr.mxu0 0.0
    %2568 = vmatpush1.msra.mxu0 %v2511
    %2569 = vmatprep.subr.mxu0 0.0
    %2570 = vmatpush1.msra.mxu0 %v2510
    %2571 = vmatprep.subr.mxu0 0.0
    %2572 = vmatpush1.msra.mxu0 %v2509
    %2573 = vmatprep.subr.mxu0 0.0
    %2574 = vmatpush1.msra.mxu0 %v2508
    %2575 = vmatprep.subr.mxu0 0.0
    %2576 = vmatpush1.msra.mxu0 %v2507
    %2577 = vmatprep.subr.mxu0 0.0
    %2578 = vmatpush1.msra.mxu0 %v2506
    %2579 = vmatprep.subr.mxu0 0.0
    %2580 = vmatpush1.msra.mxu0 %v2505
    %2581 = vmatprep.subr.mxu0 0.0
    %2582 = vmatpush1.msra.mxu0 %v2504
    %2583 = vmatprep.subr.mxu0 0.0
    %2584 = vmatpush1.msra.mxu0 %v2503
    %2585 = vmatprep.subr.mxu0 0.0
    %2586 = vmatpush1.msra.mxu0 %v2502
    %2587 = vmatprep.subr.mxu0 0.0
    %2588 = vmatpush1.msra.mxu0 %v2501
    %2589 = vmatprep.subr.mxu0 0.0
    %2590 = vmatpush1.msra.mxu0 %v2500
    %2591 = vmatprep.subr.mxu0 0.0
    %2592 = vmatpush1.msra.mxu0 %v2499
    %2593 = vmatprep.subr.mxu0 0.0
    %2594 = vmatpush1.msra.mxu0 %v2498
    %2595 = vmatprep.subr.mxu0 0.0
    %2596 = vmatpush1.msra.mxu0 %v2497
    %2597 = vmatprep.subr.mxu0 0.0
    %2598 = vmatpush1.msra.mxu0 %v2496
    %2599 = vmatprep.subr.mxu0 0.0
    %2600 = vmatpush2.msra.mxu0 %v2527
    %2601 = vmatprep.subr.mxu0 0.0
    %2602 = vmatpush2.msra.mxu0 %v2526
    %2603 = vmatprep.subr.mxu0 0.0
    %2604 = vmatpush2.msra.mxu0 %v2525
    %2605 = vmatprep.subr.mxu0 0.0
    %2606 = vmatpush2.msra.mxu0 %v2524
    %2607 = vmatprep.subr.mxu0 0.0
    %2608 = vmatpush2.msra.mxu0 %v2523
    %2609 = vmatprep.subr.mxu0 0.0
    %2610 = vmatpush2.msra.mxu0 %v2522
    %2611 = vmatprep.subr.mxu0 0.0
    %2612 = vmatpush2.msra.mxu0 %v2521
    %2613 = vmatprep.subr.mxu0 0.0
    %2614 = vmatpush2.msra.mxu0 %v2520
    %2615 = vmatprep.subr.mxu0 0.0
    %2616 = vmatpush2.msra.mxu0 %v2519
    %2617 = vmatprep.subr.mxu0 0.0
    %2618 = vmatpush2.msra.mxu0 %v2518
    %2619 = vmatprep.subr.mxu0 0.0
    %2620 = vmatpush2.msra.mxu0 %v2517
    %2621 = vmatprep.subr.mxu0 0.0
    %2622 = vmatpush2.msra.mxu0 %v2516
    %2623 = vmatprep.subr.mxu0 0.0
    %2624 = vmatpush2.msra.mxu0 %v2515
    %2625 = vmatprep.subr.mxu0 0.0
    %2626 = vmatpush2.msra.mxu0 %v2514
    %2627 = vmatprep.subr.mxu0 0.0
    %2628 = vmatpush2.msra.mxu0 %v2513
    %2629 = vmatprep.subr.mxu0 0.0
    %2630 = vmatpush2.msra.mxu0 %v2512
    %2631 = vmatprep.mubr.f32.mxu0 %v2282
    %2632 = vmatmul.mubr.f32.gmra.mxu0 %v2281
    %v2633 = vpop.f32.mrf.mxu0
    %v2634 = vadd.f32 %v2565, %v2633
    %v2635 = vpop.f32.mrf.mxu0
    %2636 = vdwg.mxu0
    %2637 = vmatprep.subr.mxu0 0.0
    %2638 = vmatpush1.msra.mxu0 %v2543
    %2639 = vmatprep.subr.mxu0 0.0
    %2640 = vmatpush1.msra.mxu0 %v2542
    %2641 = vmatprep.subr.mxu0 0.0
    %2642 = vmatpush1.msra.mxu0 %v2541
    %2643 = vmatprep.subr.mxu0 0.0
    %2644 = vmatpush1.msra.mxu0 %v2540
    %2645 = vmatprep.subr.mxu0 0.0
    %2646 = vmatpush1.msra.mxu0 %v2539
    %2647 = vmatprep.subr.mxu0 0.0
    %2648 = vmatpush1.msra.mxu0 %v2538
    %2649 = vmatprep.subr.mxu0 0.0
    %2650 = vmatpush1.msra.mxu0 %v2537
    %2651 = vmatprep.subr.mxu0 0.0
    %2652 = vmatpush1.msra.mxu0 %v2536
    %2653 = vmatprep.subr.mxu0 0.0
    %2654 = vmatpush1.msra.mxu0 %v2535
    %2655 = vmatprep.subr.mxu0 0.0
    %2656 = vmatpush1.msra.mxu0 %v2534
    %2657 = vmatprep.subr.mxu0 0.0
    %2658 = vmatpush1.msra.mxu0 %v2533
    %2659 = vmatprep.subr.mxu0 0.0
    %2660 = vmatpush1.msra.mxu0 %v2532
    %2661 = vmatprep.subr.mxu0 0.0
    %2662 = vmatpush1.msra.mxu0 %v2531
    %2663 = vmatprep.subr.mxu0 0.0
    %2664 = vmatpush1.msra.mxu0 %v2530
    %2665 = vmatprep.subr.mxu0 0.0
    %2666 = vmatpush1.msra.mxu0 %v2529
    %2667 = vmatprep.subr.mxu0 0.0
    %2668 = vmatpush1.msra.mxu0 %v2528
    %2669 = vmatprep.subr.mxu0 0.0
    %2670 = vmatpush2.msra.mxu0 %v2559
    %2671 = vmatprep.subr.mxu0 0.0
    %2672 = vmatpush2.msra.mxu0 %v2558
    %2673 = vmatprep.subr.mxu0 0.0
    %2674 = vmatpush2.msra.mxu0 %v2557
    %2675 = vmatprep.subr.mxu0 0.0
    %2676 = vmatpush2.msra.mxu0 %v2556
    %2677 = vmatprep.subr.mxu0 0.0
    %2678 = vmatpush2.msra.mxu0 %v2555
    %2679 = vmatprep.subr.mxu0 0.0
    %2680 = vmatpush2.msra.mxu0 %v2554
    %2681 = vmatprep.subr.mxu0 0.0
    %2682 = vmatpush2.msra.mxu0 %v2553
    %2683 = vmatprep.subr.mxu0 0.0
    %2684 = vmatpush2.msra.mxu0 %v2552
    %2685 = vmatprep.subr.mxu0 0.0
    %2686 = vmatpush2.msra.mxu0 %v2551
    %2687 = vmatprep.subr.mxu0 0.0
    %2688 = vmatpush2.msra.mxu0 %v2550
    %2689 = vmatprep.subr.mxu0 0.0
    %2690 = vmatpush2.msra.mxu0 %v2549
    %2691 = vmatprep.subr.mxu0 0.0
    %2692 = vmatpush2.msra.mxu0 %v2548
    %2693 = vmatprep.subr.mxu0 0.0
    %2694 = vmatpush2.msra.mxu0 %v2547
    %2695 = vmatprep.subr.mxu0 0.0
    %2696 = vmatpush2.msra.mxu0 %v2546
    %2697 = vmatprep.subr.mxu0 0.0
    %2698 = vmatpush2.msra.mxu0 %v2545
    %2699 = vmatprep.subr.mxu0 0.0
    %2700 = vmatpush2.msra.mxu0 %v2544
    %2701 = vmatprep.mubr.f32.mxu0 %v2284
    %2702 = vmatmul.mubr.f32.gmra.mxu0 %v2283
    %v2703 = vpop.f32.mrf.mxu0
    %v2704 = vadd.f32 %v2634, %v2703
    %v2705 = vpop.f32.mrf.mxu0
    %2706 = vdwg.mxu0
    %vm2707 = vcmask 9216
    %v2708 = vsel %vm2707, %v2704, 0.0
    %2709 = vadd.xlane.f32.xlu0 %v2708
    %v2710 = vpop.xlane.xlu0 %2709
    %v2711 = vrcp.pop 2.0
    %v2712 = vmul.f32 %v2710, %v2711
    %v2713 = vsub.f32 %v2704, %v2712
    %2715 = vset.pattern.permute.xlu0 0
    %2716 = vperm.xlu0 %2715, %v2493
    %v2717 = vpop.permute.xlu0 %2716
    %v2719 = vadd.f32 %v2717, %v2713
    %2720 = vst.msk [vmem:[#allocation3] sm:$0x3] %vm2707, %v2719
    // Predicated region
    $region30: #{dqn_rgb_forward.7} parent=1 // pred_check
      _
    $region31: #{dqn_rgb_forward.7} parent=1 // pred_check_branch
      %2722 = sbr.rel (0) target = $region33
    $region32: #{dqn_rgb_forward.7} parent=1 // pred_region
      %s2724 = ssub.s32 32, 32
      %2725 = vsyncadd [#allocation4], %s2724
      %s2727 = sshll.u32 [#allocation3], 4
      %s2728 = int_to_ptr.vmem [resolvable:$true] %s2727
      %2730 = dma.vmem_to_hbm [thread:$0]  %s2728, 32, %s7, [#allocation4]
    $region33: #{dqn_rgb_forward.7} parent=1 // pred_fallthru
      _
    // Predicated region
    $region34: #{dqn_rgb_forward.7} parent=1 // pred_check
      _
    $region35: #{dqn_rgb_forward.7} parent=1 // pred_check_branch
      %2732 = sbr.rel (0) target = $region37
    $region36: #{dqn_rgb_forward.7} parent=1 // pred_region
      %2733 = dma.done [#allocation4], 32
    $region37: #{dqn_rgb_forward.7} parent=1 // pred_fallthru
      _
    %2734 = vsyncpa [#allocation4], 1

</llo_original>
